<compile_context>
chip_gen: v5e
topology: v5e:2x2
jax: 0.10.0
libtpu: 0.0.40
codegen_flags: <defaults>
</compile_context>

<pallas_src>
import math

import numpy as np
import jax
import jax.numpy as jnp
from jax import lax
from jax.experimental import pallas as pl
from jax.experimental.pallas import tpu as pltpu  # noqa: F401  (kept for TPU-specific tuning hooks)

# ----------------------------- small config -----------------------------
B = 2            # batch
S = 8            # sequence length
H = 32           # hidden size (stand-in for 768)
NHEAD = 2
DH = H // NHEAD
INTER = 64       # FFN intermediate
NLAYER = 4       # >= 4 so "last four hidden states" is meaningful
VOCAB = 100
MAXPOS = 64

IMG_C = 3
IMG_HW = 16
STEM_C = 16
CONV1_HW = 8     # spatial size after stride-2 stem conv
CONV2_HW = 4     # spatial size after stride-2 conv2
IMG_FEAT = 64    # stand-in for resnet18's 512-dim feature
NUM_CLASSES = 2

f32 = jnp.float32
MXU_DT = jnp.bfloat16   # matmul operand dtype (f32 accumulation)


# ----------------------------- in-kernel helpers -----------------------------
def _gelu(x):
    # TODO(synk): BERT uses exact erf GELU; tanh approximation used here.
    return 0.5 * x * (1.0 + jnp.tanh(0.7978845608028654 * (x + 0.044715 * x * x * x)))


def _layernorm(x, g, b):
    mu = jnp.mean(x, axis=-1, keepdims=True)
    xc = x - mu
    var = jnp.mean(xc * xc, axis=-1, keepdims=True)
    return xc * lax.rsqrt(var + 1e-12) * g + b


# ----------------------------- single fused forward kernel -----------------------------
def fused_forward_kernel(
        x_ref, mask_ref, eg_ref, eb_ref,
        wqkv_ref, bqkv_ref, wo_ref, bo_ref, g1_ref, b1_ref,
        wi_ref, bi_ref, wo2_ref, bo2_ref, g2_ref, b2_ref,
        wtext_ref,
        p1_ref, w1_ref, b1c_ref,
        sb_ref, wb1_ref, bb1_ref, wb2_ref, bb2_ref,
        s2_ref, wc2_ref, bc2_ref,
        wimg_ref, blin_ref,
        o_ref):
    # ================= text path: 4-layer BERT encoder, fully unrolled =================
    x = _layernorm(x_ref[...], eg_ref[...], eb_ref[...])            # (B*S, H) f32, VMEM resident
    addmask = mask_ref[...]                                         # (B*S, B*S) block-diag + pad
    wtext = wtext_ref[...]                                          # (NLAYER*H, 2) bf16
    scale = 1.0 / math.sqrt(DH)
    txt_logits = jnp.zeros((B, NUM_CLASSES), f32)

    for l in range(NLAYER):                                         # static unroll, weights in VMEM
        xb = x.astype(MXU_DT)
        # fused QKV projection: one (H, 3H) matmul
        qkv = jnp.dot(xb, wqkv_ref[l], preferred_element_type=f32) + bqkv_ref[l]   # (B*S, 3H)
        wo_l = wo_ref[l]                                            # (H, H) bf16
        attn = bo_ref[l]                                            # (1, H) f32, broadcasts
        for hh in range(NHEAD):                                     # batch loop fused via mask
            qh = qkv[:, hh * DH:(hh + 1) * DH].astype(MXU_DT)
            kh = qkv[:, H + hh * DH:H + (hh + 1) * DH].astype(MXU_DT)
            vh = qkv[:, 2 * H + hh * DH:2 * H + (hh + 1) * DH].astype(MXU_DT)
            # q . k^T without an explicit transpose (contract last dims of both)
            s = lax.dot_general(qh, kh, (((1,), (1,)), ((), ())),
                                preferred_element_type=f32) * scale + addmask
            s = s - jnp.max(s, axis=-1, keepdims=True)
            p = jnp.exp(s)
            p = p * pl.reciprocal(jnp.sum(p, axis=-1, keepdims=True), approx=True)
            ctx = jnp.dot(p.astype(MXU_DT), vh, preferred_element_type=f32)
            # fold the output projection per head (avoids the head concat)
            attn = attn + jnp.dot(ctx.astype(MXU_DT), wo_l[hh * DH:(hh + 1) * DH, :],
                                  preferred_element_type=f32)
        x = _layernorm(attn + x, g1_ref[l], b1_ref[l])              # residual + LN fused
        inter = _gelu(jnp.dot(x.astype(MXU_DT), wi_ref[l], preferred_element_type=f32)
                      + bi_ref[l])
        ffn = jnp.dot(inter.astype(MXU_DT), wo2_ref[l], preferred_element_type=f32) + bo2_ref[l]
        x = _layernorm(ffn + x, g2_ref[l], b2_ref[l])               # residual + LN fused

        # CLS (pos 0 per sequence) of this layer feeds the classifier directly:
        # cat(hs[-1],hs[-2],hs[-3],hs[-4])[:,0] @ W_text == sum_l cls_l @ W_text[(L-1-l)*H:...]
        cls = jnp.concatenate([x[b * S:b * S + 1, :] for b in range(B)], axis=0)    # (B, H)
        wt_l = wtext[(NLAYER - 1 - l) * H:(NLAYER - l) * H, :]
        txt_logits = txt_logits + jnp.dot(cls.astype(MXU_DT), wt_l,
                                          preferred_element_type=f32)

    # ================= image path (resnet-style stand-in) + classifier =================
    # activations live as (spatial, batch*channels); each 3x3 conv = ONE stacked-gather
    # matmul (all 9 taps at once, batch-free gather constants) + 9 tiny per-tap matmuls
    # against batch-block-diagonal weights.
    def conv3x3(y, s_ref, w_ref, ho_wo):
        g = jnp.dot(s_ref[...], y.astype(MXU_DT), preferred_element_type=f32)  # (9*HoWo, B*Cin)
        acc = jnp.dot(g[0:ho_wo].astype(MXU_DT), w_ref[0], preferred_element_type=f32)
        for t in range(1, 9):
            acc = acc + jnp.dot(g[t * ho_wo:(t + 1) * ho_wo].astype(MXU_DT), w_ref[t],
                                preferred_element_type=f32)
        return acc

    n1 = CONV1_HW * CONV1_HW
    n2 = CONV2_HW * CONV2_HW
    # stem conv (3x3 / stride 2) from pre-computed im2col patches, + ReLU
    y1 = jnp.maximum(jnp.dot(p1_ref[...].astype(MXU_DT), w1_ref[...],
                             preferred_element_type=f32) + b1c_ref[...], 0.0)       # (64, B*16)
    # basic block: conv-relu-conv, residual add + ReLU fused
    y = jnp.maximum(conv3x3(y1, sb_ref, wb1_ref, n1) + bb1_ref[...], 0.0)
    y = conv3x3(y, sb_ref, wb2_ref, n1) + bb2_ref[...]
    xr = jnp.maximum(y1 + y, 0.0)
    # conv2 (3x3 / stride 2) + ReLU
    y2 = jnp.maximum(conv3x3(xr, s2_ref, wc2_ref, n2) + bc2_ref[...], 0.0)          # (16, B*64)
    # global average pool, then classifier image half (split weight -> no lane concat)
    feats_row = jnp.mean(y2, axis=0, keepdims=True)                                 # (1, B*64)
    feats = jnp.concatenate(
        [feats_row[:, b * IMG_FEAT:(b + 1) * IMG_FEAT] for b in range(B)], axis=0)  # (B, 64)
    img_logits = jnp.dot(feats.astype(MXU_DT), wimg_ref[...], preferred_element_type=f32)

    o_ref[...] = (txt_logits + img_logits + blin_ref[...]).astype(o_ref.dtype)


def fused_forward(params, x_emb, addmask, patches1):
    bp, ip, hp = params["bert"], params["img"], params["head"]
    return pl.pallas_call(
        fused_forward_kernel,
        out_shape=jax.ShapeDtypeStruct((B, NUM_CLASSES), f32),
    )(x_emb, addmask, bp["emb_ln_g"], bp["emb_ln_b"],
      bp["wqkv"], bp["bqkv"], bp["wo"], bp["bo"], bp["ln1_g"], bp["ln1_b"],
      bp["wi"], bp["bi"], bp["wo2"], bp["bo2"], bp["ln2_g"], bp["ln2_b"],
      hp["wtext"],
      patches1, ip["w1_bd"], ip["b1"],
      ip["sb"], ip["wb1_bd"], ip["bb1"], ip["wb2_bd"], ip["bb2"],
      ip["s2"], ip["wc2_bd"], ip["bc2"],
      hp["wimg"], hp["b"])


# ----------------------------- constant / weight preparation -----------------------------
def _tap_gather_stack(hw, stride, pad):
    """(9*ho*ho, hw*hw) 0/1 matrix: all 9 taps' input-pixel selection stacked on rows."""
    ho = (hw + 2 * pad - 3) // stride + 1
    m = np.zeros((9, ho * ho, hw * hw), np.float32)
    for i in range(3):
        for j in range(3):
            t = i * 3 + j
            for oh in range(ho):
                for ow in range(ho):
                    ih, iw = oh * stride + i - pad, ow * stride + j - pad
                    if 0 <= ih < hw and 0 <= iw < hw:
                        m[t, oh * ho + ow, ih * hw + iw] = 1.0
    return jnp.asarray(m.reshape(9 * ho * ho, hw * hw), MXU_DT)     # 0/1: exact in bf16


def _blockdiag_taps(w):
    """(3,3,Cin,Cout) -> (9, B*Cin, B*Cout) per-tap batch-block-diagonal bf16 weights."""
    cin, cout = w.shape[2], w.shape[3]
    wt = w.reshape(9, cin, cout)
    bd = jnp.einsum('bd,tio->tbido', jnp.eye(B, dtype=w.dtype), wt)
    return bd.reshape(9, B * cin, B * cout).astype(MXU_DT)


def _blockdiag_stem(w):
    """(3,3,IMG_C,STEM_C) -> (B*9*IMG_C, B*STEM_C) batch-block-diagonal stem conv weight."""
    wflat = w.reshape(9 * IMG_C, STEM_C)
    bd = jnp.einsum('bd,ko->bkdo', jnp.eye(B, dtype=w.dtype), wflat)
    return bd.reshape(B * 9 * IMG_C, B * STEM_C).astype(MXU_DT)


def _tile_bias(b):
    """per-channel bias row -> (1, B*C) in the (batch, channel) column layout."""
    return jnp.tile(b, (1, B))


def conv1_im2col(images_nchw):
    """Pre-kernel glue: NCHW -> pad -> 3x3/stride-2 patches laid out (spatial, batch*(tap*cin))."""
    x = jnp.transpose(images_nchw, (0, 2, 3, 1))
    xp = jnp.pad(x, ((0, 0), (1, 1), (1, 1), (0, 0)))
    cols = [xp[:, i:i + 2 * CONV1_HW:2, j:j + 2 * CONV1_HW:2, :]
            for i in range(3) for j in range(3)]
    p = jnp.stack(cols, axis=3)                                     # (B, 8, 8, 9, C)
    p = p.reshape(B, CONV1_HW * CONV1_HW, 9 * IMG_C)
    return jnp.transpose(p, (1, 0, 2)).reshape(CONV1_HW * CONV1_HW, B * 9 * IMG_C)


# ----------------------------- parameter init -----------------------------
class KeyGen:
    def __init__(self, key):
        self.key = key

    def __call__(self):
        self.key, k = jax.random.split(self.key)
        return k


def _w(kg, shape, scale=0.02):
    return scale * jax.random.normal(kg(), shape, dtype=f32)


def init_params(key):
    kg = KeyGen(key)
    bert = {
        "word": _w(kg, (VOCAB, H)),
        "pos": _w(kg, (MAXPOS, H)),
        "type": _w(kg, (2, H)),
        "emb_ln_g": jnp.ones((1, H), f32),
        "emb_ln_b": jnp.zeros((1, H), f32),
        # per-layer weights stacked on a leading NLAYER axis; matmul operands pre-cast to bf16
        "wqkv": _w(kg, (NLAYER, H, 3 * H)).astype(MXU_DT),
        "bqkv": jnp.zeros((NLAYER, 1, 3 * H), f32),
        "wo": _w(kg, (NLAYER, H, H)).astype(MXU_DT),
        "bo": jnp.zeros((NLAYER, 1, H), f32),
        "ln1_g": jnp.ones((NLAYER, 1, H), f32), "ln1_b": jnp.zeros((NLAYER, 1, H), f32),
        "wi": _w(kg, (NLAYER, H, INTER)).astype(MXU_DT),
        "bi": jnp.zeros((NLAYER, 1, INTER), f32),
        "wo2": _w(kg, (NLAYER, INTER, H)).astype(MXU_DT),
        "bo2": jnp.zeros((NLAYER, 1, H), f32),
        "ln2_g": jnp.ones((NLAYER, 1, H), f32), "ln2_b": jnp.zeros((NLAYER, 1, H), f32),
    }
    # TODO(synk): resnet18 BatchNorm layers are folded to identity (conv bias only);
    # the image tower is a scaled-down stand-in that keeps conv/residual/GAP dataflow.
    img = {
        "w1_bd": _blockdiag_stem(_w(kg, (3, 3, IMG_C, STEM_C))),
        "b1": _tile_bias(jnp.zeros((1, STEM_C), f32)),
        "wb1_bd": _blockdiag_taps(_w(kg, (3, 3, STEM_C, STEM_C))),
        "bb1": _tile_bias(jnp.zeros((1, STEM_C), f32)),
        "wb2_bd": _blockdiag_taps(_w(kg, (3, 3, STEM_C, STEM_C))),
        "bb2": _tile_bias(jnp.zeros((1, STEM_C), f32)),
        "wc2_bd": _blockdiag_taps(_w(kg, (3, 3, STEM_C, IMG_FEAT))),
        "bc2": _tile_bias(jnp.zeros((1, IMG_FEAT), f32)),
        "sb": _tap_gather_stack(CONV1_HW, 1, 1),     # (9*64, 64) stride-1 block convs
        "s2": _tap_gather_stack(CONV1_HW, 2, 1),     # (9*16, 64) stride-2 conv2
    }
    wlin = _w(kg, (NLAYER * H + IMG_FEAT, NUM_CLASSES))
    head = {
        "wtext": wlin[:NLAYER * H].astype(MXU_DT),   # rows ordered [hs[-1] | hs[-2] | hs[-3] | hs[-4]]
        "wimg": wlin[NLAYER * H:].astype(MXU_DT),
        "b": jnp.zeros((1, NUM_CLASSES), f32),
    }
    return {"bert": bert, "img": img, "head": head}


# ----------------------------- forward -----------------------------
def model_forward(params, images, input_ids, attention_mask):
    bp = params["bert"]
    # embedding gathers + additive attention mask: plain-JAX glue feeding the fused kernel.
    x_emb = (bp["word"][input_ids] + bp["pos"][:S][None, :, :]
             + bp["type"][0][None, None, :]).reshape(B * S, H)
    # block-diagonal-over-batch + key-padding additive mask on the flattened (B*S, B*S) scores
    bids = jnp.arange(B * S, dtype=jnp.int32) // S
    key_ok = attention_mask.reshape(-1) > 0
    allowed = (bids[:, None] == bids[None, :]) & key_ok[None, :]
    addmask = jnp.where(allowed, 0.0, -1e9).astype(f32)              # (B*S, B*S)

    patches1 = conv1_im2col(images)                                  # (64, B*27)
    return fused_forward(params, x_emb, addmask, patches1)           # (B, 2)


# ----------------------------- main -----------------------------
if __name__ == "__main__":
    root = jax.random.PRNGKey(0)
    k_param, k_ids, k_img = jax.random.split(root, 3)

    params = init_params(k_param)
    input_ids = jax.random.randint(k_ids, (B, S), 0, VOCAB, dtype=jnp.int32)
    attention_mask = jnp.ones((B, S), dtype=jnp.int32)
    images = jax.random.normal(k_img, (B, IMG_C, IMG_HW, IMG_HW), dtype=f32)   # NCHW like PyTorch

    fwd = jax.jit(model_forward)
    logits = jax.block_until_ready(fwd(params, images, input_ids, attention_mask))
    assert logits.shape == (B, NUM_CLASSES) and logits.dtype == f32
    print("KERNEL_OK")
</pallas_src>

<mosaic_0001>
module attributes {stable_mosaic.version = 11 : i64} {
  func.func @fused_forward_kernel(%arg0: memref<16x32xf32, #tpu.memory_space<vmem>>, %arg1: memref<16x16xf32, #tpu.memory_space<vmem>>, %arg2: memref<1x32xf32, #tpu.memory_space<vmem>>, %arg3: memref<1x32xf32, #tpu.memory_space<vmem>>, %arg4: memref<4x32x96xbf16, #tpu.memory_space<vmem>>, %arg5: memref<4x1x96xf32, #tpu.memory_space<vmem>>, %arg6: memref<4x32x32xbf16, #tpu.memory_space<vmem>>, %arg7: memref<4x1x32xf32, #tpu.memory_space<vmem>>, %arg8: memref<4x1x32xf32, #tpu.memory_space<vmem>>, %arg9: memref<4x1x32xf32, #tpu.memory_space<vmem>>, %arg10: memref<4x32x64xbf16, #tpu.memory_space<vmem>>, %arg11: memref<4x1x64xf32, #tpu.memory_space<vmem>>, %arg12: memref<4x64x32xbf16, #tpu.memory_space<vmem>>, %arg13: memref<4x1x32xf32, #tpu.memory_space<vmem>>, %arg14: memref<4x1x32xf32, #tpu.memory_space<vmem>>, %arg15: memref<4x1x32xf32, #tpu.memory_space<vmem>>, %arg16: memref<128x2xbf16, #tpu.memory_space<vmem>>, %arg17: memref<64x54xf32, #tpu.memory_space<vmem>>, %arg18: memref<54x32xbf16, #tpu.memory_space<vmem>>, %arg19: memref<1x32xf32, #tpu.memory_space<vmem>>, %arg20: memref<576x64xbf16, #tpu.memory_space<vmem>>, %arg21: memref<9x32x32xbf16, #tpu.memory_space<vmem>>, %arg22: memref<1x32xf32, #tpu.memory_space<vmem>>, %arg23: memref<9x32x32xbf16, #tpu.memory_space<vmem>>, %arg24: memref<1x32xf32, #tpu.memory_space<vmem>>, %arg25: memref<144x64xbf16, #tpu.memory_space<vmem>>, %arg26: memref<9x32x128xbf16, #tpu.memory_space<vmem>>, %arg27: memref<1x128xf32, #tpu.memory_space<vmem>>, %arg28: memref<64x2xbf16, #tpu.memory_space<vmem>>, %arg29: memref<1x2xf32, #tpu.memory_space<vmem>>, %arg30: memref<2x2xf32, #tpu.memory_space<vmem>>) attributes {dimension_semantics = [], scalar_prefetch = 0 : i64, scratch_operands = 0 : i64, tpu.core_type = #tpu.core_type<tc>} {
    %c0 = arith.constant 0 : index
    %c0_0 = arith.constant 0 : index
    %0 = vector.load %arg0[%c0, %c0_0] : memref<16x32xf32, #tpu.memory_space<vmem>>, vector<16x32xf32>
    %c0_1 = arith.constant 0 : index
    %c0_2 = arith.constant 0 : index
    %1 = vector.load %arg2[%c0_1, %c0_2] : memref<1x32xf32, #tpu.memory_space<vmem>>, vector<1x32xf32>
    %c0_3 = arith.constant 0 : index
    %c0_4 = arith.constant 0 : index
    %2 = vector.load %arg3[%c0_3, %c0_4] : memref<1x32xf32, #tpu.memory_space<vmem>>, vector<1x32xf32>
    %cst = arith.constant dense<0.000000e+00> : vector<16xf32>
    %3 = vector.multi_reduction <add>, %0, %cst [1] : vector<16x32xf32> to vector<16xf32>
    %4 = vector.shape_cast %3 : vector<16xf32> to vector<16x1xf32>
    %cst_5 = arith.constant 3.200000e+01 : f32
    %5 = vector.broadcast %cst_5 : f32 to vector<16x1xf32>
    %6 = arith.divf %4, %5 : vector<16x1xf32>
    %7 = vector.broadcast %6 : vector<16x1xf32> to vector<16x32xf32>
    %8 = arith.subf %0, %7 : vector<16x32xf32>
    %9 = arith.mulf %8, %8 : vector<16x32xf32>
    %cst_6 = arith.constant dense<0.000000e+00> : vector<16xf32>
    %10 = vector.multi_reduction <add>, %9, %cst_6 [1] : vector<16x32xf32> to vector<16xf32>
    %11 = vector.shape_cast %10 : vector<16xf32> to vector<16x1xf32>
    %cst_7 = arith.constant 3.200000e+01 : f32
    %12 = vector.broadcast %cst_7 : f32 to vector<16x1xf32>
    %13 = arith.divf %11, %12 : vector<16x1xf32>
    %cst_8 = arith.constant 9.99999996E-13 : f32
    %14 = vector.broadcast %cst_8 : f32 to vector<16x1xf32>
    %15 = arith.addf %13, %14 : vector<16x1xf32>
    %16 = math.rsqrt %15 : vector<16x1xf32>
    %17 = vector.broadcast %16 : vector<16x1xf32> to vector<16x32xf32>
    %18 = arith.mulf %8, %17 : vector<16x32xf32>
    %19 = vector.broadcast %1 : vector<1x32xf32> to vector<16x32xf32>
    %20 = arith.mulf %18, %19 : vector<16x32xf32>
    %21 = vector.broadcast %2 : vector<1x32xf32> to vector<16x32xf32>
    %22 = arith.addf %20, %21 : vector<16x32xf32>
    %c0_9 = arith.constant 0 : index
    %c0_10 = arith.constant 0 : index
    %23 = vector.load %arg1[%c0_9, %c0_10] : memref<16x16xf32, #tpu.memory_space<vmem>>, vector<16x16xf32>
    %c0_11 = arith.constant 0 : index
    %c0_12 = arith.constant 0 : index
    %24 = vector.load %arg16[%c0_11, %c0_12] : memref<128x2xbf16, #tpu.memory_space<vmem>>, vector<128x2xbf16>
    %cst_13 = arith.constant 0.000000e+00 : f32
    %25 = vector.broadcast %cst_13 : f32 to vector<2x2xf32>
    %26 = arith.truncf %22 : vector<16x32xf32> to vector<16x32xbf16>
    %c0_14 = arith.constant 0 : index
    %c0_15 = arith.constant 0 : index
    %c0_16 = arith.constant 0 : index
    %27 = vector.load %arg4[%c0_14, %c0_15, %c0_16] : memref<4x32x96xbf16, #tpu.memory_space<vmem>>, vector<1x32x96xbf16>
    %28 = vector.shape_cast %27 : vector<1x32x96xbf16> to vector<32x96xbf16>
    %cst_17 = arith.constant dense<0.000000e+00> : vector<16x96xf32>
    %29 = tpu.matmul %26, %28, %cst_17 {dimension_numbers = #tpu.dot_dimension_numbers<[1], [0], [0], [1], [0, 0, 1, 1], [], []>} : vector<16x32xbf16>, vector<32x96xbf16>, vector<16x96xf32> -> vector<16x96xf32>
    %c0_18 = arith.constant 0 : index
    %c0_19 = arith.constant 0 : index
    %c0_20 = arith.constant 0 : index
    %30 = vector.load %arg5[%c0_18, %c0_19, %c0_20] : memref<4x1x96xf32, #tpu.memory_space<vmem>>, vector<1x1x96xf32>
    %31 = vector.shape_cast %30 : vector<1x1x96xf32> to vector<1x96xf32>
    %32 = vector.broadcast %31 : vector<1x96xf32> to vector<16x96xf32>
    %33 = arith.addf %29, %32 : vector<16x96xf32>
    %c0_21 = arith.constant 0 : index
    %c0_22 = arith.constant 0 : index
    %c0_23 = arith.constant 0 : index
    %34 = vector.load %arg6[%c0_21, %c0_22, %c0_23] : memref<4x32x32xbf16, #tpu.memory_space<vmem>>, vector<1x32x32xbf16>
    %35 = vector.shape_cast %34 : vector<1x32x32xbf16> to vector<32x32xbf16>
    %c0_24 = arith.constant 0 : index
    %c0_25 = arith.constant 0 : index
    %c0_26 = arith.constant 0 : index
    %36 = vector.load %arg7[%c0_24, %c0_25, %c0_26] : memref<4x1x32xf32, #tpu.memory_space<vmem>>, vector<1x1x32xf32>
    %37 = vector.shape_cast %36 : vector<1x1x32xf32> to vector<1x32xf32>
    %38 = vector.extract_strided_slice %33 {offsets = [0, 0], sizes = [16, 16], strides = [1, 1]} : vector<16x96xf32> to vector<16x16xf32>
    %39 = arith.truncf %38 : vector<16x16xf32> to vector<16x16xbf16>
    %40 = vector.extract_strided_slice %33 {offsets = [0, 32], sizes = [16, 16], strides = [1, 1]} : vector<16x96xf32> to vector<16x16xf32>
    %41 = arith.truncf %40 : vector<16x16xf32> to vector<16x16xbf16>
    %42 = vector.extract_strided_slice %33 {offsets = [0, 64], sizes = [16, 16], strides = [1, 1]} : vector<16x96xf32> to vector<16x16xf32>
    %43 = arith.truncf %42 : vector<16x16xf32> to vector<16x16xbf16>
    %cst_27 = arith.constant dense<0.000000e+00> : vector<16x16xf32>
    %44 = tpu.matmul %39, %41, %cst_27 {dimension_numbers = #tpu.dot_dimension_numbers<[1], [1], [0], [0], [0, 0, 1, 0], [], []>} : vector<16x16xbf16>, vector<16x16xbf16>, vector<16x16xf32> -> vector<16x16xf32>
    %cst_28 = arith.constant 2.500000e-01 : f32
    %45 = vector.broadcast %cst_28 : f32 to vector<16x16xf32>
    %46 = arith.mulf %44, %45 : vector<16x16xf32>
    %47 = arith.addf %46, %23 : vector<16x16xf32>
    %cst_29 = arith.constant dense<0xFF800000> : vector<16xf32>
    %48 = vector.multi_reduction <maximumf>, %47, %cst_29 [1] : vector<16x16xf32> to vector<16xf32>
    %49 = vector.shape_cast %48 : vector<16xf32> to vector<16x1xf32>
    %50 = vector.broadcast %49 : vector<16x1xf32> to vector<16x16xf32>
    %51 = arith.subf %47, %50 : vector<16x16xf32>
    %52 = math.exp %51 : vector<16x16xf32>
    %cst_30 = arith.constant dense<0.000000e+00> : vector<16xf32>
    %53 = vector.multi_reduction <add>, %52, %cst_30 [1] : vector<16x16xf32> to vector<16xf32>
    %54 = vector.shape_cast %53 : vector<16xf32> to vector<16x1xf32>
    %55 = tpu.reciprocal %54 {approx = true} : vector<16x1xf32> -> vector<16x1xf32>
    %56 = vector.broadcast %55 : vector<16x1xf32> to vector<16x16xf32>
    %57 = arith.mulf %52, %56 : vector<16x16xf32>
    %58 = arith.truncf %57 : vector<16x16xf32> to vector<16x16xbf16>
    %cst_31 = arith.constant dense<0.000000e+00> : vector<16x16xf32>
    %59 = tpu.matmul %58, %43, %cst_31 {dimension_numbers = #tpu.dot_dimension_numbers<[1], [0], [0], [1], [0, 0, 1, 1], [], []>} : vector<16x16xbf16>, vector<16x16xbf16>, vector<16x16xf32> -> vector<16x16xf32>
    %60 = arith.truncf %59 : vector<16x16xf32> to vector<16x16xbf16>
    %61 = vector.extract_strided_slice %35 {offsets = [0, 0], sizes = [16, 32], strides = [1, 1]} : vector<32x32xbf16> to vector<16x32xbf16>
    %cst_32 = arith.constant dense<0.000000e+00> : vector<16x32xf32>
    %62 = tpu.matmul %60, %61, %cst_32 {dimension_numbers = #tpu.dot_dimension_numbers<[1], [0], [0], [1], [0, 0, 1, 1], [], []>} : vector<16x16xbf16>, vector<16x32xbf16>, vector<16x32xf32> -> vector<16x32xf32>
    %63 = vector.broadcast %37 : vector<1x32xf32> to vector<16x32xf32>
    %64 = arith.addf %63, %62 : vector<16x32xf32>
    %65 = vector.extract_strided_slice %33 {offsets = [0, 16], sizes = [16, 16], strides = [1, 1]} : vector<16x96xf32> to vector<16x16xf32>
    %66 = arith.truncf %65 : vector<16x16xf32> to vector<16x16xbf16>
    %67 = vector.extract_strided_slice %33 {offsets = [0, 48], sizes = [16, 16], strides = [1, 1]} : vector<16x96xf32> to vector<16x16xf32>
    %68 = arith.truncf %67 : vector<16x16xf32> to vector<16x16xbf16>
    %69 = vector.extract_strided_slice %33 {offsets = [0, 80], sizes = [16, 16], strides = [1, 1]} : vector<16x96xf32> to vector<16x16xf32>
    %70 = arith.truncf %69 : vector<16x16xf32> to vector<16x16xbf16>
    %cst_33 = arith.constant dense<0.000000e+00> : vector<16x16xf32>
    %71 = tpu.matmul %66, %68, %cst_33 {dimension_numbers = #tpu.dot_dimension_numbers<[1], [1], [0], [0], [0, 0, 1, 0], [], []>} : vector<16x16xbf16>, vector<16x16xbf16>, vector<16x16xf32> -> vector<16x16xf32>
    %cst_34 = arith.constant 2.500000e-01 : f32
    %72 = vector.broadcast %cst_34 : f32 to vector<16x16xf32>
    %73 = arith.mulf %71, %72 : vector<16x16xf32>
    %74 = arith.addf %73, %23 : vector<16x16xf32>
    %cst_35 = arith.constant dense<0xFF800000> : vector<16xf32>
    %75 = vector.multi_reduction <maximumf>, %74, %cst_35 [1] : vector<16x16xf32> to vector<16xf32>
    %76 = vector.shape_cast %75 : vector<16xf32> to vector<16x1xf32>
    %77 = vector.broadcast %76 : vector<16x1xf32> to vector<16x16xf32>
    %78 = arith.subf %74, %77 : vector<16x16xf32>
    %79 = math.exp %78 : vector<16x16xf32>
    %cst_36 = arith.constant dense<0.000000e+00> : vector<16xf32>
    %80 = vector.multi_reduction <add>, %79, %cst_36 [1] : vector<16x16xf32> to vector<16xf32>
    %81 = vector.shape_cast %80 : vector<16xf32> to vector<16x1xf32>
    %82 = tpu.reciprocal %81 {approx = true} : vector<16x1xf32> -> vector<16x1xf32>
    %83 = vector.broadcast %82 : vector<16x1xf32> to vector<16x16xf32>
    %84 = arith.mulf %79, %83 : vector<16x16xf32>
    %85 = arith.truncf %84 : vector<16x16xf32> to vector<16x16xbf16>
    %cst_37 = arith.constant dense<0.000000e+00> : vector<16x16xf32>
    %86 = tpu.matmul %85, %70, %cst_37 {dimension_numbers = #tpu.dot_dimension_numbers<[1], [0], [0], [1], [0, 0, 1, 1], [], []>} : vector<16x16xbf16>, vector<16x16xbf16>, vector<16x16xf32> -> vector<16x16xf32>
    %87 = arith.truncf %86 : vector<16x16xf32> to vector<16x16xbf16>
    %88 = vector.extract_strided_slice %35 {offsets = [16, 0], sizes = [16, 32], strides = [1, 1]} : vector<32x32xbf16> to vector<16x32xbf16>
    %cst_38 = arith.constant dense<0.000000e+00> : vector<16x32xf32>
    %89 = tpu.matmul %87, %88, %cst_38 {dimension_numbers = #tpu.dot_dimension_numbers<[1], [0], [0], [1], [0, 0, 1, 1], [], []>} : vector<16x16xbf16>, vector<16x32xbf16>, vector<16x32xf32> -> vector<16x32xf32>
    %90 = arith.addf %64, %89 : vector<16x32xf32>
    %91 = arith.addf %90, %22 : vector<16x32xf32>
    %c0_39 = arith.constant 0 : index
    %c0_40 = arith.constant 0 : index
    %c0_41 = arith.constant 0 : index
    %92 = vector.load %arg8[%c0_39, %c0_40, %c0_41] : memref<4x1x32xf32, #tpu.memory_space<vmem>>, vector<1x1x32xf32>
    %93 = vector.shape_cast %92 : vector<1x1x32xf32> to vector<1x32xf32>
    %c0_42 = arith.constant 0 : index
    %c0_43 = arith.constant 0 : index
    %c0_44 = arith.constant 0 : index
    %94 = vector.load %arg9[%c0_42, %c0_43, %c0_44] : memref<4x1x32xf32, #tpu.memory_space<vmem>>, vector<1x1x32xf32>
    %95 = vector.shape_cast %94 : vector<1x1x32xf32> to vector<1x32xf32>
    %cst_45 = arith.constant dense<0.000000e+00> : vector<16xf32>
    %96 = vector.multi_reduction <add>, %91, %cst_45 [1] : vector<16x32xf32> to vector<16xf32>
    %97 = vector.shape_cast %96 : vector<16xf32> to vector<16x1xf32>
    %cst_46 = arith.constant 3.200000e+01 : f32
    %98 = vector.broadcast %cst_46 : f32 to vector<16x1xf32>
    %99 = arith.divf %97, %98 : vector<16x1xf32>
    %100 = vector.broadcast %99 : vector<16x1xf32> to vector<16x32xf32>
    %101 = arith.subf %91, %100 : vector<16x32xf32>
    %102 = arith.mulf %101, %101 : vector<16x32xf32>
    %cst_47 = arith.constant dense<0.000000e+00> : vector<16xf32>
    %103 = vector.multi_reduction <add>, %102, %cst_47 [1] : vector<16x32xf32> to vector<16xf32>
    %104 = vector.shape_cast %103 : vector<16xf32> to vector<16x1xf32>
    %cst_48 = arith.constant 3.200000e+01 : f32
    %105 = vector.broadcast %cst_48 : f32 to vector<16x1xf32>
    %106 = arith.divf %104, %105 : vector<16x1xf32>
    %cst_49 = arith.constant 9.99999996E-13 : f32
    %107 = vector.broadcast %cst_49 : f32 to vector<16x1xf32>
    %108 = arith.addf %106, %107 : vector<16x1xf32>
    %109 = math.rsqrt %108 : vector<16x1xf32>
    %110 = vector.broadcast %109 : vector<16x1xf32> to vector<16x32xf32>
    %111 = arith.mulf %101, %110 : vector<16x32xf32>
    %112 = vector.broadcast %93 : vector<1x32xf32> to vector<16x32xf32>
    %113 = arith.mulf %111, %112 : vector<16x32xf32>
    %114 = vector.broadcast %95 : vector<1x32xf32> to vector<16x32xf32>
    %115 = arith.addf %113, %114 : vector<16x32xf32>
    %116 = arith.truncf %115 : vector<16x32xf32> to vector<16x32xbf16>
    %c0_50 = arith.constant 0 : index
    %c0_51 = arith.constant 0 : index
    %c0_52 = arith.constant 0 : index
    %117 = vector.load %arg10[%c0_50, %c0_51, %c0_52] : memref<4x32x64xbf16, #tpu.memory_space<vmem>>, vector<1x32x64xbf16>
    %118 = vector.shape_cast %117 : vector<1x32x64xbf16> to vector<32x64xbf16>
    %cst_53 = arith.constant dense<0.000000e+00> : vector<16x64xf32>
    %119 = tpu.matmul %116, %118, %cst_53 {dimension_numbers = #tpu.dot_dimension_numbers<[1], [0], [0], [1], [0, 0, 1, 1], [], []>} : vector<16x32xbf16>, vector<32x64xbf16>, vector<16x64xf32> -> vector<16x64xf32>
    %c0_54 = arith.constant 0 : index
    %c0_55 = arith.constant 0 : index
    %c0_56 = arith.constant 0 : index
    %120 = vector.load %arg11[%c0_54, %c0_55, %c0_56] : memref<4x1x64xf32, #tpu.memory_space<vmem>>, vector<1x1x64xf32>
    %121 = vector.shape_cast %120 : vector<1x1x64xf32> to vector<1x64xf32>
    %122 = vector.broadcast %121 : vector<1x64xf32> to vector<16x64xf32>
    %123 = arith.addf %119, %122 : vector<16x64xf32>
    %cst_57 = arith.constant 5.000000e-01 : f32
    %124 = vector.broadcast %cst_57 : f32 to vector<16x64xf32>
    %125 = arith.mulf %124, %123 : vector<16x64xf32>
    %cst_58 = arith.constant 4.471500e-02 : f32
    %126 = vector.broadcast %cst_58 : f32 to vector<16x64xf32>
    %127 = arith.mulf %126, %123 : vector<16x64xf32>
    %128 = arith.mulf %127, %123 : vector<16x64xf32>
    %129 = arith.mulf %128, %123 : vector<16x64xf32>
    %130 = arith.addf %123, %129 : vector<16x64xf32>
    %cst_59 = arith.constant 0.797884583 : f32
    %131 = vector.broadcast %cst_59 : f32 to vector<16x64xf32>
    %132 = arith.mulf %131, %130 : vector<16x64xf32>
    %133 = math.tanh %132 : vector<16x64xf32>
    %cst_60 = arith.constant 1.000000e+00 : f32
    %134 = vector.broadcast %cst_60 : f32 to vector<16x64xf32>
    %135 = arith.addf %134, %133 : vector<16x64xf32>
    %136 = arith.mulf %125, %135 : vector<16x64xf32>
    %137 = arith.truncf %136 : vector<16x64xf32> to vector<16x64xbf16>
    %c0_61 = arith.constant 0 : index
    %c0_62 = arith.constant 0 : index
    %c0_63 = arith.constant 0 : index
    %138 = vector.load %arg12[%c0_61, %c0_62, %c0_63] : memref<4x64x32xbf16, #tpu.memory_space<vmem>>, vector<1x64x32xbf16>
    %139 = vector.shape_cast %138 : vector<1x64x32xbf16> to vector<64x32xbf16>
    %cst_64 = arith.constant dense<0.000000e+00> : vector<16x32xf32>
    %140 = tpu.matmul %137, %139, %cst_64 {dimension_numbers = #tpu.dot_dimension_numbers<[1], [0], [0], [1], [0, 0, 1, 1], [], []>} : vector<16x64xbf16>, vector<64x32xbf16>, vector<16x32xf32> -> vector<16x32xf32>
    %c0_65 = arith.constant 0 : index
    %c0_66 = arith.constant 0 : index
    %c0_67 = arith.constant 0 : index
    %141 = vector.load %arg13[%c0_65, %c0_66, %c0_67] : memref<4x1x32xf32, #tpu.memory_space<vmem>>, vector<1x1x32xf32>
    %142 = vector.shape_cast %141 : vector<1x1x32xf32> to vector<1x32xf32>
    %143 = vector.broadcast %142 : vector<1x32xf32> to vector<16x32xf32>
    %144 = arith.addf %140, %143 : vector<16x32xf32>
    %145 = arith.addf %144, %115 : vector<16x32xf32>
    %c0_68 = arith.constant 0 : index
    %c0_69 = arith.constant 0 : index
    %c0_70 = arith.constant 0 : index
    %146 = vector.load %arg14[%c0_68, %c0_69, %c0_70] : memref<4x1x32xf32, #tpu.memory_space<vmem>>, vector<1x1x32xf32>
    %147 = vector.shape_cast %146 : vector<1x1x32xf32> to vector<1x32xf32>
    %c0_71 = arith.constant 0 : index
    %c0_72 = arith.constant 0 : index
    %c0_73 = arith.constant 0 : index
    %148 = vector.load %arg15[%c0_71, %c0_72, %c0_73] : memref<4x1x32xf32, #tpu.memory_space<vmem>>, vector<1x1x32xf32>
    %149 = vector.shape_cast %148 : vector<1x1x32xf32> to vector<1x32xf32>
    %cst_74 = arith.constant dense<0.000000e+00> : vector<16xf32>
    %150 = vector.multi_reduction <add>, %145, %cst_74 [1] : vector<16x32xf32> to vector<16xf32>
    %151 = vector.shape_cast %150 : vector<16xf32> to vector<16x1xf32>
    %cst_75 = arith.constant 3.200000e+01 : f32
    %152 = vector.broadcast %cst_75 : f32 to vector<16x1xf32>
    %153 = arith.divf %151, %152 : vector<16x1xf32>
    %154 = vector.broadcast %153 : vector<16x1xf32> to vector<16x32xf32>
    %155 = arith.subf %145, %154 : vector<16x32xf32>
    %156 = arith.mulf %155, %155 : vector<16x32xf32>
    %cst_76 = arith.constant dense<0.000000e+00> : vector<16xf32>
    %157 = vector.multi_reduction <add>, %156, %cst_76 [1] : vector<16x32xf32> to vector<16xf32>
    %158 = vector.shape_cast %157 : vector<16xf32> to vector<16x1xf32>
    %cst_77 = arith.constant 3.200000e+01 : f32
    %159 = vector.broadcast %cst_77 : f32 to vector<16x1xf32>
    %160 = arith.divf %158, %159 : vector<16x1xf32>
    %cst_78 = arith.constant 9.99999996E-13 : f32
    %161 = vector.broadcast %cst_78 : f32 to vector<16x1xf32>
    %162 = arith.addf %160, %161 : vector<16x1xf32>
    %163 = math.rsqrt %162 : vector<16x1xf32>
    %164 = vector.broadcast %163 : vector<16x1xf32> to vector<16x32xf32>
    %165 = arith.mulf %155, %164 : vector<16x32xf32>
    %166 = vector.broadcast %147 : vector<1x32xf32> to vector<16x32xf32>
    %167 = arith.mulf %165, %166 : vector<16x32xf32>
    %168 = vector.broadcast %149 : vector<1x32xf32> to vector<16x32xf32>
    %169 = arith.addf %167, %168 : vector<16x32xf32>
    %170 = vector.extract_strided_slice %169 {offsets = [0, 0], sizes = [1, 32], strides = [1, 1]} : vector<16x32xf32> to vector<1x32xf32>
    %171 = vector.extract_strided_slice %169 {offsets = [8, 0], sizes = [1, 32], strides = [1, 1]} : vector<16x32xf32> to vector<1x32xf32>
    %172 = tpu.concatenate %170, %171 in 0 : vector<1x32xf32>, vector<1x32xf32> -> vector<2x32xf32>
    %173 = vector.extract_strided_slice %24 {offsets = [96, 0], sizes = [32, 2], strides = [1, 1]} : vector<128x2xbf16> to vector<32x2xbf16>
    %174 = arith.truncf %172 : vector<2x32xf32> to vector<2x32xbf16>
    %cst_79 = arith.constant dense<0.000000e+00> : vector<2x2xf32>
    %175 = tpu.matmul %174, %173, %cst_79 {dimension_numbers = #tpu.dot_dimension_numbers<[1], [0], [0], [1], [0, 0, 1, 1], [], []>} : vector<2x32xbf16>, vector<32x2xbf16>, vector<2x2xf32> -> vector<2x2xf32>
    %176 = arith.addf %25, %175 : vector<2x2xf32>
    %177 = arith.truncf %169 : vector<16x32xf32> to vector<16x32xbf16>
    %c1 = arith.constant 1 : index
    %c0_80 = arith.constant 0 : index
    %c0_81 = arith.constant 0 : index
    %178 = vector.load %arg4[%c1, %c0_80, %c0_81] : memref<4x32x96xbf16, #tpu.memory_space<vmem>>, vector<1x32x96xbf16>
    %179 = vector.shape_cast %178 : vector<1x32x96xbf16> to vector<32x96xbf16>
    %cst_82 = arith.constant dense<0.000000e+00> : vector<16x96xf32>
    %180 = tpu.matmul %177, %179, %cst_82 {dimension_numbers = #tpu.dot_dimension_numbers<[1], [0], [0], [1], [0, 0, 1, 1], [], []>} : vector<16x32xbf16>, vector<32x96xbf16>, vector<16x96xf32> -> vector<16x96xf32>
    %c1_83 = arith.constant 1 : index
    %c0_84 = arith.constant 0 : index
    %c0_85 = arith.constant 0 : index
    %181 = vector.load %arg5[%c1_83, %c0_84, %c0_85] : memref<4x1x96xf32, #tpu.memory_space<vmem>>, vector<1x1x96xf32>
    %182 = vector.shape_cast %181 : vector<1x1x96xf32> to vector<1x96xf32>
    %183 = vector.broadcast %182 : vector<1x96xf32> to vector<16x96xf32>
    %184 = arith.addf %180, %183 : vector<16x96xf32>
    %c1_86 = arith.constant 1 : index
    %c0_87 = arith.constant 0 : index
    %c0_88 = arith.constant 0 : index
    %185 = vector.load %arg6[%c1_86, %c0_87, %c0_88] : memref<4x32x32xbf16, #tpu.memory_space<vmem>>, vector<1x32x32xbf16>
    %186 = vector.shape_cast %185 : vector<1x32x32xbf16> to vector<32x32xbf16>
    %c1_89 = arith.constant 1 : index
    %c0_90 = arith.constant 0 : index
    %c0_91 = arith.constant 0 : index
    %187 = vector.load %arg7[%c1_89, %c0_90, %c0_91] : memref<4x1x32xf32, #tpu.memory_space<vmem>>, vector<1x1x32xf32>
    %188 = vector.shape_cast %187 : vector<1x1x32xf32> to vector<1x32xf32>
    %189 = vector.extract_strided_slice %184 {offsets = [0, 0], sizes = [16, 16], strides = [1, 1]} : vector<16x96xf32> to vector<16x16xf32>
    %190 = arith.truncf %189 : vector<16x16xf32> to vector<16x16xbf16>
    %191 = vector.extract_strided_slice %184 {offsets = [0, 32], sizes = [16, 16], strides = [1, 1]} : vector<16x96xf32> to vector<16x16xf32>
    %192 = arith.truncf %191 : vector<16x16xf32> to vector<16x16xbf16>
    %193 = vector.extract_strided_slice %184 {offsets = [0, 64], sizes = [16, 16], strides = [1, 1]} : vector<16x96xf32> to vector<16x16xf32>
    %194 = arith.truncf %193 : vector<16x16xf32> to vector<16x16xbf16>
    %cst_92 = arith.constant dense<0.000000e+00> : vector<16x16xf32>
    %195 = tpu.matmul %190, %192, %cst_92 {dimension_numbers = #tpu.dot_dimension_numbers<[1], [1], [0], [0], [0, 0, 1, 0], [], []>} : vector<16x16xbf16>, vector<16x16xbf16>, vector<16x16xf32> -> vector<16x16xf32>
    %cst_93 = arith.constant 2.500000e-01 : f32
    %196 = vector.broadcast %cst_93 : f32 to vector<16x16xf32>
    %197 = arith.mulf %195, %196 : vector<16x16xf32>
    %198 = arith.addf %197, %23 : vector<16x16xf32>
    %cst_94 = arith.constant dense<0xFF800000> : vector<16xf32>
    %199 = vector.multi_reduction <maximumf>, %198, %cst_94 [1] : vector<16x16xf32> to vector<16xf32>
    %200 = vector.shape_cast %199 : vector<16xf32> to vector<16x1xf32>
    %201 = vector.broadcast %200 : vector<16x1xf32> to vector<16x16xf32>
    %202 = arith.subf %198, %201 : vector<16x16xf32>
    %203 = math.exp %202 : vector<16x16xf32>
    %cst_95 = arith.constant dense<0.000000e+00> : vector<16xf32>
    %204 = vector.multi_reduction <add>, %203, %cst_95 [1] : vector<16x16xf32> to vector<16xf32>
    %205 = vector.shape_cast %204 : vector<16xf32> to vector<16x1xf32>
    %206 = tpu.reciprocal %205 {approx = true} : vector<16x1xf32> -> vector<16x1xf32>
    %207 = vector.broadcast %206 : vector<16x1xf32> to vector<16x16xf32>
    %208 = arith.mulf %203, %207 : vector<16x16xf32>
    %209 = arith.truncf %208 : vector<16x16xf32> to vector<16x16xbf16>
    %cst_96 = arith.constant dense<0.000000e+00> : vector<16x16xf32>
    %210 = tpu.matmul %209, %194, %cst_96 {dimension_numbers = #tpu.dot_dimension_numbers<[1], [0], [0], [1], [0, 0, 1, 1], [], []>} : vector<16x16xbf16>, vector<16x16xbf16>, vector<16x16xf32> -> vector<16x16xf32>
    %211 = arith.truncf %210 : vector<16x16xf32> to vector<16x16xbf16>
    %212 = vector.extract_strided_slice %186 {offsets = [0, 0], sizes = [16, 32], strides = [1, 1]} : vector<32x32xbf16> to vector<16x32xbf16>
    %cst_97 = arith.constant dense<0.000000e+00> : vector<16x32xf32>
    %213 = tpu.matmul %211, %212, %cst_97 {dimension_numbers = #tpu.dot_dimension_numbers<[1], [0], [0], [1], [0, 0, 1, 1], [], []>} : vector<16x16xbf16>, vector<16x32xbf16>, vector<16x32xf32> -> vector<16x32xf32>
    %214 = vector.broadcast %188 : vector<1x32xf32> to vector<16x32xf32>
    %215 = arith.addf %214, %213 : vector<16x32xf32>
    %216 = vector.extract_strided_slice %184 {offsets = [0, 16], sizes = [16, 16], strides = [1, 1]} : vector<16x96xf32> to vector<16x16xf32>
    %217 = arith.truncf %216 : vector<16x16xf32> to vector<16x16xbf16>
    %218 = vector.extract_strided_slice %184 {offsets = [0, 48], sizes = [16, 16], strides = [1, 1]} : vector<16x96xf32> to vector<16x16xf32>
    %219 = arith.truncf %218 : vector<16x16xf32> to vector<16x16xbf16>
    %220 = vector.extract_strided_slice %184 {offsets = [0, 80], sizes = [16, 16], strides = [1, 1]} : vector<16x96xf32> to vector<16x16xf32>
    %221 = arith.truncf %220 : vector<16x16xf32> to vector<16x16xbf16>
    %cst_98 = arith.constant dense<0.000000e+00> : vector<16x16xf32>
    %222 = tpu.matmul %217, %219, %cst_98 {dimension_numbers = #tpu.dot_dimension_numbers<[1], [1], [0], [0], [0, 0, 1, 0], [], []>} : vector<16x16xbf16>, vector<16x16xbf16>, vector<16x16xf32> -> vector<16x16xf32>
    %cst_99 = arith.constant 2.500000e-01 : f32
    %223 = vector.broadcast %cst_99 : f32 to vector<16x16xf32>
    %224 = arith.mulf %222, %223 : vector<16x16xf32>
    %225 = arith.addf %224, %23 : vector<16x16xf32>
    %cst_100 = arith.constant dense<0xFF800000> : vector<16xf32>
    %226 = vector.multi_reduction <maximumf>, %225, %cst_100 [1] : vector<16x16xf32> to vector<16xf32>
    %227 = vector.shape_cast %226 : vector<16xf32> to vector<16x1xf32>
    %228 = vector.broadcast %227 : vector<16x1xf32> to vector<16x16xf32>
    %229 = arith.subf %225, %228 : vector<16x16xf32>
    %230 = math.exp %229 : vector<16x16xf32>
    %cst_101 = arith.constant dense<0.000000e+00> : vector<16xf32>
    %231 = vector.multi_reduction <add>, %230, %cst_101 [1] : vector<16x16xf32> to vector<16xf32>
    %232 = vector.shape_cast %231 : vector<16xf32> to vector<16x1xf32>
    %233 = tpu.reciprocal %232 {approx = true} : vector<16x1xf32> -> vector<16x1xf32>
    %234 = vector.broadcast %233 : vector<16x1xf32> to vector<16x16xf32>
    %235 = arith.mulf %230, %234 : vector<16x16xf32>
    %236 = arith.truncf %235 : vector<16x16xf32> to vector<16x16xbf16>
    %cst_102 = arith.constant dense<0.000000e+00> : vector<16x16xf32>
    %237 = tpu.matmul %236, %221, %cst_102 {dimension_numbers = #tpu.dot_dimension_numbers<[1], [0], [0], [1], [0, 0, 1, 1], [], []>} : vector<16x16xbf16>, vector<16x16xbf16>, vector<16x16xf32> -> vector<16x16xf32>
    %238 = arith.truncf %237 : vector<16x16xf32> to vector<16x16xbf16>
    %239 = vector.extract_strided_slice %186 {offsets = [16, 0], sizes = [16, 32], strides = [1, 1]} : vector<32x32xbf16> to vector<16x32xbf16>
    %cst_103 = arith.constant dense<0.000000e+00> : vector<16x32xf32>
    %240 = tpu.matmul %238, %239, %cst_103 {dimension_numbers = #tpu.dot_dimension_numbers<[1], [0], [0], [1], [0, 0, 1, 1], [], []>} : vector<16x16xbf16>, vector<16x32xbf16>, vector<16x32xf32> -> vector<16x32xf32>
    %241 = arith.addf %215, %240 : vector<16x32xf32>
    %242 = arith.addf %241, %169 : vector<16x32xf32>
    %c1_104 = arith.constant 1 : index
    %c0_105 = arith.constant 0 : index
    %c0_106 = arith.constant 0 : index
    %243 = vector.load %arg8[%c1_104, %c0_105, %c0_106] : memref<4x1x32xf32, #tpu.memory_space<vmem>>, vector<1x1x32xf32>
    %244 = vector.shape_cast %243 : vector<1x1x32xf32> to vector<1x32xf32>
    %c1_107 = arith.constant 1 : index
    %c0_108 = arith.constant 0 : index
    %c0_109 = arith.constant 0 : index
    %245 = vector.load %arg9[%c1_107, %c0_108, %c0_109] : memref<4x1x32xf32, #tpu.memory_space<vmem>>, vector<1x1x32xf32>
    %246 = vector.shape_cast %245 : vector<1x1x32xf32> to vector<1x32xf32>
    %cst_110 = arith.constant dense<0.000000e+00> : vector<16xf32>
    %247 = vector.multi_reduction <add>, %242, %cst_110 [1] : vector<16x32xf32> to vector<16xf32>
    %248 = vector.shape_cast %247 : vector<16xf32> to vector<16x1xf32>
    %cst_111 = arith.constant 3.200000e+01 : f32
    %249 = vector.broadcast %cst_111 : f32 to vector<16x1xf32>
    %250 = arith.divf %248, %249 : vector<16x1xf32>
    %251 = vector.broadcast %250 : vector<16x1xf32> to vector<16x32xf32>
    %252 = arith.subf %242, %251 : vector<16x32xf32>
    %253 = arith.mulf %252, %252 : vector<16x32xf32>
    %cst_112 = arith.constant dense<0.000000e+00> : vector<16xf32>
    %254 = vector.multi_reduction <add>, %253, %cst_112 [1] : vector<16x32xf32> to vector<16xf32>
    %255 = vector.shape_cast %254 : vector<16xf32> to vector<16x1xf32>
    %cst_113 = arith.constant 3.200000e+01 : f32
    %256 = vector.broadcast %cst_113 : f32 to vector<16x1xf32>
    %257 = arith.divf %255, %256 : vector<16x1xf32>
    %cst_114 = arith.constant 9.99999996E-13 : f32
    %258 = vector.broadcast %cst_114 : f32 to vector<16x1xf32>
    %259 = arith.addf %257, %258 : vector<16x1xf32>
    %260 = math.rsqrt %259 : vector<16x1xf32>
    %261 = vector.broadcast %260 : vector<16x1xf32> to vector<16x32xf32>
    %262 = arith.mulf %252, %261 : vector<16x32xf32>
    %263 = vector.broadcast %244 : vector<1x32xf32> to vector<16x32xf32>
    %264 = arith.mulf %262, %263 : vector<16x32xf32>
    %265 = vector.broadcast %246 : vector<1x32xf32> to vector<16x32xf32>
    %266 = arith.addf %264, %265 : vector<16x32xf32>
    %267 = arith.truncf %266 : vector<16x32xf32> to vector<16x32xbf16>
    %c1_115 = arith.constant 1 : index
    %c0_116 = arith.constant 0 : index
    %c0_117 = arith.constant 0 : index
    %268 = vector.load %arg10[%c1_115, %c0_116, %c0_117] : memref<4x32x64xbf16, #tpu.memory_space<vmem>>, vector<1x32x64xbf16>
    %269 = vector.shape_cast %268 : vector<1x32x64xbf16> to vector<32x64xbf16>
    %cst_118 = arith.constant dense<0.000000e+00> : vector<16x64xf32>
    %270 = tpu.matmul %267, %269, %cst_118 {dimension_numbers = #tpu.dot_dimension_numbers<[1], [0], [0], [1], [0, 0, 1, 1], [], []>} : vector<16x32xbf16>, vector<32x64xbf16>, vector<16x64xf32> -> vector<16x64xf32>
    %c1_119 = arith.constant 1 : index
    %c0_120 = arith.constant 0 : index
    %c0_121 = arith.constant 0 : index
    %271 = vector.load %arg11[%c1_119, %c0_120, %c0_121] : memref<4x1x64xf32, #tpu.memory_space<vmem>>, vector<1x1x64xf32>
    %272 = vector.shape_cast %271 : vector<1x1x64xf32> to vector<1x64xf32>
    %273 = vector.broadcast %272 : vector<1x64xf32> to vector<16x64xf32>
    %274 = arith.addf %270, %273 : vector<16x64xf32>
    %cst_122 = arith.constant 5.000000e-01 : f32
    %275 = vector.broadcast %cst_122 : f32 to vector<16x64xf32>
    %276 = arith.mulf %275, %274 : vector<16x64xf32>
    %cst_123 = arith.constant 4.471500e-02 : f32
    %277 = vector.broadcast %cst_123 : f32 to vector<16x64xf32>
    %278 = arith.mulf %277, %274 : vector<16x64xf32>
    %279 = arith.mulf %278, %274 : vector<16x64xf32>
    %280 = arith.mulf %279, %274 : vector<16x64xf32>
    %281 = arith.addf %274, %280 : vector<16x64xf32>
    %cst_124 = arith.constant 0.797884583 : f32
    %282 = vector.broadcast %cst_124 : f32 to vector<16x64xf32>
    %283 = arith.mulf %282, %281 : vector<16x64xf32>
    %284 = math.tanh %283 : vector<16x64xf32>
    %cst_125 = arith.constant 1.000000e+00 : f32
    %285 = vector.broadcast %cst_125 : f32 to vector<16x64xf32>
    %286 = arith.addf %285, %284 : vector<16x64xf32>
    %287 = arith.mulf %276, %286 : vector<16x64xf32>
    %288 = arith.truncf %287 : vector<16x64xf32> to vector<16x64xbf16>
    %c1_126 = arith.constant 1 : index
    %c0_127 = arith.constant 0 : index
    %c0_128 = arith.constant 0 : index
    %289 = vector.load %arg12[%c1_126, %c0_127, %c0_128] : memref<4x64x32xbf16, #tpu.memory_space<vmem>>, vector<1x64x32xbf16>
    %290 = vector.shape_cast %289 : vector<1x64x32xbf16> to vector<64x32xbf16>
    %cst_129 = arith.constant dense<0.000000e+00> : vector<16x32xf32>
    %291 = tpu.matmul %288, %290, %cst_129 {dimension_numbers = #tpu.dot_dimension_numbers<[1], [0], [0], [1], [0, 0, 1, 1], [], []>} : vector<16x64xbf16>, vector<64x32xbf16>, vector<16x32xf32> -> vector<16x32xf32>
    %c1_130 = arith.constant 1 : index
    %c0_131 = arith.constant 0 : index
    %c0_132 = arith.constant 0 : index
    %292 = vector.load %arg13[%c1_130, %c0_131, %c0_132] : memref<4x1x32xf32, #tpu.memory_space<vmem>>, vector<1x1x32xf32>
    %293 = vector.shape_cast %292 : vector<1x1x32xf32> to vector<1x32xf32>
    %294 = vector.broadcast %293 : vector<1x32xf32> to vector<16x32xf32>
    %295 = arith.addf %291, %294 : vector<16x32xf32>
    %296 = arith.addf %295, %266 : vector<16x32xf32>
    %c1_133 = arith.constant 1 : index
    %c0_134 = arith.constant 0 : index
    %c0_135 = arith.constant 0 : index
    %297 = vector.load %arg14[%c1_133, %c0_134, %c0_135] : memref<4x1x32xf32, #tpu.memory_space<vmem>>, vector<1x1x32xf32>
    %298 = vector.shape_cast %297 : vector<1x1x32xf32> to vector<1x32xf32>
    %c1_136 = arith.constant 1 : index
    %c0_137 = arith.constant 0 : index
    %c0_138 = arith.constant 0 : index
    %299 = vector.load %arg15[%c1_136, %c0_137, %c0_138] : memref<4x1x32xf32, #tpu.memory_space<vmem>>, vector<1x1x32xf32>
    %300 = vector.shape_cast %299 : vector<1x1x32xf32> to vector<1x32xf32>
    %cst_139 = arith.constant dense<0.000000e+00> : vector<16xf32>
    %301 = vector.multi_reduction <add>, %296, %cst_139 [1] : vector<16x32xf32> to vector<16xf32>
    %302 = vector.shape_cast %301 : vector<16xf32> to vector<16x1xf32>
    %cst_140 = arith.constant 3.200000e+01 : f32
    %303 = vector.broadcast %cst_140 : f32 to vector<16x1xf32>
    %304 = arith.divf %302, %303 : vector<16x1xf32>
    %305 = vector.broadcast %304 : vector<16x1xf32> to vector<16x32xf32>
    %306 = arith.subf %296, %305 : vector<16x32xf32>
    %307 = arith.mulf %306, %306 : vector<16x32xf32>
    %cst_141 = arith.constant dense<0.000000e+00> : vector<16xf32>
    %308 = vector.multi_reduction <add>, %307, %cst_141 [1] : vector<16x32xf32> to vector<16xf32>
    %309 = vector.shape_cast %308 : vector<16xf32> to vector<16x1xf32>
    %cst_142 = arith.constant 3.200000e+01 : f32
    %310 = vector.broadcast %cst_142 : f32 to vector<16x1xf32>
    %311 = arith.divf %309, %310 : vector<16x1xf32>
    %cst_143 = arith.constant 9.99999996E-13 : f32
    %312 = vector.broadcast %cst_143 : f32 to vector<16x1xf32>
    %313 = arith.addf %311, %312 : vector<16x1xf32>
    %314 = math.rsqrt %313 : vector<16x1xf32>
    %315 = vector.broadcast %314 : vector<16x1xf32> to vector<16x32xf32>
    %316 = arith.mulf %306, %315 : vector<16x32xf32>
    %317 = vector.broadcast %298 : vector<1x32xf32> to vector<16x32xf32>
    %318 = arith.mulf %316, %317 : vector<16x32xf32>
    %319 = vector.broadcast %300 : vector<1x32xf32> to vector<16x32xf32>
    %320 = arith.addf %318, %319 : vector<16x32xf32>
    %321 = vector.extract_strided_slice %320 {offsets = [0, 0], sizes = [1, 32], strides = [1, 1]} : vector<16x32xf32> to vector<1x32xf32>
    %322 = vector.extract_strided_slice %320 {offsets = [8, 0], sizes = [1, 32], strides = [1, 1]} : vector<16x32xf32> to vector<1x32xf32>
    %323 = tpu.concatenate %321, %322 in 0 : vector<1x32xf32>, vector<1x32xf32> -> vector<2x32xf32>
    %324 = vector.extract_strided_slice %24 {offsets = [64, 0], sizes = [32, 2], strides = [1, 1]} : vector<128x2xbf16> to vector<32x2xbf16>
    %325 = arith.truncf %323 : vector<2x32xf32> to vector<2x32xbf16>
    %cst_144 = arith.constant dense<0.000000e+00> : vector<2x2xf32>
    %326 = tpu.matmul %325, %324, %cst_144 {dimension_numbers = #tpu.dot_dimension_numbers<[1], [0], [0], [1], [0, 0, 1, 1], [], []>} : vector<2x32xbf16>, vector<32x2xbf16>, vector<2x2xf32> -> vector<2x2xf32>
    %327 = arith.addf %176, %326 : vector<2x2xf32>
    %328 = arith.truncf %320 : vector<16x32xf32> to vector<16x32xbf16>
    %c2 = arith.constant 2 : index
    %c0_145 = arith.constant 0 : index
    %c0_146 = arith.constant 0 : index
    %329 = vector.load %arg4[%c2, %c0_145, %c0_146] : memref<4x32x96xbf16, #tpu.memory_space<vmem>>, vector<1x32x96xbf16>
    %330 = vector.shape_cast %329 : vector<1x32x96xbf16> to vector<32x96xbf16>
    %cst_147 = arith.constant dense<0.000000e+00> : vector<16x96xf32>
    %331 = tpu.matmul %328, %330, %cst_147 {dimension_numbers = #tpu.dot_dimension_numbers<[1], [0], [0], [1], [0, 0, 1, 1], [], []>} : vector<16x32xbf16>, vector<32x96xbf16>, vector<16x96xf32> -> vector<16x96xf32>
    %c2_148 = arith.constant 2 : index
    %c0_149 = arith.constant 0 : index
    %c0_150 = arith.constant 0 : index
    %332 = vector.load %arg5[%c2_148, %c0_149, %c0_150] : memref<4x1x96xf32, #tpu.memory_space<vmem>>, vector<1x1x96xf32>
    %333 = vector.shape_cast %332 : vector<1x1x96xf32> to vector<1x96xf32>
    %334 = vector.broadcast %333 : vector<1x96xf32> to vector<16x96xf32>
    %335 = arith.addf %331, %334 : vector<16x96xf32>
    %c2_151 = arith.constant 2 : index
    %c0_152 = arith.constant 0 : index
    %c0_153 = arith.constant 0 : index
    %336 = vector.load %arg6[%c2_151, %c0_152, %c0_153] : memref<4x32x32xbf16, #tpu.memory_space<vmem>>, vector<1x32x32xbf16>
    %337 = vector.shape_cast %336 : vector<1x32x32xbf16> to vector<32x32xbf16>
    %c2_154 = arith.constant 2 : index
    %c0_155 = arith.constant 0 : index
    %c0_156 = arith.constant 0 : index
    %338 = vector.load %arg7[%c2_154, %c0_155, %c0_156] : memref<4x1x32xf32, #tpu.memory_space<vmem>>, vector<1x1x32xf32>
    %339 = vector.shape_cast %338 : vector<1x1x32xf32> to vector<1x32xf32>
    %340 = vector.extract_strided_slice %335 {offsets = [0, 0], sizes = [16, 16], strides = [1, 1]} : vector<16x96xf32> to vector<16x16xf32>
    %341 = arith.truncf %340 : vector<16x16xf32> to vector<16x16xbf16>
    %342 = vector.extract_strided_slice %335 {offsets = [0, 32], sizes = [16, 16], strides = [1, 1]} : vector<16x96xf32> to vector<16x16xf32>
    %343 = arith.truncf %342 : vector<16x16xf32> to vector<16x16xbf16>
    %344 = vector.extract_strided_slice %335 {offsets = [0, 64], sizes = [16, 16], strides = [1, 1]} : vector<16x96xf32> to vector<16x16xf32>
    %345 = arith.truncf %344 : vector<16x16xf32> to vector<16x16xbf16>
    %cst_157 = arith.constant dense<0.000000e+00> : vector<16x16xf32>
    %346 = tpu.matmul %341, %343, %cst_157 {dimension_numbers = #tpu.dot_dimension_numbers<[1], [1], [0], [0], [0, 0, 1, 0], [], []>} : vector<16x16xbf16>, vector<16x16xbf16>, vector<16x16xf32> -> vector<16x16xf32>
    %cst_158 = arith.constant 2.500000e-01 : f32
    %347 = vector.broadcast %cst_158 : f32 to vector<16x16xf32>
    %348 = arith.mulf %346, %347 : vector<16x16xf32>
    %349 = arith.addf %348, %23 : vector<16x16xf32>
    %cst_159 = arith.constant dense<0xFF800000> : vector<16xf32>
    %350 = vector.multi_reduction <maximumf>, %349, %cst_159 [1] : vector<16x16xf32> to vector<16xf32>
    %351 = vector.shape_cast %350 : vector<16xf32> to vector<16x1xf32>
    %352 = vector.broadcast %351 : vector<16x1xf32> to vector<16x16xf32>
    %353 = arith.subf %349, %352 : vector<16x16xf32>
    %354 = math.exp %353 : vector<16x16xf32>
    %cst_160 = arith.constant dense<0.000000e+00> : vector<16xf32>
    %355 = vector.multi_reduction <add>, %354, %cst_160 [1] : vector<16x16xf32> to vector<16xf32>
    %356 = vector.shape_cast %355 : vector<16xf32> to vector<16x1xf32>
    %357 = tpu.reciprocal %356 {approx = true} : vector<16x1xf32> -> vector<16x1xf32>
    %358 = vector.broadcast %357 : vector<16x1xf32> to vector<16x16xf32>
    %359 = arith.mulf %354, %358 : vector<16x16xf32>
    %360 = arith.truncf %359 : vector<16x16xf32> to vector<16x16xbf16>
    %cst_161 = arith.constant dense<0.000000e+00> : vector<16x16xf32>
    %361 = tpu.matmul %360, %345, %cst_161 {dimension_numbers = #tpu.dot_dimension_numbers<[1], [0], [0], [1], [0, 0, 1, 1], [], []>} : vector<16x16xbf16>, vector<16x16xbf16>, vector<16x16xf32> -> vector<16x16xf32>
    %362 = arith.truncf %361 : vector<16x16xf32> to vector<16x16xbf16>
    %363 = vector.extract_strided_slice %337 {offsets = [0, 0], sizes = [16, 32], strides = [1, 1]} : vector<32x32xbf16> to vector<16x32xbf16>
    %cst_162 = arith.constant dense<0.000000e+00> : vector<16x32xf32>
    %364 = tpu.matmul %362, %363, %cst_162 {dimension_numbers = #tpu.dot_dimension_numbers<[1], [0], [0], [1], [0, 0, 1, 1], [], []>} : vector<16x16xbf16>, vector<16x32xbf16>, vector<16x32xf32> -> vector<16x32xf32>
    %365 = vector.broadcast %339 : vector<1x32xf32> to vector<16x32xf32>
    %366 = arith.addf %365, %364 : vector<16x32xf32>
    %367 = vector.extract_strided_slice %335 {offsets = [0, 16], sizes = [16, 16], strides = [1, 1]} : vector<16x96xf32> to vector<16x16xf32>
    %368 = arith.truncf %367 : vector<16x16xf32> to vector<16x16xbf16>
    %369 = vector.extract_strided_slice %335 {offsets = [0, 48], sizes = [16, 16], strides = [1, 1]} : vector<16x96xf32> to vector<16x16xf32>
    %370 = arith.truncf %369 : vector<16x16xf32> to vector<16x16xbf16>
    %371 = vector.extract_strided_slice %335 {offsets = [0, 80], sizes = [16, 16], strides = [1, 1]} : vector<16x96xf32> to vector<16x16xf32>
    %372 = arith.truncf %371 : vector<16x16xf32> to vector<16x16xbf16>
    %cst_163 = arith.constant dense<0.000000e+00> : vector<16x16xf32>
    %373 = tpu.matmul %368, %370, %cst_163 {dimension_numbers = #tpu.dot_dimension_numbers<[1], [1], [0], [0], [0, 0, 1, 0], [], []>} : vector<16x16xbf16>, vector<16x16xbf16>, vector<16x16xf32> -> vector<16x16xf32>
    %cst_164 = arith.constant 2.500000e-01 : f32
    %374 = vector.broadcast %cst_164 : f32 to vector<16x16xf32>
    %375 = arith.mulf %373, %374 : vector<16x16xf32>
    %376 = arith.addf %375, %23 : vector<16x16xf32>
    %cst_165 = arith.constant dense<0xFF800000> : vector<16xf32>
    %377 = vector.multi_reduction <maximumf>, %376, %cst_165 [1] : vector<16x16xf32> to vector<16xf32>
    %378 = vector.shape_cast %377 : vector<16xf32> to vector<16x1xf32>
    %379 = vector.broadcast %378 : vector<16x1xf32> to vector<16x16xf32>
    %380 = arith.subf %376, %379 : vector<16x16xf32>
    %381 = math.exp %380 : vector<16x16xf32>
    %cst_166 = arith.constant dense<0.000000e+00> : vector<16xf32>
    %382 = vector.multi_reduction <add>, %381, %cst_166 [1] : vector<16x16xf32> to vector<16xf32>
    %383 = vector.shape_cast %382 : vector<16xf32> to vector<16x1xf32>
    %384 = tpu.reciprocal %383 {approx = true} : vector<16x1xf32> -> vector<16x1xf32>
    %385 = vector.broadcast %384 : vector<16x1xf32> to vector<16x16xf32>
    %386 = arith.mulf %381, %385 : vector<16x16xf32>
    %387 = arith.truncf %386 : vector<16x16xf32> to vector<16x16xbf16>
    %cst_167 = arith.constant dense<0.000000e+00> : vector<16x16xf32>
    %388 = tpu.matmul %387, %372, %cst_167 {dimension_numbers = #tpu.dot_dimension_numbers<[1], [0], [0], [1], [0, 0, 1, 1], [], []>} : vector<16x16xbf16>, vector<16x16xbf16>, vector<16x16xf32> -> vector<16x16xf32>
    %389 = arith.truncf %388 : vector<16x16xf32> to vector<16x16xbf16>
    %390 = vector.extract_strided_slice %337 {offsets = [16, 0], sizes = [16, 32], strides = [1, 1]} : vector<32x32xbf16> to vector<16x32xbf16>
    %cst_168 = arith.constant dense<0.000000e+00> : vector<16x32xf32>
    %391 = tpu.matmul %389, %390, %cst_168 {dimension_numbers = #tpu.dot_dimension_numbers<[1], [0], [0], [1], [0, 0, 1, 1], [], []>} : vector<16x16xbf16>, vector<16x32xbf16>, vector<16x32xf32> -> vector<16x32xf32>
    %392 = arith.addf %366, %391 : vector<16x32xf32>
    %393 = arith.addf %392, %320 : vector<16x32xf32>
    %c2_169 = arith.constant 2 : index
    %c0_170 = arith.constant 0 : index
    %c0_171 = arith.constant 0 : index
    %394 = vector.load %arg8[%c2_169, %c0_170, %c0_171] : memref<4x1x32xf32, #tpu.memory_space<vmem>>, vector<1x1x32xf32>
    %395 = vector.shape_cast %394 : vector<1x1x32xf32> to vector<1x32xf32>
    %c2_172 = arith.constant 2 : index
    %c0_173 = arith.constant 0 : index
    %c0_174 = arith.constant 0 : index
    %396 = vector.load %arg9[%c2_172, %c0_173, %c0_174] : memref<4x1x32xf32, #tpu.memory_space<vmem>>, vector<1x1x32xf32>
    %397 = vector.shape_cast %396 : vector<1x1x32xf32> to vector<1x32xf32>
    %cst_175 = arith.constant dense<0.000000e+00> : vector<16xf32>
    %398 = vector.multi_reduction <add>, %393, %cst_175 [1] : vector<16x32xf32> to vector<16xf32>
    %399 = vector.shape_cast %398 : vector<16xf32> to vector<16x1xf32>
    %cst_176 = arith.constant 3.200000e+01 : f32
    %400 = vector.broadcast %cst_176 : f32 to vector<16x1xf32>
    %401 = arith.divf %399, %400 : vector<16x1xf32>
    %402 = vector.broadcast %401 : vector<16x1xf32> to vector<16x32xf32>
    %403 = arith.subf %393, %402 : vector<16x32xf32>
    %404 = arith.mulf %403, %403 : vector<16x32xf32>
    %cst_177 = arith.constant dense<0.000000e+00> : vector<16xf32>
    %405 = vector.multi_reduction <add>, %404, %cst_177 [1] : vector<16x32xf32> to vector<16xf32>
    %406 = vector.shape_cast %405 : vector<16xf32> to vector<16x1xf32>
    %cst_178 = arith.constant 3.200000e+01 : f32
    %407 = vector.broadcast %cst_178 : f32 to vector<16x1xf32>
    %408 = arith.divf %406, %407 : vector<16x1xf32>
    %cst_179 = arith.constant 9.99999996E-13 : f32
    %409 = vector.broadcast %cst_179 : f32 to vector<16x1xf32>
    %410 = arith.addf %408, %409 : vector<16x1xf32>
    %411 = math.rsqrt %410 : vector<16x1xf32>
    %412 = vector.broadcast %411 : vector<16x1xf32> to vector<16x32xf32>
    %413 = arith.mulf %403, %412 : vector<16x32xf32>
    %414 = vector.broadcast %395 : vector<1x32xf32> to vector<16x32xf32>
    %415 = arith.mulf %413, %414 : vector<16x32xf32>
    %416 = vector.broadcast %397 : vector<1x32xf32> to vector<16x32xf32>
    %417 = arith.addf %415, %416 : vector<16x32xf32>
    %418 = arith.truncf %417 : vector<16x32xf32> to vector<16x32xbf16>
    %c2_180 = arith.constant 2 : index
    %c0_181 = arith.constant 0 : index
    %c0_182 = arith.constant 0 : index
    %419 = vector.load %arg10[%c2_180, %c0_181, %c0_182] : memref<4x32x64xbf16, #tpu.memory_space<vmem>>, vector<1x32x64xbf16>
    %420 = vector.shape_cast %419 : vector<1x32x64xbf16> to vector<32x64xbf16>
    %cst_183 = arith.constant dense<0.000000e+00> : vector<16x64xf32>
    %421 = tpu.matmul %418, %420, %cst_183 {dimension_numbers = #tpu.dot_dimension_numbers<[1], [0], [0], [1], [0, 0, 1, 1], [], []>} : vector<16x32xbf16>, vector<32x64xbf16>, vector<16x64xf32> -> vector<16x64xf32>
    %c2_184 = arith.constant 2 : index
    %c0_185 = arith.constant 0 : index
    %c0_186 = arith.constant 0 : index
    %422 = vector.load %arg11[%c2_184, %c0_185, %c0_186] : memref<4x1x64xf32, #tpu.memory_space<vmem>>, vector<1x1x64xf32>
    %423 = vector.shape_cast %422 : vector<1x1x64xf32> to vector<1x64xf32>
    %424 = vector.broadcast %423 : vector<1x64xf32> to vector<16x64xf32>
    %425 = arith.addf %421, %424 : vector<16x64xf32>
    %cst_187 = arith.constant 5.000000e-01 : f32
    %426 = vector.broadcast %cst_187 : f32 to vector<16x64xf32>
    %427 = arith.mulf %426, %425 : vector<16x64xf32>
    %cst_188 = arith.constant 4.471500e-02 : f32
    %428 = vector.broadcast %cst_188 : f32 to vector<16x64xf32>
    %429 = arith.mulf %428, %425 : vector<16x64xf32>
    %430 = arith.mulf %429, %425 : vector<16x64xf32>
    %431 = arith.mulf %430, %425 : vector<16x64xf32>
    %432 = arith.addf %425, %431 : vector<16x64xf32>
    %cst_189 = arith.constant 0.797884583 : f32
    %433 = vector.broadcast %cst_189 : f32 to vector<16x64xf32>
    %434 = arith.mulf %433, %432 : vector<16x64xf32>
    %435 = math.tanh %434 : vector<16x64xf32>
    %cst_190 = arith.constant 1.000000e+00 : f32
    %436 = vector.broadcast %cst_190 : f32 to vector<16x64xf32>
    %437 = arith.addf %436, %435 : vector<16x64xf32>
    %438 = arith.mulf %427, %437 : vector<16x64xf32>
    %439 = arith.truncf %438 : vector<16x64xf32> to vector<16x64xbf16>
    %c2_191 = arith.constant 2 : index
    %c0_192 = arith.constant 0 : index
    %c0_193 = arith.constant 0 : index
    %440 = vector.load %arg12[%c2_191, %c0_192, %c0_193] : memref<4x64x32xbf16, #tpu.memory_space<vmem>>, vector<1x64x32xbf16>
    %441 = vector.shape_cast %440 : vector<1x64x32xbf16> to vector<64x32xbf16>
    %cst_194 = arith.constant dense<0.000000e+00> : vector<16x32xf32>
    %442 = tpu.matmul %439, %441, %cst_194 {dimension_numbers = #tpu.dot_dimension_numbers<[1], [0], [0], [1], [0, 0, 1, 1], [], []>} : vector<16x64xbf16>, vector<64x32xbf16>, vector<16x32xf32> -> vector<16x32xf32>
    %c2_195 = arith.constant 2 : index
    %c0_196 = arith.constant 0 : index
    %c0_197 = arith.constant 0 : index
    %443 = vector.load %arg13[%c2_195, %c0_196, %c0_197] : memref<4x1x32xf32, #tpu.memory_space<vmem>>, vector<1x1x32xf32>
    %444 = vector.shape_cast %443 : vector<1x1x32xf32> to vector<1x32xf32>
    %445 = vector.broadcast %444 : vector<1x32xf32> to vector<16x32xf32>
    %446 = arith.addf %442, %445 : vector<16x32xf32>
    %447 = arith.addf %446, %417 : vector<16x32xf32>
    %c2_198 = arith.constant 2 : index
    %c0_199 = arith.constant 0 : index
    %c0_200 = arith.constant 0 : index
    %448 = vector.load %arg14[%c2_198, %c0_199, %c0_200] : memref<4x1x32xf32, #tpu.memory_space<vmem>>, vector<1x1x32xf32>
    %449 = vector.shape_cast %448 : vector<1x1x32xf32> to vector<1x32xf32>
    %c2_201 = arith.constant 2 : index
    %c0_202 = arith.constant 0 : index
    %c0_203 = arith.constant 0 : index
    %450 = vector.load %arg15[%c2_201, %c0_202, %c0_203] : memref<4x1x32xf32, #tpu.memory_space<vmem>>, vector<1x1x32xf32>
    %451 = vector.shape_cast %450 : vector<1x1x32xf32> to vector<1x32xf32>
    %cst_204 = arith.constant dense<0.000000e+00> : vector<16xf32>
    %452 = vector.multi_reduction <add>, %447, %cst_204 [1] : vector<16x32xf32> to vector<16xf32>
    %453 = vector.shape_cast %452 : vector<16xf32> to vector<16x1xf32>
    %cst_205 = arith.constant 3.200000e+01 : f32
    %454 = vector.broadcast %cst_205 : f32 to vector<16x1xf32>
    %455 = arith.divf %453, %454 : vector<16x1xf32>
    %456 = vector.broadcast %455 : vector<16x1xf32> to vector<16x32xf32>
    %457 = arith.subf %447, %456 : vector<16x32xf32>
    %458 = arith.mulf %457, %457 : vector<16x32xf32>
    %cst_206 = arith.constant dense<0.000000e+00> : vector<16xf32>
    %459 = vector.multi_reduction <add>, %458, %cst_206 [1] : vector<16x32xf32> to vector<16xf32>
    %460 = vector.shape_cast %459 : vector<16xf32> to vector<16x1xf32>
    %cst_207 = arith.constant 3.200000e+01 : f32
    %461 = vector.broadcast %cst_207 : f32 to vector<16x1xf32>
    %462 = arith.divf %460, %461 : vector<16x1xf32>
    %cst_208 = arith.constant 9.99999996E-13 : f32
    %463 = vector.broadcast %cst_208 : f32 to vector<16x1xf32>
    %464 = arith.addf %462, %463 : vector<16x1xf32>
    %465 = math.rsqrt %464 : vector<16x1xf32>
    %466 = vector.broadcast %465 : vector<16x1xf32> to vector<16x32xf32>
    %467 = arith.mulf %457, %466 : vector<16x32xf32>
    %468 = vector.broadcast %449 : vector<1x32xf32> to vector<16x32xf32>
    %469 = arith.mulf %467, %468 : vector<16x32xf32>
    %470 = vector.broadcast %451 : vector<1x32xf32> to vector<16x32xf32>
    %471 = arith.addf %469, %470 : vector<16x32xf32>
    %472 = vector.extract_strided_slice %471 {offsets = [0, 0], sizes = [1, 32], strides = [1, 1]} : vector<16x32xf32> to vector<1x32xf32>
    %473 = vector.extract_strided_slice %471 {offsets = [8, 0], sizes = [1, 32], strides = [1, 1]} : vector<16x32xf32> to vector<1x32xf32>
    %474 = tpu.concatenate %472, %473 in 0 : vector<1x32xf32>, vector<1x32xf32> -> vector<2x32xf32>
    %475 = vector.extract_strided_slice %24 {offsets = [32, 0], sizes = [32, 2], strides = [1, 1]} : vector<128x2xbf16> to vector<32x2xbf16>
    %476 = arith.truncf %474 : vector<2x32xf32> to vector<2x32xbf16>
    %cst_209 = arith.constant dense<0.000000e+00> : vector<2x2xf32>
    %477 = tpu.matmul %476, %475, %cst_209 {dimension_numbers = #tpu.dot_dimension_numbers<[1], [0], [0], [1], [0, 0, 1, 1], [], []>} : vector<2x32xbf16>, vector<32x2xbf16>, vector<2x2xf32> -> vector<2x2xf32>
    %478 = arith.addf %327, %477 : vector<2x2xf32>
    %479 = arith.truncf %471 : vector<16x32xf32> to vector<16x32xbf16>
    %c3 = arith.constant 3 : index
    %c0_210 = arith.constant 0 : index
    %c0_211 = arith.constant 0 : index
    %480 = vector.load %arg4[%c3, %c0_210, %c0_211] : memref<4x32x96xbf16, #tpu.memory_space<vmem>>, vector<1x32x96xbf16>
    %481 = vector.shape_cast %480 : vector<1x32x96xbf16> to vector<32x96xbf16>
    %cst_212 = arith.constant dense<0.000000e+00> : vector<16x96xf32>
    %482 = tpu.matmul %479, %481, %cst_212 {dimension_numbers = #tpu.dot_dimension_numbers<[1], [0], [0], [1], [0, 0, 1, 1], [], []>} : vector<16x32xbf16>, vector<32x96xbf16>, vector<16x96xf32> -> vector<16x96xf32>
    %c3_213 = arith.constant 3 : index
    %c0_214 = arith.constant 0 : index
    %c0_215 = arith.constant 0 : index
    %483 = vector.load %arg5[%c3_213, %c0_214, %c0_215] : memref<4x1x96xf32, #tpu.memory_space<vmem>>, vector<1x1x96xf32>
    %484 = vector.shape_cast %483 : vector<1x1x96xf32> to vector<1x96xf32>
    %485 = vector.broadcast %484 : vector<1x96xf32> to vector<16x96xf32>
    %486 = arith.addf %482, %485 : vector<16x96xf32>
    %c3_216 = arith.constant 3 : index
    %c0_217 = arith.constant 0 : index
    %c0_218 = arith.constant 0 : index
    %487 = vector.load %arg6[%c3_216, %c0_217, %c0_218] : memref<4x32x32xbf16, #tpu.memory_space<vmem>>, vector<1x32x32xbf16>
    %488 = vector.shape_cast %487 : vector<1x32x32xbf16> to vector<32x32xbf16>
    %c3_219 = arith.constant 3 : index
    %c0_220 = arith.constant 0 : index
    %c0_221 = arith.constant 0 : index
    %489 = vector.load %arg7[%c3_219, %c0_220, %c0_221] : memref<4x1x32xf32, #tpu.memory_space<vmem>>, vector<1x1x32xf32>
    %490 = vector.shape_cast %489 : vector<1x1x32xf32> to vector<1x32xf32>
    %491 = vector.extract_strided_slice %486 {offsets = [0, 0], sizes = [16, 16], strides = [1, 1]} : vector<16x96xf32> to vector<16x16xf32>
    %492 = arith.truncf %491 : vector<16x16xf32> to vector<16x16xbf16>
    %493 = vector.extract_strided_slice %486 {offsets = [0, 32], sizes = [16, 16], strides = [1, 1]} : vector<16x96xf32> to vector<16x16xf32>
    %494 = arith.truncf %493 : vector<16x16xf32> to vector<16x16xbf16>
    %495 = vector.extract_strided_slice %486 {offsets = [0, 64], sizes = [16, 16], strides = [1, 1]} : vector<16x96xf32> to vector<16x16xf32>
    %496 = arith.truncf %495 : vector<16x16xf32> to vector<16x16xbf16>
    %cst_222 = arith.constant dense<0.000000e+00> : vector<16x16xf32>
    %497 = tpu.matmul %492, %494, %cst_222 {dimension_numbers = #tpu.dot_dimension_numbers<[1], [1], [0], [0], [0, 0, 1, 0], [], []>} : vector<16x16xbf16>, vector<16x16xbf16>, vector<16x16xf32> -> vector<16x16xf32>
    %cst_223 = arith.constant 2.500000e-01 : f32
    %498 = vector.broadcast %cst_223 : f32 to vector<16x16xf32>
    %499 = arith.mulf %497, %498 : vector<16x16xf32>
    %500 = arith.addf %499, %23 : vector<16x16xf32>
    %cst_224 = arith.constant dense<0xFF800000> : vector<16xf32>
    %501 = vector.multi_reduction <maximumf>, %500, %cst_224 [1] : vector<16x16xf32> to vector<16xf32>
    %502 = vector.shape_cast %501 : vector<16xf32> to vector<16x1xf32>
    %503 = vector.broadcast %502 : vector<16x1xf32> to vector<16x16xf32>
    %504 = arith.subf %500, %503 : vector<16x16xf32>
    %505 = math.exp %504 : vector<16x16xf32>
    %cst_225 = arith.constant dense<0.000000e+00> : vector<16xf32>
    %506 = vector.multi_reduction <add>, %505, %cst_225 [1] : vector<16x16xf32> to vector<16xf32>
    %507 = vector.shape_cast %506 : vector<16xf32> to vector<16x1xf32>
    %508 = tpu.reciprocal %507 {approx = true} : vector<16x1xf32> -> vector<16x1xf32>
    %509 = vector.broadcast %508 : vector<16x1xf32> to vector<16x16xf32>
    %510 = arith.mulf %505, %509 : vector<16x16xf32>
    %511 = arith.truncf %510 : vector<16x16xf32> to vector<16x16xbf16>
    %cst_226 = arith.constant dense<0.000000e+00> : vector<16x16xf32>
    %512 = tpu.matmul %511, %496, %cst_226 {dimension_numbers = #tpu.dot_dimension_numbers<[1], [0], [0], [1], [0, 0, 1, 1], [], []>} : vector<16x16xbf16>, vector<16x16xbf16>, vector<16x16xf32> -> vector<16x16xf32>
    %513 = arith.truncf %512 : vector<16x16xf32> to vector<16x16xbf16>
    %514 = vector.extract_strided_slice %488 {offsets = [0, 0], sizes = [16, 32], strides = [1, 1]} : vector<32x32xbf16> to vector<16x32xbf16>
    %cst_227 = arith.constant dense<0.000000e+00> : vector<16x32xf32>
    %515 = tpu.matmul %513, %514, %cst_227 {dimension_numbers = #tpu.dot_dimension_numbers<[1], [0], [0], [1], [0, 0, 1, 1], [], []>} : vector<16x16xbf16>, vector<16x32xbf16>, vector<16x32xf32> -> vector<16x32xf32>
    %516 = vector.broadcast %490 : vector<1x32xf32> to vector<16x32xf32>
    %517 = arith.addf %516, %515 : vector<16x32xf32>
    %518 = vector.extract_strided_slice %486 {offsets = [0, 16], sizes = [16, 16], strides = [1, 1]} : vector<16x96xf32> to vector<16x16xf32>
    %519 = arith.truncf %518 : vector<16x16xf32> to vector<16x16xbf16>
    %520 = vector.extract_strided_slice %486 {offsets = [0, 48], sizes = [16, 16], strides = [1, 1]} : vector<16x96xf32> to vector<16x16xf32>
    %521 = arith.truncf %520 : vector<16x16xf32> to vector<16x16xbf16>
    %522 = vector.extract_strided_slice %486 {offsets = [0, 80], sizes = [16, 16], strides = [1, 1]} : vector<16x96xf32> to vector<16x16xf32>
    %523 = arith.truncf %522 : vector<16x16xf32> to vector<16x16xbf16>
    %cst_228 = arith.constant dense<0.000000e+00> : vector<16x16xf32>
    %524 = tpu.matmul %519, %521, %cst_228 {dimension_numbers = #tpu.dot_dimension_numbers<[1], [1], [0], [0], [0, 0, 1, 0], [], []>} : vector<16x16xbf16>, vector<16x16xbf16>, vector<16x16xf32> -> vector<16x16xf32>
    %cst_229 = arith.constant 2.500000e-01 : f32
    %525 = vector.broadcast %cst_229 : f32 to vector<16x16xf32>
    %526 = arith.mulf %524, %525 : vector<16x16xf32>
    %527 = arith.addf %526, %23 : vector<16x16xf32>
    %cst_230 = arith.constant dense<0xFF800000> : vector<16xf32>
    %528 = vector.multi_reduction <maximumf>, %527, %cst_230 [1] : vector<16x16xf32> to vector<16xf32>
    %529 = vector.shape_cast %528 : vector<16xf32> to vector<16x1xf32>
    %530 = vector.broadcast %529 : vector<16x1xf32> to vector<16x16xf32>
    %531 = arith.subf %527, %530 : vector<16x16xf32>
    %532 = math.exp %531 : vector<16x16xf32>
    %cst_231 = arith.constant dense<0.000000e+00> : vector<16xf32>
    %533 = vector.multi_reduction <add>, %532, %cst_231 [1] : vector<16x16xf32> to vector<16xf32>
    %534 = vector.shape_cast %533 : vector<16xf32> to vector<16x1xf32>
    %535 = tpu.reciprocal %534 {approx = true} : vector<16x1xf32> -> vector<16x1xf32>
    %536 = vector.broadcast %535 : vector<16x1xf32> to vector<16x16xf32>
    %537 = arith.mulf %532, %536 : vector<16x16xf32>
    %538 = arith.truncf %537 : vector<16x16xf32> to vector<16x16xbf16>
    %cst_232 = arith.constant dense<0.000000e+00> : vector<16x16xf32>
    %539 = tpu.matmul %538, %523, %cst_232 {dimension_numbers = #tpu.dot_dimension_numbers<[1], [0], [0], [1], [0, 0, 1, 1], [], []>} : vector<16x16xbf16>, vector<16x16xbf16>, vector<16x16xf32> -> vector<16x16xf32>
    %540 = arith.truncf %539 : vector<16x16xf32> to vector<16x16xbf16>
    %541 = vector.extract_strided_slice %488 {offsets = [16, 0], sizes = [16, 32], strides = [1, 1]} : vector<32x32xbf16> to vector<16x32xbf16>
    %cst_233 = arith.constant dense<0.000000e+00> : vector<16x32xf32>
    %542 = tpu.matmul %540, %541, %cst_233 {dimension_numbers = #tpu.dot_dimension_numbers<[1], [0], [0], [1], [0, 0, 1, 1], [], []>} : vector<16x16xbf16>, vector<16x32xbf16>, vector<16x32xf32> -> vector<16x32xf32>
    %543 = arith.addf %517, %542 : vector<16x32xf32>
    %544 = arith.addf %543, %471 : vector<16x32xf32>
    %c3_234 = arith.constant 3 : index
    %c0_235 = arith.constant 0 : index
    %c0_236 = arith.constant 0 : index
    %545 = vector.load %arg8[%c3_234, %c0_235, %c0_236] : memref<4x1x32xf32, #tpu.memory_space<vmem>>, vector<1x1x32xf32>
    %546 = vector.shape_cast %545 : vector<1x1x32xf32> to vector<1x32xf32>
    %c3_237 = arith.constant 3 : index
    %c0_238 = arith.constant 0 : index
    %c0_239 = arith.constant 0 : index
    %547 = vector.load %arg9[%c3_237, %c0_238, %c0_239] : memref<4x1x32xf32, #tpu.memory_space<vmem>>, vector<1x1x32xf32>
    %548 = vector.shape_cast %547 : vector<1x1x32xf32> to vector<1x32xf32>
    %cst_240 = arith.constant dense<0.000000e+00> : vector<16xf32>
    %549 = vector.multi_reduction <add>, %544, %cst_240 [1] : vector<16x32xf32> to vector<16xf32>
    %550 = vector.shape_cast %549 : vector<16xf32> to vector<16x1xf32>
    %cst_241 = arith.constant 3.200000e+01 : f32
    %551 = vector.broadcast %cst_241 : f32 to vector<16x1xf32>
    %552 = arith.divf %550, %551 : vector<16x1xf32>
    %553 = vector.broadcast %552 : vector<16x1xf32> to vector<16x32xf32>
    %554 = arith.subf %544, %553 : vector<16x32xf32>
    %555 = arith.mulf %554, %554 : vector<16x32xf32>
    %cst_242 = arith.constant dense<0.000000e+00> : vector<16xf32>
    %556 = vector.multi_reduction <add>, %555, %cst_242 [1] : vector<16x32xf32> to vector<16xf32>
    %557 = vector.shape_cast %556 : vector<16xf32> to vector<16x1xf32>
    %cst_243 = arith.constant 3.200000e+01 : f32
    %558 = vector.broadcast %cst_243 : f32 to vector<16x1xf32>
    %559 = arith.divf %557, %558 : vector<16x1xf32>
    %cst_244 = arith.constant 9.99999996E-13 : f32
    %560 = vector.broadcast %cst_244 : f32 to vector<16x1xf32>
    %561 = arith.addf %559, %560 : vector<16x1xf32>
    %562 = math.rsqrt %561 : vector<16x1xf32>
    %563 = vector.broadcast %562 : vector<16x1xf32> to vector<16x32xf32>
    %564 = arith.mulf %554, %563 : vector<16x32xf32>
    %565 = vector.broadcast %546 : vector<1x32xf32> to vector<16x32xf32>
    %566 = arith.mulf %564, %565 : vector<16x32xf32>
    %567 = vector.broadcast %548 : vector<1x32xf32> to vector<16x32xf32>
    %568 = arith.addf %566, %567 : vector<16x32xf32>
    %569 = arith.truncf %568 : vector<16x32xf32> to vector<16x32xbf16>
    %c3_245 = arith.constant 3 : index
    %c0_246 = arith.constant 0 : index
    %c0_247 = arith.constant 0 : index
    %570 = vector.load %arg10[%c3_245, %c0_246, %c0_247] : memref<4x32x64xbf16, #tpu.memory_space<vmem>>, vector<1x32x64xbf16>
    %571 = vector.shape_cast %570 : vector<1x32x64xbf16> to vector<32x64xbf16>
    %cst_248 = arith.constant dense<0.000000e+00> : vector<16x64xf32>
    %572 = tpu.matmul %569, %571, %cst_248 {dimension_numbers = #tpu.dot_dimension_numbers<[1], [0], [0], [1], [0, 0, 1, 1], [], []>} : vector<16x32xbf16>, vector<32x64xbf16>, vector<16x64xf32> -> vector<16x64xf32>
    %c3_249 = arith.constant 3 : index
    %c0_250 = arith.constant 0 : index
    %c0_251 = arith.constant 0 : index
    %573 = vector.load %arg11[%c3_249, %c0_250, %c0_251] : memref<4x1x64xf32, #tpu.memory_space<vmem>>, vector<1x1x64xf32>
    %574 = vector.shape_cast %573 : vector<1x1x64xf32> to vector<1x64xf32>
    %575 = vector.broadcast %574 : vector<1x64xf32> to vector<16x64xf32>
    %576 = arith.addf %572, %575 : vector<16x64xf32>
    %cst_252 = arith.constant 5.000000e-01 : f32
    %577 = vector.broadcast %cst_252 : f32 to vector<16x64xf32>
    %578 = arith.mulf %577, %576 : vector<16x64xf32>
    %cst_253 = arith.constant 4.471500e-02 : f32
    %579 = vector.broadcast %cst_253 : f32 to vector<16x64xf32>
    %580 = arith.mulf %579, %576 : vector<16x64xf32>
    %581 = arith.mulf %580, %576 : vector<16x64xf32>
    %582 = arith.mulf %581, %576 : vector<16x64xf32>
    %583 = arith.addf %576, %582 : vector<16x64xf32>
    %cst_254 = arith.constant 0.797884583 : f32
    %584 = vector.broadcast %cst_254 : f32 to vector<16x64xf32>
    %585 = arith.mulf %584, %583 : vector<16x64xf32>
    %586 = math.tanh %585 : vector<16x64xf32>
    %cst_255 = arith.constant 1.000000e+00 : f32
    %587 = vector.broadcast %cst_255 : f32 to vector<16x64xf32>
    %588 = arith.addf %587, %586 : vector<16x64xf32>
    %589 = arith.mulf %578, %588 : vector<16x64xf32>
    %590 = arith.truncf %589 : vector<16x64xf32> to vector<16x64xbf16>
    %c3_256 = arith.constant 3 : index
    %c0_257 = arith.constant 0 : index
    %c0_258 = arith.constant 0 : index
    %591 = vector.load %arg12[%c3_256, %c0_257, %c0_258] : memref<4x64x32xbf16, #tpu.memory_space<vmem>>, vector<1x64x32xbf16>
    %592 = vector.shape_cast %591 : vector<1x64x32xbf16> to vector<64x32xbf16>
    %cst_259 = arith.constant dense<0.000000e+00> : vector<16x32xf32>
    %593 = tpu.matmul %590, %592, %cst_259 {dimension_numbers = #tpu.dot_dimension_numbers<[1], [0], [0], [1], [0, 0, 1, 1], [], []>} : vector<16x64xbf16>, vector<64x32xbf16>, vector<16x32xf32> -> vector<16x32xf32>
    %c3_260 = arith.constant 3 : index
    %c0_261 = arith.constant 0 : index
    %c0_262 = arith.constant 0 : index
    %594 = vector.load %arg13[%c3_260, %c0_261, %c0_262] : memref<4x1x32xf32, #tpu.memory_space<vmem>>, vector<1x1x32xf32>
    %595 = vector.shape_cast %594 : vector<1x1x32xf32> to vector<1x32xf32>
    %596 = vector.broadcast %595 : vector<1x32xf32> to vector<16x32xf32>
    %597 = arith.addf %593, %596 : vector<16x32xf32>
    %598 = arith.addf %597, %568 : vector<16x32xf32>
    %c3_263 = arith.constant 3 : index
    %c0_264 = arith.constant 0 : index
    %c0_265 = arith.constant 0 : index
    %599 = vector.load %arg14[%c3_263, %c0_264, %c0_265] : memref<4x1x32xf32, #tpu.memory_space<vmem>>, vector<1x1x32xf32>
    %600 = vector.shape_cast %599 : vector<1x1x32xf32> to vector<1x32xf32>
    %c3_266 = arith.constant 3 : index
    %c0_267 = arith.constant 0 : index
    %c0_268 = arith.constant 0 : index
    %601 = vector.load %arg15[%c3_266, %c0_267, %c0_268] : memref<4x1x32xf32, #tpu.memory_space<vmem>>, vector<1x1x32xf32>
    %602 = vector.shape_cast %601 : vector<1x1x32xf32> to vector<1x32xf32>
    %cst_269 = arith.constant dense<0.000000e+00> : vector<16xf32>
    %603 = vector.multi_reduction <add>, %598, %cst_269 [1] : vector<16x32xf32> to vector<16xf32>
    %604 = vector.shape_cast %603 : vector<16xf32> to vector<16x1xf32>
    %cst_270 = arith.constant 3.200000e+01 : f32
    %605 = vector.broadcast %cst_270 : f32 to vector<16x1xf32>
    %606 = arith.divf %604, %605 : vector<16x1xf32>
    %607 = vector.broadcast %606 : vector<16x1xf32> to vector<16x32xf32>
    %608 = arith.subf %598, %607 : vector<16x32xf32>
    %609 = arith.mulf %608, %608 : vector<16x32xf32>
    %cst_271 = arith.constant dense<0.000000e+00> : vector<16xf32>
    %610 = vector.multi_reduction <add>, %609, %cst_271 [1] : vector<16x32xf32> to vector<16xf32>
    %611 = vector.shape_cast %610 : vector<16xf32> to vector<16x1xf32>
    %cst_272 = arith.constant 3.200000e+01 : f32
    %612 = vector.broadcast %cst_272 : f32 to vector<16x1xf32>
    %613 = arith.divf %611, %612 : vector<16x1xf32>
    %cst_273 = arith.constant 9.99999996E-13 : f32
    %614 = vector.broadcast %cst_273 : f32 to vector<16x1xf32>
    %615 = arith.addf %613, %614 : vector<16x1xf32>
    %616 = math.rsqrt %615 : vector<16x1xf32>
    %617 = vector.broadcast %616 : vector<16x1xf32> to vector<16x32xf32>
    %618 = arith.mulf %608, %617 : vector<16x32xf32>
    %619 = vector.broadcast %600 : vector<1x32xf32> to vector<16x32xf32>
    %620 = arith.mulf %618, %619 : vector<16x32xf32>
    %621 = vector.broadcast %602 : vector<1x32xf32> to vector<16x32xf32>
    %622 = arith.addf %620, %621 : vector<16x32xf32>
    %623 = vector.extract_strided_slice %622 {offsets = [0, 0], sizes = [1, 32], strides = [1, 1]} : vector<16x32xf32> to vector<1x32xf32>
    %624 = vector.extract_strided_slice %622 {offsets = [8, 0], sizes = [1, 32], strides = [1, 1]} : vector<16x32xf32> to vector<1x32xf32>
    %625 = tpu.concatenate %623, %624 in 0 : vector<1x32xf32>, vector<1x32xf32> -> vector<2x32xf32>
    %626 = vector.extract_strided_slice %24 {offsets = [0, 0], sizes = [32, 2], strides = [1, 1]} : vector<128x2xbf16> to vector<32x2xbf16>
    %627 = arith.truncf %625 : vector<2x32xf32> to vector<2x32xbf16>
    %cst_274 = arith.constant dense<0.000000e+00> : vector<2x2xf32>
    %628 = tpu.matmul %627, %626, %cst_274 {dimension_numbers = #tpu.dot_dimension_numbers<[1], [0], [0], [1], [0, 0, 1, 1], [], []>} : vector<2x32xbf16>, vector<32x2xbf16>, vector<2x2xf32> -> vector<2x2xf32>
    %629 = arith.addf %478, %628 : vector<2x2xf32>
    %c0_275 = arith.constant 0 : index
    %c0_276 = arith.constant 0 : index
    %630 = vector.load %arg17[%c0_275, %c0_276] : memref<64x54xf32, #tpu.memory_space<vmem>>, vector<64x54xf32>
    %631 = arith.truncf %630 : vector<64x54xf32> to vector<64x54xbf16>
    %c0_277 = arith.constant 0 : index
    %c0_278 = arith.constant 0 : index
    %632 = vector.load %arg18[%c0_277, %c0_278] : memref<54x32xbf16, #tpu.memory_space<vmem>>, vector<54x32xbf16>
    %cst_279 = arith.constant dense<0.000000e+00> : vector<64x32xf32>
    %633 = tpu.matmul %631, %632, %cst_279 {dimension_numbers = #tpu.dot_dimension_numbers<[1], [0], [0], [1], [0, 0, 1, 1], [], []>} : vector<64x54xbf16>, vector<54x32xbf16>, vector<64x32xf32> -> vector<64x32xf32>
    %c0_280 = arith.constant 0 : index
    %c0_281 = arith.constant 0 : index
    %634 = vector.load %arg19[%c0_280, %c0_281] : memref<1x32xf32, #tpu.memory_space<vmem>>, vector<1x32xf32>
    %635 = vector.broadcast %634 : vector<1x32xf32> to vector<64x32xf32>
    %636 = arith.addf %633, %635 : vector<64x32xf32>
    %cst_282 = arith.constant 0.000000e+00 : f32
    %637 = vector.broadcast %cst_282 : f32 to vector<64x32xf32>
    %638 = arith.maximumf %636, %637 : vector<64x32xf32>
    %c0_283 = arith.constant 0 : index
    %c0_284 = arith.constant 0 : index
    %639 = vector.load %arg20[%c0_283, %c0_284] : memref<576x64xbf16, #tpu.memory_space<vmem>>, vector<576x64xbf16>
    %640 = arith.truncf %638 : vector<64x32xf32> to vector<64x32xbf16>
    %cst_285 = arith.constant dense<0.000000e+00> : vector<576x32xf32>
    %641 = tpu.matmul %639, %640, %cst_285 {dimension_numbers = #tpu.dot_dimension_numbers<[1], [0], [0], [1], [0, 0, 1, 1], [], []>} : vector<576x64xbf16>, vector<64x32xbf16>, vector<576x32xf32> -> vector<576x32xf32>
    %642 = vector.extract_strided_slice %641 {offsets = [0, 0], sizes = [64, 32], strides = [1, 1]} : vector<576x32xf32> to vector<64x32xf32>
    %643 = arith.truncf %642 : vector<64x32xf32> to vector<64x32xbf16>
    %c0_286 = arith.constant 0 : index
    %c0_287 = arith.constant 0 : index
    %c0_288 = arith.constant 0 : index
    %644 = vector.load %arg21[%c0_286, %c0_287, %c0_288] : memref<9x32x32xbf16, #tpu.memory_space<vmem>>, vector<1x32x32xbf16>
    %645 = vector.shape_cast %644 : vector<1x32x32xbf16> to vector<32x32xbf16>
    %cst_289 = arith.constant dense<0.000000e+00> : vector<64x32xf32>
    %646 = tpu.matmul %643, %645, %cst_289 {dimension_numbers = #tpu.dot_dimension_numbers<[1], [0], [0], [1], [0, 0, 1, 1], [], []>} : vector<64x32xbf16>, vector<32x32xbf16>, vector<64x32xf32> -> vector<64x32xf32>
    %647 = vector.extract_strided_slice %641 {offsets = [64, 0], sizes = [64, 32], strides = [1, 1]} : vector<576x32xf32> to vector<64x32xf32>
    %648 = arith.truncf %647 : vector<64x32xf32> to vector<64x32xbf16>
    %c1_290 = arith.constant 1 : index
    %c0_291 = arith.constant 0 : index
    %c0_292 = arith.constant 0 : index
    %649 = vector.load %arg21[%c1_290, %c0_291, %c0_292] : memref<9x32x32xbf16, #tpu.memory_space<vmem>>, vector<1x32x32xbf16>
    %650 = vector.shape_cast %649 : vector<1x32x32xbf16> to vector<32x32xbf16>
    %cst_293 = arith.constant dense<0.000000e+00> : vector<64x32xf32>
    %651 = tpu.matmul %648, %650, %cst_293 {dimension_numbers = #tpu.dot_dimension_numbers<[1], [0], [0], [1], [0, 0, 1, 1], [], []>} : vector<64x32xbf16>, vector<32x32xbf16>, vector<64x32xf32> -> vector<64x32xf32>
    %652 = arith.addf %646, %651 : vector<64x32xf32>
    %653 = vector.extract_strided_slice %641 {offsets = [128, 0], sizes = [64, 32], strides = [1, 1]} : vector<576x32xf32> to vector<64x32xf32>
    %654 = arith.truncf %653 : vector<64x32xf32> to vector<64x32xbf16>
    %c2_294 = arith.constant 2 : index
    %c0_295 = arith.constant 0 : index
    %c0_296 = arith.constant 0 : index
    %655 = vector.load %arg21[%c2_294, %c0_295, %c0_296] : memref<9x32x32xbf16, #tpu.memory_space<vmem>>, vector<1x32x32xbf16>
    %656 = vector.shape_cast %655 : vector<1x32x32xbf16> to vector<32x32xbf16>
    %cst_297 = arith.constant dense<0.000000e+00> : vector<64x32xf32>
    %657 = tpu.matmul %654, %656, %cst_297 {dimension_numbers = #tpu.dot_dimension_numbers<[1], [0], [0], [1], [0, 0, 1, 1], [], []>} : vector<64x32xbf16>, vector<32x32xbf16>, vector<64x32xf32> -> vector<64x32xf32>
    %658 = arith.addf %652, %657 : vector<64x32xf32>
    %659 = vector.extract_strided_slice %641 {offsets = [192, 0], sizes = [64, 32], strides = [1, 1]} : vector<576x32xf32> to vector<64x32xf32>
    %660 = arith.truncf %659 : vector<64x32xf32> to vector<64x32xbf16>
    %c3_298 = arith.constant 3 : index
    %c0_299 = arith.constant 0 : index
    %c0_300 = arith.constant 0 : index
    %661 = vector.load %arg21[%c3_298, %c0_299, %c0_300] : memref<9x32x32xbf16, #tpu.memory_space<vmem>>, vector<1x32x32xbf16>
    %662 = vector.shape_cast %661 : vector<1x32x32xbf16> to vector<32x32xbf16>
    %cst_301 = arith.constant dense<0.000000e+00> : vector<64x32xf32>
    %663 = tpu.matmul %660, %662, %cst_301 {dimension_numbers = #tpu.dot_dimension_numbers<[1], [0], [0], [1], [0, 0, 1, 1], [], []>} : vector<64x32xbf16>, vector<32x32xbf16>, vector<64x32xf32> -> vector<64x32xf32>
    %664 = arith.addf %658, %663 : vector<64x32xf32>
    %665 = vector.extract_strided_slice %641 {offsets = [256, 0], sizes = [64, 32], strides = [1, 1]} : vector<576x32xf32> to vector<64x32xf32>
    %666 = arith.truncf %665 : vector<64x32xf32> to vector<64x32xbf16>
    %c4 = arith.constant 4 : index
    %c0_302 = arith.constant 0 : index
    %c0_303 = arith.constant 0 : index
    %667 = vector.load %arg21[%c4, %c0_302, %c0_303] : memref<9x32x32xbf16, #tpu.memory_space<vmem>>, vector<1x32x32xbf16>
    %668 = vector.shape_cast %667 : vector<1x32x32xbf16> to vector<32x32xbf16>
    %cst_304 = arith.constant dense<0.000000e+00> : vector<64x32xf32>
    %669 = tpu.matmul %666, %668, %cst_304 {dimension_numbers = #tpu.dot_dimension_numbers<[1], [0], [0], [1], [0, 0, 1, 1], [], []>} : vector<64x32xbf16>, vector<32x32xbf16>, vector<64x32xf32> -> vector<64x32xf32>
    %670 = arith.addf %664, %669 : vector<64x32xf32>
    %671 = vector.extract_strided_slice %641 {offsets = [320, 0], sizes = [64, 32], strides = [1, 1]} : vector<576x32xf32> to vector<64x32xf32>
    %672 = arith.truncf %671 : vector<64x32xf32> to vector<64x32xbf16>
    %c5 = arith.constant 5 : index
    %c0_305 = arith.constant 0 : index
    %c0_306 = arith.constant 0 : index
    %673 = vector.load %arg21[%c5, %c0_305, %c0_306] : memref<9x32x32xbf16, #tpu.memory_space<vmem>>, vector<1x32x32xbf16>
    %674 = vector.shape_cast %673 : vector<1x32x32xbf16> to vector<32x32xbf16>
    %cst_307 = arith.constant dense<0.000000e+00> : vector<64x32xf32>
    %675 = tpu.matmul %672, %674, %cst_307 {dimension_numbers = #tpu.dot_dimension_numbers<[1], [0], [0], [1], [0, 0, 1, 1], [], []>} : vector<64x32xbf16>, vector<32x32xbf16>, vector<64x32xf32> -> vector<64x32xf32>
    %676 = arith.addf %670, %675 : vector<64x32xf32>
    %677 = vector.extract_strided_slice %641 {offsets = [384, 0], sizes = [64, 32], strides = [1, 1]} : vector<576x32xf32> to vector<64x32xf32>
    %678 = arith.truncf %677 : vector<64x32xf32> to vector<64x32xbf16>
    %c6 = arith.constant 6 : index
    %c0_308 = arith.constant 0 : index
    %c0_309 = arith.constant 0 : index
    %679 = vector.load %arg21[%c6, %c0_308, %c0_309] : memref<9x32x32xbf16, #tpu.memory_space<vmem>>, vector<1x32x32xbf16>
    %680 = vector.shape_cast %679 : vector<1x32x32xbf16> to vector<32x32xbf16>
    %cst_310 = arith.constant dense<0.000000e+00> : vector<64x32xf32>
    %681 = tpu.matmul %678, %680, %cst_310 {dimension_numbers = #tpu.dot_dimension_numbers<[1], [0], [0], [1], [0, 0, 1, 1], [], []>} : vector<64x32xbf16>, vector<32x32xbf16>, vector<64x32xf32> -> vector<64x32xf32>
    %682 = arith.addf %676, %681 : vector<64x32xf32>
    %683 = vector.extract_strided_slice %641 {offsets = [448, 0], sizes = [64, 32], strides = [1, 1]} : vector<576x32xf32> to vector<64x32xf32>
    %684 = arith.truncf %683 : vector<64x32xf32> to vector<64x32xbf16>
    %c7 = arith.constant 7 : index
    %c0_311 = arith.constant 0 : index
    %c0_312 = arith.constant 0 : index
    %685 = vector.load %arg21[%c7, %c0_311, %c0_312] : memref<9x32x32xbf16, #tpu.memory_space<vmem>>, vector<1x32x32xbf16>
    %686 = vector.shape_cast %685 : vector<1x32x32xbf16> to vector<32x32xbf16>
    %cst_313 = arith.constant dense<0.000000e+00> : vector<64x32xf32>
    %687 = tpu.matmul %684, %686, %cst_313 {dimension_numbers = #tpu.dot_dimension_numbers<[1], [0], [0], [1], [0, 0, 1, 1], [], []>} : vector<64x32xbf16>, vector<32x32xbf16>, vector<64x32xf32> -> vector<64x32xf32>
    %688 = arith.addf %682, %687 : vector<64x32xf32>
    %689 = vector.extract_strided_slice %641 {offsets = [512, 0], sizes = [64, 32], strides = [1, 1]} : vector<576x32xf32> to vector<64x32xf32>
    %690 = arith.truncf %689 : vector<64x32xf32> to vector<64x32xbf16>
    %c8 = arith.constant 8 : index
    %c0_314 = arith.constant 0 : index
    %c0_315 = arith.constant 0 : index
    %691 = vector.load %arg21[%c8, %c0_314, %c0_315] : memref<9x32x32xbf16, #tpu.memory_space<vmem>>, vector<1x32x32xbf16>
    %692 = vector.shape_cast %691 : vector<1x32x32xbf16> to vector<32x32xbf16>
    %cst_316 = arith.constant dense<0.000000e+00> : vector<64x32xf32>
    %693 = tpu.matmul %690, %692, %cst_316 {dimension_numbers = #tpu.dot_dimension_numbers<[1], [0], [0], [1], [0, 0, 1, 1], [], []>} : vector<64x32xbf16>, vector<32x32xbf16>, vector<64x32xf32> -> vector<64x32xf32>
    %694 = arith.addf %688, %693 : vector<64x32xf32>
    %c0_317 = arith.constant 0 : index
    %c0_318 = arith.constant 0 : index
    %695 = vector.load %arg22[%c0_317, %c0_318] : memref<1x32xf32, #tpu.memory_space<vmem>>, vector<1x32xf32>
    %696 = vector.broadcast %695 : vector<1x32xf32> to vector<64x32xf32>
    %697 = arith.addf %694, %696 : vector<64x32xf32>
    %cst_319 = arith.constant 0.000000e+00 : f32
    %698 = vector.broadcast %cst_319 : f32 to vector<64x32xf32>
    %699 = arith.maximumf %697, %698 : vector<64x32xf32>
    %c0_320 = arith.constant 0 : index
    %c0_321 = arith.constant 0 : index
    %700 = vector.load %arg20[%c0_320, %c0_321] : memref<576x64xbf16, #tpu.memory_space<vmem>>, vector<576x64xbf16>
    %701 = arith.truncf %699 : vector<64x32xf32> to vector<64x32xbf16>
    %cst_322 = arith.constant dense<0.000000e+00> : vector<576x32xf32>
    %702 = tpu.matmul %700, %701, %cst_322 {dimension_numbers = #tpu.dot_dimension_numbers<[1], [0], [0], [1], [0, 0, 1, 1], [], []>} : vector<576x64xbf16>, vector<64x32xbf16>, vector<576x32xf32> -> vector<576x32xf32>
    %703 = vector.extract_strided_slice %702 {offsets = [0, 0], sizes = [64, 32], strides = [1, 1]} : vector<576x32xf32> to vector<64x32xf32>
    %704 = arith.truncf %703 : vector<64x32xf32> to vector<64x32xbf16>
    %c0_323 = arith.constant 0 : index
    %c0_324 = arith.constant 0 : index
    %c0_325 = arith.constant 0 : index
    %705 = vector.load %arg23[%c0_323, %c0_324, %c0_325] : memref<9x32x32xbf16, #tpu.memory_space<vmem>>, vector<1x32x32xbf16>
    %706 = vector.shape_cast %705 : vector<1x32x32xbf16> to vector<32x32xbf16>
    %cst_326 = arith.constant dense<0.000000e+00> : vector<64x32xf32>
    %707 = tpu.matmul %704, %706, %cst_326 {dimension_numbers = #tpu.dot_dimension_numbers<[1], [0], [0], [1], [0, 0, 1, 1], [], []>} : vector<64x32xbf16>, vector<32x32xbf16>, vector<64x32xf32> -> vector<64x32xf32>
    %708 = vector.extract_strided_slice %702 {offsets = [64, 0], sizes = [64, 32], strides = [1, 1]} : vector<576x32xf32> to vector<64x32xf32>
    %709 = arith.truncf %708 : vector<64x32xf32> to vector<64x32xbf16>
    %c1_327 = arith.constant 1 : index
    %c0_328 = arith.constant 0 : index
    %c0_329 = arith.constant 0 : index
    %710 = vector.load %arg23[%c1_327, %c0_328, %c0_329] : memref<9x32x32xbf16, #tpu.memory_space<vmem>>, vector<1x32x32xbf16>
    %711 = vector.shape_cast %710 : vector<1x32x32xbf16> to vector<32x32xbf16>
    %cst_330 = arith.constant dense<0.000000e+00> : vector<64x32xf32>
    %712 = tpu.matmul %709, %711, %cst_330 {dimension_numbers = #tpu.dot_dimension_numbers<[1], [0], [0], [1], [0, 0, 1, 1], [], []>} : vector<64x32xbf16>, vector<32x32xbf16>, vector<64x32xf32> -> vector<64x32xf32>
    %713 = arith.addf %707, %712 : vector<64x32xf32>
    %714 = vector.extract_strided_slice %702 {offsets = [128, 0], sizes = [64, 32], strides = [1, 1]} : vector<576x32xf32> to vector<64x32xf32>
    %715 = arith.truncf %714 : vector<64x32xf32> to vector<64x32xbf16>
    %c2_331 = arith.constant 2 : index
    %c0_332 = arith.constant 0 : index
    %c0_333 = arith.constant 0 : index
    %716 = vector.load %arg23[%c2_331, %c0_332, %c0_333] : memref<9x32x32xbf16, #tpu.memory_space<vmem>>, vector<1x32x32xbf16>
    %717 = vector.shape_cast %716 : vector<1x32x32xbf16> to vector<32x32xbf16>
    %cst_334 = arith.constant dense<0.000000e+00> : vector<64x32xf32>
    %718 = tpu.matmul %715, %717, %cst_334 {dimension_numbers = #tpu.dot_dimension_numbers<[1], [0], [0], [1], [0, 0, 1, 1], [], []>} : vector<64x32xbf16>, vector<32x32xbf16>, vector<64x32xf32> -> vector<64x32xf32>
    %719 = arith.addf %713, %718 : vector<64x32xf32>
    %720 = vector.extract_strided_slice %702 {offsets = [192, 0], sizes = [64, 32], strides = [1, 1]} : vector<576x32xf32> to vector<64x32xf32>
    %721 = arith.truncf %720 : vector<64x32xf32> to vector<64x32xbf16>
    %c3_335 = arith.constant 3 : index
    %c0_336 = arith.constant 0 : index
    %c0_337 = arith.constant 0 : index
    %722 = vector.load %arg23[%c3_335, %c0_336, %c0_337] : memref<9x32x32xbf16, #tpu.memory_space<vmem>>, vector<1x32x32xbf16>
    %723 = vector.shape_cast %722 : vector<1x32x32xbf16> to vector<32x32xbf16>
    %cst_338 = arith.constant dense<0.000000e+00> : vector<64x32xf32>
    %724 = tpu.matmul %721, %723, %cst_338 {dimension_numbers = #tpu.dot_dimension_numbers<[1], [0], [0], [1], [0, 0, 1, 1], [], []>} : vector<64x32xbf16>, vector<32x32xbf16>, vector<64x32xf32> -> vector<64x32xf32>
    %725 = arith.addf %719, %724 : vector<64x32xf32>
    %726 = vector.extract_strided_slice %702 {offsets = [256, 0], sizes = [64, 32], strides = [1, 1]} : vector<576x32xf32> to vector<64x32xf32>
    %727 = arith.truncf %726 : vector<64x32xf32> to vector<64x32xbf16>
    %c4_339 = arith.constant 4 : index
    %c0_340 = arith.constant 0 : index
    %c0_341 = arith.constant 0 : index
    %728 = vector.load %arg23[%c4_339, %c0_340, %c0_341] : memref<9x32x32xbf16, #tpu.memory_space<vmem>>, vector<1x32x32xbf16>
    %729 = vector.shape_cast %728 : vector<1x32x32xbf16> to vector<32x32xbf16>
    %cst_342 = arith.constant dense<0.000000e+00> : vector<64x32xf32>
    %730 = tpu.matmul %727, %729, %cst_342 {dimension_numbers = #tpu.dot_dimension_numbers<[1], [0], [0], [1], [0, 0, 1, 1], [], []>} : vector<64x32xbf16>, vector<32x32xbf16>, vector<64x32xf32> -> vector<64x32xf32>
    %731 = arith.addf %725, %730 : vector<64x32xf32>
    %732 = vector.extract_strided_slice %702 {offsets = [320, 0], sizes = [64, 32], strides = [1, 1]} : vector<576x32xf32> to vector<64x32xf32>
    %733 = arith.truncf %732 : vector<64x32xf32> to vector<64x32xbf16>
    %c5_343 = arith.constant 5 : index
    %c0_344 = arith.constant 0 : index
    %c0_345 = arith.constant 0 : index
    %734 = vector.load %arg23[%c5_343, %c0_344, %c0_345] : memref<9x32x32xbf16, #tpu.memory_space<vmem>>, vector<1x32x32xbf16>
    %735 = vector.shape_cast %734 : vector<1x32x32xbf16> to vector<32x32xbf16>
    %cst_346 = arith.constant dense<0.000000e+00> : vector<64x32xf32>
    %736 = tpu.matmul %733, %735, %cst_346 {dimension_numbers = #tpu.dot_dimension_numbers<[1], [0], [0], [1], [0, 0, 1, 1], [], []>} : vector<64x32xbf16>, vector<32x32xbf16>, vector<64x32xf32> -> vector<64x32xf32>
    %737 = arith.addf %731, %736 : vector<64x32xf32>
    %738 = vector.extract_strided_slice %702 {offsets = [384, 0], sizes = [64, 32], strides = [1, 1]} : vector<576x32xf32> to vector<64x32xf32>
    %739 = arith.truncf %738 : vector<64x32xf32> to vector<64x32xbf16>
    %c6_347 = arith.constant 6 : index
    %c0_348 = arith.constant 0 : index
    %c0_349 = arith.constant 0 : index
    %740 = vector.load %arg23[%c6_347, %c0_348, %c0_349] : memref<9x32x32xbf16, #tpu.memory_space<vmem>>, vector<1x32x32xbf16>
    %741 = vector.shape_cast %740 : vector<1x32x32xbf16> to vector<32x32xbf16>
    %cst_350 = arith.constant dense<0.000000e+00> : vector<64x32xf32>
    %742 = tpu.matmul %739, %741, %cst_350 {dimension_numbers = #tpu.dot_dimension_numbers<[1], [0], [0], [1], [0, 0, 1, 1], [], []>} : vector<64x32xbf16>, vector<32x32xbf16>, vector<64x32xf32> -> vector<64x32xf32>
    %743 = arith.addf %737, %742 : vector<64x32xf32>
    %744 = vector.extract_strided_slice %702 {offsets = [448, 0], sizes = [64, 32], strides = [1, 1]} : vector<576x32xf32> to vector<64x32xf32>
    %745 = arith.truncf %744 : vector<64x32xf32> to vector<64x32xbf16>
    %c7_351 = arith.constant 7 : index
    %c0_352 = arith.constant 0 : index
    %c0_353 = arith.constant 0 : index
    %746 = vector.load %arg23[%c7_351, %c0_352, %c0_353] : memref<9x32x32xbf16, #tpu.memory_space<vmem>>, vector<1x32x32xbf16>
    %747 = vector.shape_cast %746 : vector<1x32x32xbf16> to vector<32x32xbf16>
    %cst_354 = arith.constant dense<0.000000e+00> : vector<64x32xf32>
    %748 = tpu.matmul %745, %747, %cst_354 {dimension_numbers = #tpu.dot_dimension_numbers<[1], [0], [0], [1], [0, 0, 1, 1], [], []>} : vector<64x32xbf16>, vector<32x32xbf16>, vector<64x32xf32> -> vector<64x32xf32>
    %749 = arith.addf %743, %748 : vector<64x32xf32>
    %750 = vector.extract_strided_slice %702 {offsets = [512, 0], sizes = [64, 32], strides = [1, 1]} : vector<576x32xf32> to vector<64x32xf32>
    %751 = arith.truncf %750 : vector<64x32xf32> to vector<64x32xbf16>
    %c8_355 = arith.constant 8 : index
    %c0_356 = arith.constant 0 : index
    %c0_357 = arith.constant 0 : index
    %752 = vector.load %arg23[%c8_355, %c0_356, %c0_357] : memref<9x32x32xbf16, #tpu.memory_space<vmem>>, vector<1x32x32xbf16>
    %753 = vector.shape_cast %752 : vector<1x32x32xbf16> to vector<32x32xbf16>
    %cst_358 = arith.constant dense<0.000000e+00> : vector<64x32xf32>
    %754 = tpu.matmul %751, %753, %cst_358 {dimension_numbers = #tpu.dot_dimension_numbers<[1], [0], [0], [1], [0, 0, 1, 1], [], []>} : vector<64x32xbf16>, vector<32x32xbf16>, vector<64x32xf32> -> vector<64x32xf32>
    %755 = arith.addf %749, %754 : vector<64x32xf32>
    %c0_359 = arith.constant 0 : index
    %c0_360 = arith.constant 0 : index
    %756 = vector.load %arg24[%c0_359, %c0_360] : memref<1x32xf32, #tpu.memory_space<vmem>>, vector<1x32xf32>
    %757 = vector.broadcast %756 : vector<1x32xf32> to vector<64x32xf32>
    %758 = arith.addf %755, %757 : vector<64x32xf32>
    %759 = arith.addf %638, %758 : vector<64x32xf32>
    %cst_361 = arith.constant 0.000000e+00 : f32
    %760 = vector.broadcast %cst_361 : f32 to vector<64x32xf32>
    %761 = arith.maximumf %759, %760 : vector<64x32xf32>
    %c0_362 = arith.constant 0 : index
    %c0_363 = arith.constant 0 : index
    %762 = vector.load %arg25[%c0_362, %c0_363] : memref<144x64xbf16, #tpu.memory_space<vmem>>, vector<144x64xbf16>
    %763 = arith.truncf %761 : vector<64x32xf32> to vector<64x32xbf16>
    %cst_364 = arith.constant dense<0.000000e+00> : vector<144x32xf32>
    %764 = tpu.matmul %762, %763, %cst_364 {dimension_numbers = #tpu.dot_dimension_numbers<[1], [0], [0], [1], [0, 0, 1, 1], [], []>} : vector<144x64xbf16>, vector<64x32xbf16>, vector<144x32xf32> -> vector<144x32xf32>
    %765 = vector.extract_strided_slice %764 {offsets = [0, 0], sizes = [16, 32], strides = [1, 1]} : vector<144x32xf32> to vector<16x32xf32>
    %766 = arith.truncf %765 : vector<16x32xf32> to vector<16x32xbf16>
    %c0_365 = arith.constant 0 : index
    %c0_366 = arith.constant 0 : index
    %c0_367 = arith.constant 0 : index
    %767 = vector.load %arg26[%c0_365, %c0_366, %c0_367] : memref<9x32x128xbf16, #tpu.memory_space<vmem>>, vector<1x32x128xbf16>
    %768 = vector.shape_cast %767 : vector<1x32x128xbf16> to vector<32x128xbf16>
    %cst_368 = arith.constant dense<0.000000e+00> : vector<16x128xf32>
    %769 = tpu.matmul %766, %768, %cst_368 {dimension_numbers = #tpu.dot_dimension_numbers<[1], [0], [0], [1], [0, 0, 1, 1], [], []>} : vector<16x32xbf16>, vector<32x128xbf16>, vector<16x128xf32> -> vector<16x128xf32>
    %770 = vector.extract_strided_slice %764 {offsets = [16, 0], sizes = [16, 32], strides = [1, 1]} : vector<144x32xf32> to vector<16x32xf32>
    %771 = arith.truncf %770 : vector<16x32xf32> to vector<16x32xbf16>
    %c1_369 = arith.constant 1 : index
    %c0_370 = arith.constant 0 : index
    %c0_371 = arith.constant 0 : index
    %772 = vector.load %arg26[%c1_369, %c0_370, %c0_371] : memref<9x32x128xbf16, #tpu.memory_space<vmem>>, vector<1x32x128xbf16>
    %773 = vector.shape_cast %772 : vector<1x32x128xbf16> to vector<32x128xbf16>
    %cst_372 = arith.constant dense<0.000000e+00> : vector<16x128xf32>
    %774 = tpu.matmul %771, %773, %cst_372 {dimension_numbers = #tpu.dot_dimension_numbers<[1], [0], [0], [1], [0, 0, 1, 1], [], []>} : vector<16x32xbf16>, vector<32x128xbf16>, vector<16x128xf32> -> vector<16x128xf32>
    %775 = arith.addf %769, %774 : vector<16x128xf32>
    %776 = vector.extract_strided_slice %764 {offsets = [32, 0], sizes = [16, 32], strides = [1, 1]} : vector<144x32xf32> to vector<16x32xf32>
    %777 = arith.truncf %776 : vector<16x32xf32> to vector<16x32xbf16>
    %c2_373 = arith.constant 2 : index
    %c0_374 = arith.constant 0 : index
    %c0_375 = arith.constant 0 : index
    %778 = vector.load %arg26[%c2_373, %c0_374, %c0_375] : memref<9x32x128xbf16, #tpu.memory_space<vmem>>, vector<1x32x128xbf16>
    %779 = vector.shape_cast %778 : vector<1x32x128xbf16> to vector<32x128xbf16>
    %cst_376 = arith.constant dense<0.000000e+00> : vector<16x128xf32>
    %780 = tpu.matmul %777, %779, %cst_376 {dimension_numbers = #tpu.dot_dimension_numbers<[1], [0], [0], [1], [0, 0, 1, 1], [], []>} : vector<16x32xbf16>, vector<32x128xbf16>, vector<16x128xf32> -> vector<16x128xf32>
    %781 = arith.addf %775, %780 : vector<16x128xf32>
    %782 = vector.extract_strided_slice %764 {offsets = [48, 0], sizes = [16, 32], strides = [1, 1]} : vector<144x32xf32> to vector<16x32xf32>
    %783 = arith.truncf %782 : vector<16x32xf32> to vector<16x32xbf16>
    %c3_377 = arith.constant 3 : index
    %c0_378 = arith.constant 0 : index
    %c0_379 = arith.constant 0 : index
    %784 = vector.load %arg26[%c3_377, %c0_378, %c0_379] : memref<9x32x128xbf16, #tpu.memory_space<vmem>>, vector<1x32x128xbf16>
    %785 = vector.shape_cast %784 : vector<1x32x128xbf16> to vector<32x128xbf16>
    %cst_380 = arith.constant dense<0.000000e+00> : vector<16x128xf32>
    %786 = tpu.matmul %783, %785, %cst_380 {dimension_numbers = #tpu.dot_dimension_numbers<[1], [0], [0], [1], [0, 0, 1, 1], [], []>} : vector<16x32xbf16>, vector<32x128xbf16>, vector<16x128xf32> -> vector<16x128xf32>
    %787 = arith.addf %781, %786 : vector<16x128xf32>
    %788 = vector.extract_strided_slice %764 {offsets = [64, 0], sizes = [16, 32], strides = [1, 1]} : vector<144x32xf32> to vector<16x32xf32>
    %789 = arith.truncf %788 : vector<16x32xf32> to vector<16x32xbf16>
    %c4_381 = arith.constant 4 : index
    %c0_382 = arith.constant 0 : index
    %c0_383 = arith.constant 0 : index
    %790 = vector.load %arg26[%c4_381, %c0_382, %c0_383] : memref<9x32x128xbf16, #tpu.memory_space<vmem>>, vector<1x32x128xbf16>
    %791 = vector.shape_cast %790 : vector<1x32x128xbf16> to vector<32x128xbf16>
    %cst_384 = arith.constant dense<0.000000e+00> : vector<16x128xf32>
    %792 = tpu.matmul %789, %791, %cst_384 {dimension_numbers = #tpu.dot_dimension_numbers<[1], [0], [0], [1], [0, 0, 1, 1], [], []>} : vector<16x32xbf16>, vector<32x128xbf16>, vector<16x128xf32> -> vector<16x128xf32>
    %793 = arith.addf %787, %792 : vector<16x128xf32>
    %794 = vector.extract_strided_slice %764 {offsets = [80, 0], sizes = [16, 32], strides = [1, 1]} : vector<144x32xf32> to vector<16x32xf32>
    %795 = arith.truncf %794 : vector<16x32xf32> to vector<16x32xbf16>
    %c5_385 = arith.constant 5 : index
    %c0_386 = arith.constant 0 : index
    %c0_387 = arith.constant 0 : index
    %796 = vector.load %arg26[%c5_385, %c0_386, %c0_387] : memref<9x32x128xbf16, #tpu.memory_space<vmem>>, vector<1x32x128xbf16>
    %797 = vector.shape_cast %796 : vector<1x32x128xbf16> to vector<32x128xbf16>
    %cst_388 = arith.constant dense<0.000000e+00> : vector<16x128xf32>
    %798 = tpu.matmul %795, %797, %cst_388 {dimension_numbers = #tpu.dot_dimension_numbers<[1], [0], [0], [1], [0, 0, 1, 1], [], []>} : vector<16x32xbf16>, vector<32x128xbf16>, vector<16x128xf32> -> vector<16x128xf32>
    %799 = arith.addf %793, %798 : vector<16x128xf32>
    %800 = vector.extract_strided_slice %764 {offsets = [96, 0], sizes = [16, 32], strides = [1, 1]} : vector<144x32xf32> to vector<16x32xf32>
    %801 = arith.truncf %800 : vector<16x32xf32> to vector<16x32xbf16>
    %c6_389 = arith.constant 6 : index
    %c0_390 = arith.constant 0 : index
    %c0_391 = arith.constant 0 : index
    %802 = vector.load %arg26[%c6_389, %c0_390, %c0_391] : memref<9x32x128xbf16, #tpu.memory_space<vmem>>, vector<1x32x128xbf16>
    %803 = vector.shape_cast %802 : vector<1x32x128xbf16> to vector<32x128xbf16>
    %cst_392 = arith.constant dense<0.000000e+00> : vector<16x128xf32>
    %804 = tpu.matmul %801, %803, %cst_392 {dimension_numbers = #tpu.dot_dimension_numbers<[1], [0], [0], [1], [0, 0, 1, 1], [], []>} : vector<16x32xbf16>, vector<32x128xbf16>, vector<16x128xf32> -> vector<16x128xf32>
    %805 = arith.addf %799, %804 : vector<16x128xf32>
    %806 = vector.extract_strided_slice %764 {offsets = [112, 0], sizes = [16, 32], strides = [1, 1]} : vector<144x32xf32> to vector<16x32xf32>
    %807 = arith.truncf %806 : vector<16x32xf32> to vector<16x32xbf16>
    %c7_393 = arith.constant 7 : index
    %c0_394 = arith.constant 0 : index
    %c0_395 = arith.constant 0 : index
    %808 = vector.load %arg26[%c7_393, %c0_394, %c0_395] : memref<9x32x128xbf16, #tpu.memory_space<vmem>>, vector<1x32x128xbf16>
    %809 = vector.shape_cast %808 : vector<1x32x128xbf16> to vector<32x128xbf16>
    %cst_396 = arith.constant dense<0.000000e+00> : vector<16x128xf32>
    %810 = tpu.matmul %807, %809, %cst_396 {dimension_numbers = #tpu.dot_dimension_numbers<[1], [0], [0], [1], [0, 0, 1, 1], [], []>} : vector<16x32xbf16>, vector<32x128xbf16>, vector<16x128xf32> -> vector<16x128xf32>
    %811 = arith.addf %805, %810 : vector<16x128xf32>
    %812 = vector.extract_strided_slice %764 {offsets = [128, 0], sizes = [16, 32], strides = [1, 1]} : vector<144x32xf32> to vector<16x32xf32>
    %813 = arith.truncf %812 : vector<16x32xf32> to vector<16x32xbf16>
    %c8_397 = arith.constant 8 : index
    %c0_398 = arith.constant 0 : index
    %c0_399 = arith.constant 0 : index
    %814 = vector.load %arg26[%c8_397, %c0_398, %c0_399] : memref<9x32x128xbf16, #tpu.memory_space<vmem>>, vector<1x32x128xbf16>
    %815 = vector.shape_cast %814 : vector<1x32x128xbf16> to vector<32x128xbf16>
    %cst_400 = arith.constant dense<0.000000e+00> : vector<16x128xf32>
    %816 = tpu.matmul %813, %815, %cst_400 {dimension_numbers = #tpu.dot_dimension_numbers<[1], [0], [0], [1], [0, 0, 1, 1], [], []>} : vector<16x32xbf16>, vector<32x128xbf16>, vector<16x128xf32> -> vector<16x128xf32>
    %817 = arith.addf %811, %816 : vector<16x128xf32>
    %c0_401 = arith.constant 0 : index
    %c0_402 = arith.constant 0 : index
    %818 = vector.load %arg27[%c0_401, %c0_402] : memref<1x128xf32, #tpu.memory_space<vmem>>, vector<1x128xf32>
    %819 = vector.broadcast %818 : vector<1x128xf32> to vector<16x128xf32>
    %820 = arith.addf %817, %819 : vector<16x128xf32>
    %cst_403 = arith.constant 0.000000e+00 : f32
    %821 = vector.broadcast %cst_403 : f32 to vector<16x128xf32>
    %822 = arith.maximumf %820, %821 : vector<16x128xf32>
    %cst_404 = arith.constant dense<0.000000e+00> : vector<128xf32>
    %823 = vector.multi_reduction <add>, %822, %cst_404 [0] : vector<16x128xf32> to vector<128xf32>
    %824 = vector.shape_cast %823 : vector<128xf32> to vector<1x128xf32>
    %cst_405 = arith.constant 1.600000e+01 : f32
    %825 = vector.broadcast %cst_405 : f32 to vector<1x128xf32>
    %826 = arith.divf %824, %825 : vector<1x128xf32>
    %827 = vector.extract_strided_slice %826 {offsets = [0, 0], sizes = [1, 64], strides = [1, 1]} : vector<1x128xf32> to vector<1x64xf32>
    %828 = vector.extract_strided_slice %826 {offsets = [0, 64], sizes = [1, 64], strides = [1, 1]} : vector<1x128xf32> to vector<1x64xf32>
    %829 = tpu.concatenate %827, %828 in 0 : vector<1x64xf32>, vector<1x64xf32> -> vector<2x64xf32>
    %830 = arith.truncf %829 : vector<2x64xf32> to vector<2x64xbf16>
    %c0_406 = arith.constant 0 : index
    %c0_407 = arith.constant 0 : index
    %831 = vector.load %arg28[%c0_406, %c0_407] : memref<64x2xbf16, #tpu.memory_space<vmem>>, vector<64x2xbf16>
    %cst_408 = arith.constant dense<0.000000e+00> : vector<2x2xf32>
    %832 = tpu.matmul %830, %831, %cst_408 {dimension_numbers = #tpu.dot_dimension_numbers<[1], [0], [0], [1], [0, 0, 1, 1], [], []>} : vector<2x64xbf16>, vector<64x2xbf16>, vector<2x2xf32> -> vector<2x2xf32>
    %833 = arith.addf %629, %832 : vector<2x2xf32>
    %c0_409 = arith.constant 0 : index
    %c0_410 = arith.constant 0 : index
    %834 = vector.load %arg29[%c0_409, %c0_410] : memref<1x2xf32, #tpu.memory_space<vmem>>, vector<1x2xf32>
    %835 = vector.broadcast %834 : vector<1x2xf32> to vector<2x2xf32>
    %836 = arith.addf %833, %835 : vector<2x2xf32>
    %c0_411 = arith.constant 0 : index
    %c0_412 = arith.constant 0 : index
    %837 = vector.load %arg30[%c0_411, %c0_412] : memref<2x2xf32, #tpu.memory_space<vmem>>, vector<2x2xf32>
    tpu.vector_store %arg30[%c0_411, %c0_412], %836 {strides = array<i32>} : memref<2x2xf32, #tpu.memory_space<vmem>>, vector<2x2xf32>,
    return
  }
}

</mosaic_0001>

<llo_original>
// kernel: model_forward.1
$region0: #{model_forward.1}
  #allocation0 [shape = 'u32[]', space=smem, size = 0x4, offset = 0x4, fixed_abs, tag = 'smem constant byte address 0x4 - core index']
  #allocation1 [shape = 'u32[72,128]{1,0:T(1,128)}', space=vmem, size = 0x9000, scoped, tag = 'internal scratch']
  %s0 = inlined_call_operand.smem [shape: u32[31], index: -1, kind: input, shape index: {}]
  %s1 = sld [smem:[%s0]]
  %s2 = scalar_lea.smem %s0, 1
  %s3 = sld [smem:[%s2]]
  %s4 = scalar_lea.smem %s0, 2
  %s5 = sld [smem:[%s4]]
  %s6 = scalar_lea.smem %s0, 3
  %s7 = sld [smem:[%s6]]
  %s8 = scalar_lea.smem %s0, 4
  %s9 = sld [smem:[%s8]]
  %s10 = scalar_lea.smem %s0, 5
  %s11 = sld [smem:[%s10]]
  %s12 = scalar_lea.smem %s0, 6
  %s13 = sld [smem:[%s12]]
  %s14 = scalar_lea.smem %s0, 7
  %s15 = sld [smem:[%s14]]
  %s16 = scalar_lea.smem %s0, 8
  %s17 = sld [smem:[%s16]]
  %s18 = scalar_lea.smem %s0, 9
  %s19 = sld [smem:[%s18]]
  %s20 = scalar_lea.smem %s0, 10
  %s21 = sld [smem:[%s20]]
  %s22 = scalar_lea.smem %s0, 11
  %s23 = sld [smem:[%s22]]
  %s24 = scalar_lea.smem %s0, 12
  %s25 = sld [smem:[%s24]]
  %s26 = scalar_lea.smem %s0, 13
  %s27 = sld [smem:[%s26]]
  %s28 = scalar_lea.smem %s0, 14
  %s29 = sld [smem:[%s28]]
  %s30 = scalar_lea.smem %s0, 15
  %s31 = sld [smem:[%s30]]
  %s32 = scalar_lea.smem %s0, 16
  %s33 = sld [smem:[%s32]]
  %s34 = scalar_lea.smem %s0, 17
  %s35 = sld [smem:[%s34]]
  %s36 = scalar_lea.smem %s0, 18
  %s37 = sld [smem:[%s36]]
  %s38 = scalar_lea.smem %s0, 19
  %s39 = sld [smem:[%s38]]
  %s40 = scalar_lea.smem %s0, 20
  %s41 = sld [smem:[%s40]]
  %s42 = scalar_lea.smem %s0, 21
  %s43 = sld [smem:[%s42]]
  %s44 = scalar_lea.smem %s0, 22
  %s45 = sld [smem:[%s44]]
  %s46 = scalar_lea.smem %s0, 23
  %s47 = sld [smem:[%s46]]
  %s48 = scalar_lea.smem %s0, 24
  %s49 = sld [smem:[%s48]]
  %s50 = scalar_lea.smem %s0, 25
  %s51 = sld [smem:[%s50]]
  %s52 = scalar_lea.smem %s0, 26
  %s53 = sld [smem:[%s52]]
  %s54 = scalar_lea.smem %s0, 27
  %s55 = sld [smem:[%s54]]
  %s56 = scalar_lea.smem %s0, 28
  %s57 = sld [smem:[%s56]]
  %s58 = scalar_lea.smem %s0, 29
  %s59 = sld [smem:[%s58]]
  %s60 = scalar_lea.smem %s0, 30
  %s61 = sld [smem:[%s60]]
  %s62 = sld [smem:[#allocation0]]
  $region130: #{model_forward.1} parent=0
    _
  %s64 = ssub.s32 1, %s62
  %s65 = scalar_select 0, %s64, %s62
  $region1: #{model_forward.1} parent=0
    #allocation2 [shape = 'u8[1024]{0}', space=vmem, size = 0x400, scoped, tag = 'output window, operand 0, single buffered']
    #allocation3 [shape = 's32[1]{0}', space=sflag, size = 0x4, scoped, tag = 'scoped memory for model_forward.1']
    %66 = vsyncpa [#allocation3], 0
    // Predicated region
    $region2: #{model_forward.1} parent=1 // pred_check
      _
    $region3: #{model_forward.1} parent=1 // pred_check_branch
      %68 = sbr.rel (0) target = $region5
    $region4: #{model_forward.1} parent=1 // pred_region
      _
    $region5: #{model_forward.1} parent=1 // pred_fallthru
      _
    // Predicated region
    $region6: #{model_forward.1} parent=1 // pred_check
      _
    $region7: #{model_forward.1} parent=1 // pred_check_branch
      %70 = sbr.rel (0) target = $region9
    $region8: #{model_forward.1} parent=1 // pred_region
      _
    $region9: #{model_forward.1} parent=1 // pred_fallthru
      _
    // Predicated region
    $region10: #{model_forward.1} parent=1 // pred_check
      _
    $region11: #{model_forward.1} parent=1 // pred_check_branch
      %72 = sbr.rel (0) target = $region13
    $region12: #{model_forward.1} parent=1 // pred_region
      _
    $region13: #{model_forward.1} parent=1 // pred_fallthru
      _
    // Predicated region
    $region14: #{model_forward.1} parent=1 // pred_check
      _
    $region15: #{model_forward.1} parent=1 // pred_check_branch
      %74 = sbr.rel (0) target = $region17
    $region16: #{model_forward.1} parent=1 // pred_region
      _
    $region17: #{model_forward.1} parent=1 // pred_fallthru
      _
    // Predicated region
    $region18: #{model_forward.1} parent=1 // pred_check
      _
    $region19: #{model_forward.1} parent=1 // pred_check_branch
      %76 = sbr.rel (0) target = $region21
    $region20: #{model_forward.1} parent=1 // pred_region
      _
    $region21: #{model_forward.1} parent=1 // pred_fallthru
      _
    // Predicated region
    $region22: #{model_forward.1} parent=1 // pred_check
      _
    $region23: #{model_forward.1} parent=1 // pred_check_branch
      %78 = sbr.rel (0) target = $region25
    $region24: #{model_forward.1} parent=1 // pred_region
      _
    $region25: #{model_forward.1} parent=1 // pred_fallthru
      _
    // Predicated region
    $region26: #{model_forward.1} parent=1 // pred_check
      _
    $region27: #{model_forward.1} parent=1 // pred_check_branch
      %80 = sbr.rel (0) target = $region29
    $region28: #{model_forward.1} parent=1 // pred_region
      _
    $region29: #{model_forward.1} parent=1 // pred_fallthru
      _
    // Predicated region
    $region30: #{model_forward.1} parent=1 // pred_check
      _
    $region31: #{model_forward.1} parent=1 // pred_check_branch
      %82 = sbr.rel (0) target = $region33
    $region32: #{model_forward.1} parent=1 // pred_region
      _
    $region33: #{model_forward.1} parent=1 // pred_fallthru
      _
    // Predicated region
    $region34: #{model_forward.1} parent=1 // pred_check
      _
    $region35: #{model_forward.1} parent=1 // pred_check_branch
      %84 = sbr.rel (0) target = $region37
    $region36: #{model_forward.1} parent=1 // pred_region
      _
    $region37: #{model_forward.1} parent=1 // pred_fallthru
      _
    // Predicated region
    $region38: #{model_forward.1} parent=1 // pred_check
      _
    $region39: #{model_forward.1} parent=1 // pred_check_branch
      %86 = sbr.rel (0) target = $region41
    $region40: #{model_forward.1} parent=1 // pred_region
      _
    $region41: #{model_forward.1} parent=1 // pred_fallthru
      _
    // Predicated region
    $region42: #{model_forward.1} parent=1 // pred_check
      _
    $region43: #{model_forward.1} parent=1 // pred_check_branch
      %88 = sbr.rel (0) target = $region45
    $region44: #{model_forward.1} parent=1 // pred_region
      _
    $region45: #{model_forward.1} parent=1 // pred_fallthru
      _
    // Predicated region
    $region46: #{model_forward.1} parent=1 // pred_check
      _
    $region47: #{model_forward.1} parent=1 // pred_check_branch
      %90 = sbr.rel (0) target = $region49
    $region48: #{model_forward.1} parent=1 // pred_region
      _
    $region49: #{model_forward.1} parent=1 // pred_fallthru
      _
    // Predicated region
    $region50: #{model_forward.1} parent=1 // pred_check
      _
    $region51: #{model_forward.1} parent=1 // pred_check_branch
      %92 = sbr.rel (0) target = $region53
    $region52: #{model_forward.1} parent=1 // pred_region
      _
    $region53: #{model_forward.1} parent=1 // pred_fallthru
      _
    // Predicated region
    $region54: #{model_forward.1} parent=1 // pred_check
      _
    $region55: #{model_forward.1} parent=1 // pred_check_branch
      %94 = sbr.rel (0) target = $region57
    $region56: #{model_forward.1} parent=1 // pred_region
      _
    $region57: #{model_forward.1} parent=1 // pred_fallthru
      _
    // Predicated region
    $region58: #{model_forward.1} parent=1 // pred_check
      _
    $region59: #{model_forward.1} parent=1 // pred_check_branch
      %96 = sbr.rel (0) target = $region61
    $region60: #{model_forward.1} parent=1 // pred_region
      _
    $region61: #{model_forward.1} parent=1 // pred_fallthru
      _
    // Predicated region
    $region62: #{model_forward.1} parent=1 // pred_check
      _
    $region63: #{model_forward.1} parent=1 // pred_check_branch
      %98 = sbr.rel (0) target = $region65
    $region64: #{model_forward.1} parent=1 // pred_region
      _
    $region65: #{model_forward.1} parent=1 // pred_fallthru
      _
    // Predicated region
    $region66: #{model_forward.1} parent=1 // pred_check
      _
    $region67: #{model_forward.1} parent=1 // pred_check_branch
      %100 = sbr.rel (0) target = $region69
    $region68: #{model_forward.1} parent=1 // pred_region
      _
    $region69: #{model_forward.1} parent=1 // pred_fallthru
      _
    // Predicated region
    $region70: #{model_forward.1} parent=1 // pred_check
      _
    $region71: #{model_forward.1} parent=1 // pred_check_branch
      %102 = sbr.rel (0) target = $region73
    $region72: #{model_forward.1} parent=1 // pred_region
      _
    $region73: #{model_forward.1} parent=1 // pred_fallthru
      _
    // Predicated region
    $region74: #{model_forward.1} parent=1 // pred_check
      _
    $region75: #{model_forward.1} parent=1 // pred_check_branch
      %104 = sbr.rel (0) target = $region77
    $region76: #{model_forward.1} parent=1 // pred_region
      _
    $region77: #{model_forward.1} parent=1 // pred_fallthru
      _
    // Predicated region
    $region78: #{model_forward.1} parent=1 // pred_check
      _
    $region79: #{model_forward.1} parent=1 // pred_check_branch
      %106 = sbr.rel (0) target = $region81
    $region80: #{model_forward.1} parent=1 // pred_region
      _
    $region81: #{model_forward.1} parent=1 // pred_fallthru
      _
    // Predicated region
    $region82: #{model_forward.1} parent=1 // pred_check
      _
    $region83: #{model_forward.1} parent=1 // pred_check_branch
      %108 = sbr.rel (0) target = $region85
    $region84: #{model_forward.1} parent=1 // pred_region
      _
    $region85: #{model_forward.1} parent=1 // pred_fallthru
      _
    // Predicated region
    $region86: #{model_forward.1} parent=1 // pred_check
      _
    $region87: #{model_forward.1} parent=1 // pred_check_branch
      %110 = sbr.rel (0) target = $region89
    $region88: #{model_forward.1} parent=1 // pred_region
      _
    $region89: #{model_forward.1} parent=1 // pred_fallthru
      _
    // Predicated region
    $region90: #{model_forward.1} parent=1 // pred_check
      _
    $region91: #{model_forward.1} parent=1 // pred_check_branch
      %112 = sbr.rel (0) target = $region93
    $region92: #{model_forward.1} parent=1 // pred_region
      _
    $region93: #{model_forward.1} parent=1 // pred_fallthru
      _
    // Predicated region
    $region94: #{model_forward.1} parent=1 // pred_check
      _
    $region95: #{model_forward.1} parent=1 // pred_check_branch
      %114 = sbr.rel (0) target = $region97
    $region96: #{model_forward.1} parent=1 // pred_region
      _
    $region97: #{model_forward.1} parent=1 // pred_fallthru
      _
    // Predicated region
    $region98: #{model_forward.1} parent=1 // pred_check
      _
    $region99: #{model_forward.1} parent=1 // pred_check_branch
      %116 = sbr.rel (0) target = $region101
    $region100: #{model_forward.1} parent=1 // pred_region
      _
    $region101: #{model_forward.1} parent=1 // pred_fallthru
      _
    // Predicated region
    $region102: #{model_forward.1} parent=1 // pred_check
      _
    $region103: #{model_forward.1} parent=1 // pred_check_branch
      %118 = sbr.rel (0) target = $region105
    $region104: #{model_forward.1} parent=1 // pred_region
      _
    $region105: #{model_forward.1} parent=1 // pred_fallthru
      _
    // Predicated region
    $region106: #{model_forward.1} parent=1 // pred_check
      _
    $region107: #{model_forward.1} parent=1 // pred_check_branch
      %120 = sbr.rel (0) target = $region109
    $region108: #{model_forward.1} parent=1 // pred_region
      _
    $region109: #{model_forward.1} parent=1 // pred_fallthru
      _
    // Predicated region
    $region110: #{model_forward.1} parent=1 // pred_check
      _
    $region111: #{model_forward.1} parent=1 // pred_check_branch
      %122 = sbr.rel (0) target = $region113
    $region112: #{model_forward.1} parent=1 // pred_region
      _
    $region113: #{model_forward.1} parent=1 // pred_fallthru
      _
    // Predicated region
    $region114: #{model_forward.1} parent=1 // pred_check
      _
    $region115: #{model_forward.1} parent=1 // pred_check_branch
      %124 = sbr.rel (0) target = $region117
    $region116: #{model_forward.1} parent=1 // pred_region
      _
    $region117: #{model_forward.1} parent=1 // pred_fallthru
      _
    // Predicated region
    $region118: #{model_forward.1} parent=1 // pred_check
      _
    $region119: #{model_forward.1} parent=1 // pred_check_branch
      %126 = sbr.rel (0) target = $region121
    $region120: #{model_forward.1} parent=1 // pred_region
      _
    $region121: #{model_forward.1} parent=1 // pred_fallthru
      _
    %v128 = vld [vmem:[%s1] sm:$0xff]
    %v129 = vld [vmem:[%s1 + $0x8] sm:$0xff]
    %v130 = vld [vmem:[%s5] sm:$0x1]
    %v131 = vld [vmem:[%s7] sm:$0x1]
    %vm132 = vcmask 261120
    %v133 = vsel %vm132, %v128, 0.0
    %134 = vadd.xlane.f32.xlu0 %v133
    %v135 = vpop.xlane.xlu0 %134
    %v136 = vsel %vm132, %v129, 0.0
    %137 = vadd.xlane.f32.xlu0 %v136
    %v138 = vpop.xlane.xlu0 %137
    %v139 = vrcp.pop 32.0
    %v140 = vmul.f32 32.0, %v139
    %v141 = vsub.f32 1.0, %v140
    %v142 = vmul.f32 %v139, %v141
    %v143 = vadd.f32 %v139, %v142
    %vm144 = vweird.f32 %v139
    %v145 = vsel %vm144, %v139, %v143
    %v146 = vmul.f32 %v135, %v145
    %v147 = vmul.f32 %v138, %v145
    %v148 = vsub.f32 %v128, %v146
    %v149 = vsub.f32 %v129, %v147
    %v150 = vmul.f32 %v148, %v148
    %v151 = vmul.f32 %v149, %v149
    %v152 = vsel %vm132, %v150, 0.0
    %153 = vadd.xlane.f32.xlu0 %v152
    %v154 = vpop.xlane.xlu0 %153
    %v155 = vsel %vm132, %v151, 0.0
    %156 = vadd.xlane.f32.xlu0 %v155
    %v157 = vpop.xlane.xlu0 %156
    %v158 = vmul.f32 %v154, %v145
    %v159 = vmul.f32 %v157, %v145
    %v160 = vadd.f32 %v158, 1e-12
    %v161 = vadd.f32 %v159, 1e-12
    %v162 = vrsqrt.pop %v160
    %v163 = vmul.f32 %v162, %v160
    %v164 = vmul.f32 %v163, %v162
    %v165 = vmul.f32 0.5, %v164
    %v166 = vsub.f32 1.5, %v165
    %v167 = vmul.f32 %v162, %v166
    %vm168 = vweird.f32 %v160
    %vm169 = vweird.f32 %v162
    %vm170 = vmor %vm168, %vm169
    %v171 = vsel %vm170, %v162, %v167
    %v172 = vrsqrt.pop %v161
    %v173 = vmul.f32 %v172, %v161
    %v174 = vmul.f32 %v173, %v172
    %v175 = vmul.f32 0.5, %v174
    %v176 = vsub.f32 1.5, %v175
    %v177 = vmul.f32 %v172, %v176
    %vm178 = vweird.f32 %v161
    %vm179 = vweird.f32 %v172
    %vm180 = vmor %vm178, %vm179
    %v181 = vsel %vm180, %v172, %v177
    %v182 = vmul.f32 %v148, %v171
    %v183 = vmul.f32 %v149, %v181
    %v185 = vperm.slane %v130, 0
    %v187 = vmul.f32 %v182, %v185
    %v188 = vmul.f32 %v183, %v185
    %v190 = vperm.slane %v131, 0
    %v192 = vadd.f32 %v187, %v190
    %v193 = vadd.f32 %v188, %v190
    %v194 = vld [vmem:[%s3] sm:$0xff]
    %v195 = vld [vmem:[%s3 + $0x8] sm:$0xff]
    %v196 = vld [vmem:[%s33] sm:$0xf]
    %v197 = vld [vmem:[%s33 + $0x4] sm:$0xf]
    %v198 = vld [vmem:[%s33 + $0x8] sm:$0xf]
    %v199 = vld [vmem:[%s33 + $0xc] sm:$0xf]
    %v200 = vld [vmem:[%s33 + $0x10] sm:$0xf]
    %v201 = vld [vmem:[%s33 + $0x14] sm:$0xf]
    %v202 = vld [vmem:[%s33 + $0x18] sm:$0xf]
    %v203 = vld [vmem:[%s33 + $0x1c] sm:$0xf]
    %v204 = vld [vmem:[%s33 + $0x20] sm:$0xf]
    %v205 = vld [vmem:[%s33 + $0x24] sm:$0xf]
    %v206 = vld [vmem:[%s33 + $0x28] sm:$0xf]
    %v207 = vld [vmem:[%s33 + $0x2c] sm:$0xf]
    %v208 = vld [vmem:[%s33 + $0x30] sm:$0xf]
    %v209 = vld [vmem:[%s33 + $0x34] sm:$0xf]
    %v210 = vld [vmem:[%s33 + $0x38] sm:$0xf]
    %v211 = vld [vmem:[%s33 + $0x3c] sm:$0xf]
    %v212 = vpack.c.bf16 %v193, %v192
    %v213 = vld [vmem:[%s9] sm:$0xf]
    %v214 = vld [vmem:[%s9 + $0x4] sm:$0xf]
    %v215 = vld [vmem:[%s9 + $0x8] sm:$0xf]
    %v216 = vld [vmem:[%s9 + $0xc] sm:$0xf]
    %v217 = vld [vmem:[%s11] sm:$0x1]
    %v219 = vperm.slane %v217, 0
    %v225 = vunpack.c.l.b16 %v213
    %v226 = vunpack.c.l.b16 %v214
    %v227 = vunpack.c.l.b16 %v215
    %v228 = vunpack.c.l.b16 %v216
    %v229 = vpack.c.b16 %v226, %v225
    %v230 = vpack.c.b16 %v228, %v227
    %v234 = vsel %vm132, %v212, 0
    %236 = vmatpush.bf16.msra.mxu0 0
    %237 = vmatpush.bf16.msra.mxu0 0
    %238 = vmatpush.bf16.msra.mxu0 0
    %239 = vmatpush.bf16.msra.mxu0 0
    %240 = vmatpush.bf16.msra.mxu0 0
    %241 = vmatpush.bf16.msra.mxu0 0
    %242 = vmatpush.bf16.msra.mxu0 %v230
    %243 = vmatpush.bf16.msra.mxu0 %v229
    %244 = vmatmul.bf16.gmra.mxu0 %v234
    %v245 = vpop.f32.mrf.mxu0
    %v246 = vadd.f32 %v219, %v245
    %v247 = vpop.f32.mrf.mxu0
    %v248 = vadd.f32 %v219, %v247
    %249 = vdwg.mxu0
    %v250 = vld [vmem:[%s13] sm:$0xf]
    %v251 = vld [vmem:[%s13 + $0x4] sm:$0xf]
    %v252 = vld [vmem:[%s13 + $0x8] sm:$0xf]
    %v253 = vld [vmem:[%s13 + $0xc] sm:$0xf]
    %v254 = vld [vmem:[%s15] sm:$0x1]
    %v255 = vpack.c.bf16 %v248, %v246
    %257 = vrot.lane.b32.xlu0 %v255, 96
    %v258 = vpop.permute.xlu0 %257
    %vm259 = vcmask 130048
    %v261 = vsel %vm259, %v255, 0
    %v264 = vsel %vm259, %v258, 0
    %266 = vmatpush.bf16.xpose.msra.mxu0 0
    %267 = vmatpush.bf16.xpose.msra.mxu0 0
    %268 = vmatpush.bf16.xpose.msra.mxu0 0
    %269 = vmatpush.bf16.xpose.msra.mxu0 0
    %270 = vmatpush.bf16.xpose.msra.mxu0 0
    %271 = vmatpush.bf16.xpose.msra.mxu0 0
    %272 = vmatpush.bf16.xpose.msra.mxu0 0
    %273 = vmatpush.bf16.xpose.msra.mxu0 %v264
    %274 = vmatmul.bf16.gmra.mxu0 %v261
    %v275 = vpop.f32.mrf.mxu0
    %v276 = vadd.f32 0.0, %v275
    %v277 = vpop.f32.mrf.mxu0
    %v278 = vadd.f32 0.0, %v277
    %279 = vdwg.mxu0
    %v280 = vmul.f32 %v276, 0.25
    %v281 = vmul.f32 %v278, 0.25
    %v282 = vadd.f32 %v280, %v194
    %v283 = vadd.f32 %v281, %v195
    %v284 = vsel %vm259, %v282, -inf
    %285 = vmax.xlane.f32.xlu0 %v284
    %v286 = vpop.xlane.xlu0 %285
    %v287 = vsel %vm259, %v283, -inf
    %288 = vmax.xlane.f32.xlu0 %v287
    %v289 = vpop.xlane.xlu0 %288
    %v290 = vsub.f32 %v282, %v286
    %v291 = vsub.f32 %v283, %v289
    %v292 = vmul.f32 %v290, 1.442695
    %v293 = vpow.pop %v292
    %v294 = vmul.f32 %v291, 1.442695
    %v295 = vpow.pop %v294
    %v296 = vsel %vm259, %v293, 0.0
    %297 = vadd.xlane.f32.xlu0 %v296
    %v298 = vpop.xlane.xlu0 %297
    %v299 = vsel %vm259, %v295, 0.0
    %300 = vadd.xlane.f32.xlu0 %v299
    %v301 = vpop.xlane.xlu0 %300
    %v302 = vrcp.pop %v298
    %v303 = vrcp.pop %v301
    %v304 = vmul.f32 %v293, %v302
    %v305 = vmul.f32 %v295, %v303
    %v306 = vpack.c.bf16 %v305, %v304
    %307 = vrot.lane.b32.xlu0 %v255, 64
    %v308 = vpop.permute.xlu0 %307
    %v311 = vsel %vm259, %v306, 0
    %313 = vmatpush.bf16.msra.mxu0 0
    %314 = vmatpush.bf16.msra.mxu0 0
    %315 = vmatpush.bf16.msra.mxu0 0
    %316 = vmatpush.bf16.msra.mxu0 0
    %317 = vmatpush.bf16.msra.mxu0 0
    %318 = vmatpush.bf16.msra.mxu0 0
    %319 = vmatpush.bf16.msra.mxu0 0
    %320 = vmatpush.bf16.msra.mxu0 %v308
    %321 = vmatmul.bf16.gmra.mxu0 %v311
    %v322 = vpop.f32.mrf.mxu0
    %v323 = vadd.f32 0.0, %v322
    %v324 = vpop.f32.mrf.mxu0
    %v325 = vadd.f32 0.0, %v324
    %326 = vdwg.mxu0
    %v327 = vpack.c.bf16 %v325, %v323
    %v330 = vunpack.c.l.b16 %v250
    %v331 = vunpack.c.l.b16 %v251
    %v332 = vpack.c.b16 %v331, %v330
    %v335 = vsel %vm259, %v327, 0
    %337 = vmatpush.bf16.msra.mxu0 0
    %338 = vmatpush.bf16.msra.mxu0 0
    %339 = vmatpush.bf16.msra.mxu0 0
    %340 = vmatpush.bf16.msra.mxu0 0
    %341 = vmatpush.bf16.msra.mxu0 0
    %342 = vmatpush.bf16.msra.mxu0 0
    %343 = vmatpush.bf16.msra.mxu0 0
    %344 = vmatpush.bf16.msra.mxu0 %v332
    %345 = vmatmul.bf16.gmra.mxu0 %v335
    %v346 = vpop.f32.mrf.mxu0
    %v347 = vadd.f32 0.0, %v346
    %v348 = vpop.f32.mrf.mxu0
    %v349 = vadd.f32 0.0, %v348
    %350 = vdwg.mxu0
    %v352 = vperm.slane %v254, 0
    %v354 = vadd.f32 %v352, %v347
    %v355 = vadd.f32 %v352, %v349
    %356 = vrot.lane.b32.xlu0 %v255, 112
    %v357 = vpop.permute.xlu0 %356
    %358 = vrot.lane.b32.xlu0 %v255, 80
    %v359 = vpop.permute.xlu0 %358
    %v361 = vsel %vm259, %v357, 0
    %v364 = vsel %vm259, %v359, 0
    %366 = vmatpush.bf16.xpose.msra.mxu0 0
    %367 = vmatpush.bf16.xpose.msra.mxu0 0
    %368 = vmatpush.bf16.xpose.msra.mxu0 0
    %369 = vmatpush.bf16.xpose.msra.mxu0 0
    %370 = vmatpush.bf16.xpose.msra.mxu0 0
    %371 = vmatpush.bf16.xpose.msra.mxu0 0
    %372 = vmatpush.bf16.xpose.msra.mxu0 0
    %373 = vmatpush.bf16.xpose.msra.mxu0 %v364
    %374 = vmatmul.bf16.gmra.mxu0 %v361
    %v375 = vpop.f32.mrf.mxu0
    %v376 = vadd.f32 0.0, %v375
    %v377 = vpop.f32.mrf.mxu0
    %v378 = vadd.f32 0.0, %v377
    %379 = vdwg.mxu0
    %v380 = vmul.f32 %v376, 0.25
    %v381 = vmul.f32 %v378, 0.25
    %v382 = vadd.f32 %v380, %v194
    %v383 = vadd.f32 %v381, %v195
    %v384 = vsel %vm259, %v382, -inf
    %385 = vmax.xlane.f32.xlu0 %v384
    %v386 = vpop.xlane.xlu0 %385
    %v387 = vsel %vm259, %v383, -inf
    %388 = vmax.xlane.f32.xlu0 %v387
    %v389 = vpop.xlane.xlu0 %388
    %v390 = vsub.f32 %v382, %v386
    %v391 = vsub.f32 %v383, %v389
    %v392 = vmul.f32 %v390, 1.442695
    %v393 = vpow.pop %v392
    %v394 = vmul.f32 %v391, 1.442695
    %v395 = vpow.pop %v394
    %v396 = vsel %vm259, %v393, 0.0
    %397 = vadd.xlane.f32.xlu0 %v396
    %v398 = vpop.xlane.xlu0 %397
    %v399 = vsel %vm259, %v395, 0.0
    %400 = vadd.xlane.f32.xlu0 %v399
    %v401 = vpop.xlane.xlu0 %400
    %v402 = vrcp.pop %v398
    %v403 = vrcp.pop %v401
    %v404 = vmul.f32 %v393, %v402
    %v405 = vmul.f32 %v395, %v403
    %v406 = vpack.c.bf16 %v405, %v404
    %407 = vrot.lane.b32.xlu0 %v255, 48
    %v408 = vpop.permute.xlu0 %407
    %v411 = vsel %vm259, %v406, 0
    %413 = vmatpush.bf16.msra.mxu0 0
    %414 = vmatpush.bf16.msra.mxu0 0
    %415 = vmatpush.bf16.msra.mxu0 0
    %416 = vmatpush.bf16.msra.mxu0 0
    %417 = vmatpush.bf16.msra.mxu0 0
    %418 = vmatpush.bf16.msra.mxu0 0
    %419 = vmatpush.bf16.msra.mxu0 0
    %420 = vmatpush.bf16.msra.mxu0 %v408
    %421 = vmatmul.bf16.gmra.mxu0 %v411
    %v422 = vpop.f32.mrf.mxu0
    %v423 = vadd.f32 0.0, %v422
    %v424 = vpop.f32.mrf.mxu0
    %v425 = vadd.f32 0.0, %v424
    %426 = vdwg.mxu0
    %v427 = vpack.c.bf16 %v425, %v423
    %v430 = vunpack.c.l.b16 %v252
    %v431 = vunpack.c.l.b16 %v253
    %v432 = vpack.c.b16 %v431, %v430
    %v435 = vsel %vm259, %v427, 0
    %437 = vmatpush.bf16.msra.mxu0 0
    %438 = vmatpush.bf16.msra.mxu0 0
    %439 = vmatpush.bf16.msra.mxu0 0
    %440 = vmatpush.bf16.msra.mxu0 0
    %441 = vmatpush.bf16.msra.mxu0 0
    %442 = vmatpush.bf16.msra.mxu0 0
    %443 = vmatpush.bf16.msra.mxu0 0
    %444 = vmatpush.bf16.msra.mxu0 %v432
    %445 = vmatmul.bf16.gmra.mxu0 %v435
    %v446 = vpop.f32.mrf.mxu0
    %v447 = vadd.f32 0.0, %v446
    %v448 = vpop.f32.mrf.mxu0
    %v449 = vadd.f32 0.0, %v448
    %450 = vdwg.mxu0
    %v451 = vadd.f32 %v354, %v447
    %v452 = vadd.f32 %v355, %v449
    %v453 = vadd.f32 %v451, %v192
    %v454 = vadd.f32 %v452, %v193
    %v455 = vld [vmem:[%s17] sm:$0x1]
    %v456 = vld [vmem:[%s19] sm:$0x1]
    %v457 = vsel %vm132, %v453, 0.0
    %458 = vadd.xlane.f32.xlu0 %v457
    %v459 = vpop.xlane.xlu0 %458
    %v460 = vsel %vm132, %v454, 0.0
    %461 = vadd.xlane.f32.xlu0 %v460
    %v462 = vpop.xlane.xlu0 %461
    %v463 = vmul.f32 %v459, %v145
    %v464 = vmul.f32 %v462, %v145
    %v465 = vsub.f32 %v453, %v463
    %v466 = vsub.f32 %v454, %v464
    %v467 = vmul.f32 %v465, %v465
    %v468 = vmul.f32 %v466, %v466
    %v469 = vsel %vm132, %v467, 0.0
    %470 = vadd.xlane.f32.xlu0 %v469
    %v471 = vpop.xlane.xlu0 %470
    %v472 = vsel %vm132, %v468, 0.0
    %473 = vadd.xlane.f32.xlu0 %v472
    %v474 = vpop.xlane.xlu0 %473
    %v475 = vmul.f32 %v471, %v145
    %v476 = vmul.f32 %v474, %v145
    %v477 = vadd.f32 %v475, 1e-12
    %v478 = vadd.f32 %v476, 1e-12
    %v479 = vrsqrt.pop %v477
    %v480 = vmul.f32 %v479, %v477
    %v481 = vmul.f32 %v480, %v479
    %v482 = vmul.f32 0.5, %v481
    %v483 = vsub.f32 1.5, %v482
    %v484 = vmul.f32 %v479, %v483
    %vm485 = vweird.f32 %v477
    %vm486 = vweird.f32 %v479
    %vm487 = vmor %vm485, %vm486
    %v488 = vsel %vm487, %v479, %v484
    %v489 = vrsqrt.pop %v478
    %v490 = vmul.f32 %v489, %v478
    %v491 = vmul.f32 %v490, %v489
    %v492 = vmul.f32 0.5, %v491
    %v493 = vsub.f32 1.5, %v492
    %v494 = vmul.f32 %v489, %v493
    %vm495 = vweird.f32 %v478
    %vm496 = vweird.f32 %v489
    %vm497 = vmor %vm495, %vm496
    %v498 = vsel %vm497, %v489, %v494
    %v499 = vmul.f32 %v465, %v488
    %v500 = vmul.f32 %v466, %v498
    %v502 = vperm.slane %v455, 0
    %v504 = vmul.f32 %v499, %v502
    %v505 = vmul.f32 %v500, %v502
    %v507 = vperm.slane %v456, 0
    %v509 = vadd.f32 %v504, %v507
    %v510 = vadd.f32 %v505, %v507
    %v511 = vpack.c.bf16 %v510, %v509
    %v512 = vld [vmem:[%s21] sm:$0xf]
    %v513 = vld [vmem:[%s21 + $0x4] sm:$0xf]
    %v514 = vld [vmem:[%s21 + $0x8] sm:$0xf]
    %v515 = vld [vmem:[%s21 + $0xc] sm:$0xf]
    %v516 = vld [vmem:[%s23] sm:$0x1]
    %v518 = vperm.slane %v516, 0
    %v524 = vunpack.c.l.b16 %v512
    %v525 = vunpack.c.l.b16 %v513
    %v526 = vunpack.c.l.b16 %v514
    %v527 = vunpack.c.l.b16 %v515
    %v528 = vpack.c.b16 %v525, %v524
    %v529 = vpack.c.b16 %v527, %v526
    %v533 = vsel %vm132, %v511, 0
    %535 = vmatpush.bf16.msra.mxu0 0
    %536 = vmatpush.bf16.msra.mxu0 0
    %537 = vmatpush.bf16.msra.mxu0 0
    %538 = vmatpush.bf16.msra.mxu0 0
    %539 = vmatpush.bf16.msra.mxu0 0
    %540 = vmatpush.bf16.msra.mxu0 0
    %541 = vmatpush.bf16.msra.mxu0 %v529
    %542 = vmatpush.bf16.msra.mxu0 %v528
    %543 = vmatmul.bf16.gmra.mxu0 %v533
    %v544 = vpop.f32.mrf.mxu0
    %v545 = vadd.f32 %v518, %v544
    %v546 = vpop.f32.mrf.mxu0
    %v547 = vadd.f32 %v518, %v546
    %548 = vdwg.mxu0
    %v549 = vmul.f32 %v545, 0.5
    %v550 = vmul.f32 %v547, 0.5
    %v551 = vmul.f32 %v545, 0.044715
    %v552 = vmul.f32 %v547, 0.044715
    %v553 = vmul.f32 %v551, %v545
    %v554 = vmul.f32 %v552, %v547
    %v555 = vmul.f32 %v553, %v545
    %v556 = vmul.f32 %v554, %v547
    %v557 = vadd.f32 %v545, %v555
    %v558 = vadd.f32 %v547, %v556
    %v559 = vmul.f32 %v557, 0.7978846
    %v560 = vmul.f32 %v558, 0.7978846
    %v561 = vtanh.pop %v559
    %v562 = vtanh.pop %v560
    %v563 = vadd.f32 %v561, 1.0
    %v564 = vadd.f32 %v562, 1.0
    %v565 = vmul.f32 %v549, %v563
    %v566 = vmul.f32 %v550, %v564
    %v567 = vpack.c.bf16 %v566, %v565
    %v568 = vld [vmem:[%s25] sm:$0xf]
    %v569 = vld [vmem:[%s25 + $0x4] sm:$0xf]
    %v570 = vld [vmem:[%s25 + $0x8] sm:$0xf]
    %v571 = vld [vmem:[%s25 + $0xc] sm:$0xf]
    %v572 = vld [vmem:[%s25 + $0x10] sm:$0xf]
    %v573 = vld [vmem:[%s25 + $0x14] sm:$0xf]
    %v574 = vld [vmem:[%s25 + $0x18] sm:$0xf]
    %v575 = vld [vmem:[%s25 + $0x1c] sm:$0xf]
    %v576 = vld [vmem:[%s27] sm:$0x1]
    %v578 = vperm.slane %v576, 0
    %v588 = vunpack.c.l.b16 %v568
    %v589 = vunpack.c.l.b16 %v569
    %v590 = vunpack.c.l.b16 %v570
    %v591 = vunpack.c.l.b16 %v571
    %v592 = vunpack.c.l.b16 %v572
    %v593 = vunpack.c.l.b16 %v573
    %v594 = vunpack.c.l.b16 %v574
    %v595 = vunpack.c.l.b16 %v575
    %v596 = vpack.c.b16 %v589, %v588
    %v597 = vpack.c.b16 %v591, %v590
    %v598 = vpack.c.b16 %v593, %v592
    %v599 = vpack.c.b16 %v595, %v594
    %vm604 = vcmask 523264
    %v606 = vsel %vm604, %v567, 0
    %608 = vmatpush.bf16.msra.mxu0 0
    %609 = vmatpush.bf16.msra.mxu0 0
    %610 = vmatpush.bf16.msra.mxu0 0
    %611 = vmatpush.bf16.msra.mxu0 0
    %612 = vmatpush.bf16.msra.mxu0 %v599
    %613 = vmatpush.bf16.msra.mxu0 %v598
    %614 = vmatpush.bf16.msra.mxu0 %v597
    %615 = vmatpush.bf16.msra.mxu0 %v596
    %616 = vmatmul.bf16.gmra.mxu0 %v606
    %v617 = vpop.f32.mrf.mxu0
    %v618 = vadd.f32 %v578, %v617
    %v619 = vpop.f32.mrf.mxu0
    %v620 = vadd.f32 %v578, %v619
    %621 = vdwg.mxu0
    %v622 = vadd.f32 %v618, %v509
    %v623 = vadd.f32 %v620, %v510
    %v624 = vld [vmem:[%s29] sm:$0x1]
    %v625 = vld [vmem:[%s31] sm:$0x1]
    %v626 = vsel %vm132, %v622, 0.0
    %627 = vadd.xlane.f32.xlu0 %v626
    %v628 = vpop.xlane.xlu0 %627
    %v629 = vsel %vm132, %v623, 0.0
    %630 = vadd.xlane.f32.xlu0 %v629
    %v631 = vpop.xlane.xlu0 %630
    %v632 = vmul.f32 %v628, %v145
    %v633 = vmul.f32 %v631, %v145
    %v634 = vsub.f32 %v622, %v632
    %v635 = vsub.f32 %v623, %v633
    %v636 = vmul.f32 %v634, %v634
    %v637 = vmul.f32 %v635, %v635
    %v638 = vsel %vm132, %v636, 0.0
    %639 = vadd.xlane.f32.xlu0 %v638
    %v640 = vpop.xlane.xlu0 %639
    %v641 = vsel %vm132, %v637, 0.0
    %642 = vadd.xlane.f32.xlu0 %v641
    %v643 = vpop.xlane.xlu0 %642
    %v644 = vmul.f32 %v640, %v145
    %v645 = vmul.f32 %v643, %v145
    %v646 = vadd.f32 %v644, 1e-12
    %v647 = vadd.f32 %v645, 1e-12
    %v648 = vrsqrt.pop %v646
    %v649 = vmul.f32 %v648, %v646
    %v650 = vmul.f32 %v649, %v648
    %v651 = vmul.f32 0.5, %v650
    %v652 = vsub.f32 1.5, %v651
    %v653 = vmul.f32 %v648, %v652
    %vm654 = vweird.f32 %v646
    %vm655 = vweird.f32 %v648
    %vm656 = vmor %vm654, %vm655
    %v657 = vsel %vm656, %v648, %v653
    %v658 = vrsqrt.pop %v647
    %v659 = vmul.f32 %v658, %v647
    %v660 = vmul.f32 %v659, %v658
    %v661 = vmul.f32 0.5, %v660
    %v662 = vsub.f32 1.5, %v661
    %v663 = vmul.f32 %v658, %v662
    %vm664 = vweird.f32 %v647
    %vm665 = vweird.f32 %v658
    %vm666 = vmor %vm664, %vm665
    %v667 = vsel %vm666, %v658, %v663
    %v668 = vmul.f32 %v634, %v657
    %v669 = vmul.f32 %v635, %v667
    %v671 = vperm.slane %v624, 0
    %v673 = vmul.f32 %v668, %v671
    %v674 = vmul.f32 %v669, %v671
    %v676 = vperm.slane %v625, 0
    %v678 = vadd.f32 %v673, %v676
    %v679 = vadd.f32 %v674, %v676
    %v681 = vrot.slane %v679, 7
    %vm683 = vcmask 1040384
    %v684 = vsel %vm683, %v678, %v681
    %v685 = vpack.c.bf16 %v684, %v684
    %v686 = vpack.c.bf16 %v679, %v678
    %s687 = scalar_lea.vmem %s9, 16
    %v688 = vld [vmem:[%s687] sm:$0xf]
    %v689 = vld [vmem:[%s687 + $0x4] sm:$0xf]
    %v690 = vld [vmem:[%s687 + $0x8] sm:$0xf]
    %v691 = vld [vmem:[%s687 + $0xc] sm:$0xf]
    %s692 = scalar_lea.vmem %s11, 1
    %v693 = vld [vmem:[%s692] sm:$0x1]
    %v695 = vperm.slane %v693, 0
    %v701 = vunpack.c.l.b16 %v688
    %v702 = vunpack.c.l.b16 %v689
    %v703 = vunpack.c.l.b16 %v690
    %v704 = vunpack.c.l.b16 %v691
    %v705 = vpack.c.b16 %v702, %v701
    %v706 = vpack.c.b16 %v704, %v703
    %v710 = vsel %vm132, %v686, 0
    %712 = vmatpush.bf16.msra.mxu0 0
    %713 = vmatpush.bf16.msra.mxu0 0
    %714 = vmatpush.bf16.msra.mxu0 0
    %715 = vmatpush.bf16.msra.mxu0 0
    %716 = vmatpush.bf16.msra.mxu0 0
    %717 = vmatpush.bf16.msra.mxu0 0
    %718 = vmatpush.bf16.msra.mxu0 %v706
    %719 = vmatpush.bf16.msra.mxu0 %v705
    %720 = vmatmul.bf16.gmra.mxu0 %v710
    %v721 = vpop.f32.mrf.mxu0
    %v722 = vadd.f32 %v695, %v721
    %v723 = vpop.f32.mrf.mxu0
    %v724 = vadd.f32 %v695, %v723
    %725 = vdwg.mxu0
    %s726 = scalar_lea.vmem %s13, 16
    %v727 = vld [vmem:[%s726] sm:$0xf]
    %v728 = vld [vmem:[%s726 + $0x4] sm:$0xf]
    %v729 = vld [vmem:[%s726 + $0x8] sm:$0xf]
    %v730 = vld [vmem:[%s726 + $0xc] sm:$0xf]
    %s731 = scalar_lea.vmem %s15, 1
    %v732 = vld [vmem:[%s731] sm:$0x1]
    %v733 = vpack.c.bf16 %v724, %v722
    %735 = vrot.lane.b32.xlu0 %v733, 96
    %v736 = vpop.permute.xlu0 %735
    %v738 = vsel %vm259, %v733, 0
    %v741 = vsel %vm259, %v736, 0
    %743 = vmatpush.bf16.xpose.msra.mxu0 0
    %744 = vmatpush.bf16.xpose.msra.mxu0 0
    %745 = vmatpush.bf16.xpose.msra.mxu0 0
    %746 = vmatpush.bf16.xpose.msra.mxu0 0
    %747 = vmatpush.bf16.xpose.msra.mxu0 0
    %748 = vmatpush.bf16.xpose.msra.mxu0 0
    %749 = vmatpush.bf16.xpose.msra.mxu0 0
    %750 = vmatpush.bf16.xpose.msra.mxu0 %v741
    %751 = vmatmul.bf16.gmra.mxu0 %v738
    %v752 = vpop.f32.mrf.mxu0
    %v753 = vadd.f32 0.0, %v752
    %v754 = vpop.f32.mrf.mxu0
    %v755 = vadd.f32 0.0, %v754
    %756 = vdwg.mxu0
    %v757 = vmul.f32 %v753, 0.25
    %v758 = vmul.f32 %v755, 0.25
    %v759 = vadd.f32 %v757, %v194
    %v760 = vadd.f32 %v758, %v195
    %v761 = vsel %vm259, %v759, -inf
    %762 = vmax.xlane.f32.xlu0 %v761
    %v763 = vpop.xlane.xlu0 %762
    %v764 = vsel %vm259, %v760, -inf
    %765 = vmax.xlane.f32.xlu0 %v764
    %v766 = vpop.xlane.xlu0 %765
    %v767 = vsub.f32 %v759, %v763
    %v768 = vsub.f32 %v760, %v766
    %v769 = vmul.f32 %v767, 1.442695
    %v770 = vpow.pop %v769
    %v771 = vmul.f32 %v768, 1.442695
    %v772 = vpow.pop %v771
    %v773 = vsel %vm259, %v770, 0.0
    %774 = vadd.xlane.f32.xlu0 %v773
    %v775 = vpop.xlane.xlu0 %774
    %v776 = vsel %vm259, %v772, 0.0
    %777 = vadd.xlane.f32.xlu0 %v776
    %v778 = vpop.xlane.xlu0 %777
    %v779 = vrcp.pop %v775
    %v780 = vrcp.pop %v778
    %v781 = vmul.f32 %v770, %v779
    %v782 = vmul.f32 %v772, %v780
    %v783 = vpack.c.bf16 %v782, %v781
    %784 = vrot.lane.b32.xlu0 %v733, 64
    %v785 = vpop.permute.xlu0 %784
    %v788 = vsel %vm259, %v783, 0
    %790 = vmatpush.bf16.msra.mxu0 0
    %791 = vmatpush.bf16.msra.mxu0 0
    %792 = vmatpush.bf16.msra.mxu0 0
    %793 = vmatpush.bf16.msra.mxu0 0
    %794 = vmatpush.bf16.msra.mxu0 0
    %795 = vmatpush.bf16.msra.mxu0 0
    %796 = vmatpush.bf16.msra.mxu0 0
    %797 = vmatpush.bf16.msra.mxu0 %v785
    %798 = vmatmul.bf16.gmra.mxu0 %v788
    %v799 = vpop.f32.mrf.mxu0
    %v800 = vadd.f32 0.0, %v799
    %v801 = vpop.f32.mrf.mxu0
    %v802 = vadd.f32 0.0, %v801
    %803 = vdwg.mxu0
    %v804 = vpack.c.bf16 %v802, %v800
    %v807 = vunpack.c.l.b16 %v727
    %v808 = vunpack.c.l.b16 %v728
    %v809 = vpack.c.b16 %v808, %v807
    %v812 = vsel %vm259, %v804, 0
    %814 = vmatpush.bf16.msra.mxu0 0
    %815 = vmatpush.bf16.msra.mxu0 0
    %816 = vmatpush.bf16.msra.mxu0 0
    %817 = vmatpush.bf16.msra.mxu0 0
    %818 = vmatpush.bf16.msra.mxu0 0
    %819 = vmatpush.bf16.msra.mxu0 0
    %820 = vmatpush.bf16.msra.mxu0 0
    %821 = vmatpush.bf16.msra.mxu0 %v809
    %822 = vmatmul.bf16.gmra.mxu0 %v812
    %v823 = vpop.f32.mrf.mxu0
    %v824 = vadd.f32 0.0, %v823
    %v825 = vpop.f32.mrf.mxu0
    %v826 = vadd.f32 0.0, %v825
    %827 = vdwg.mxu0
    %v829 = vperm.slane %v732, 0
    %v831 = vadd.f32 %v829, %v824
    %v832 = vadd.f32 %v829, %v826
    %833 = vrot.lane.b32.xlu0 %v733, 112
    %v834 = vpop.permute.xlu0 %833
    %835 = vrot.lane.b32.xlu0 %v733, 80
    %v836 = vpop.permute.xlu0 %835
    %v838 = vsel %vm259, %v834, 0
    %v841 = vsel %vm259, %v836, 0
    %843 = vmatpush.bf16.xpose.msra.mxu0 0
    %844 = vmatpush.bf16.xpose.msra.mxu0 0
    %845 = vmatpush.bf16.xpose.msra.mxu0 0
    %846 = vmatpush.bf16.xpose.msra.mxu0 0
    %847 = vmatpush.bf16.xpose.msra.mxu0 0
    %848 = vmatpush.bf16.xpose.msra.mxu0 0
    %849 = vmatpush.bf16.xpose.msra.mxu0 0
    %850 = vmatpush.bf16.xpose.msra.mxu0 %v841
    %851 = vmatmul.bf16.gmra.mxu0 %v838
    %v852 = vpop.f32.mrf.mxu0
    %v853 = vadd.f32 0.0, %v852
    %v854 = vpop.f32.mrf.mxu0
    %v855 = vadd.f32 0.0, %v854
    %856 = vdwg.mxu0
    %v857 = vmul.f32 %v853, 0.25
    %v858 = vmul.f32 %v855, 0.25
    %v859 = vadd.f32 %v857, %v194
    %v860 = vadd.f32 %v858, %v195
    %v861 = vsel %vm259, %v859, -inf
    %862 = vmax.xlane.f32.xlu0 %v861
    %v863 = vpop.xlane.xlu0 %862
    %v864 = vsel %vm259, %v860, -inf
    %865 = vmax.xlane.f32.xlu0 %v864
    %v866 = vpop.xlane.xlu0 %865
    %v867 = vsub.f32 %v859, %v863
    %v868 = vsub.f32 %v860, %v866
    %v869 = vmul.f32 %v867, 1.442695
    %v870 = vpow.pop %v869
    %v871 = vmul.f32 %v868, 1.442695
    %v872 = vpow.pop %v871
    %v873 = vsel %vm259, %v870, 0.0
    %874 = vadd.xlane.f32.xlu0 %v873
    %v875 = vpop.xlane.xlu0 %874
    %v876 = vsel %vm259, %v872, 0.0
    %877 = vadd.xlane.f32.xlu0 %v876
    %v878 = vpop.xlane.xlu0 %877
    %v879 = vrcp.pop %v875
    %v880 = vrcp.pop %v878
    %v881 = vmul.f32 %v870, %v879
    %v882 = vmul.f32 %v872, %v880
    %v883 = vpack.c.bf16 %v882, %v881
    %884 = vrot.lane.b32.xlu0 %v733, 48
    %v885 = vpop.permute.xlu0 %884
    %v888 = vsel %vm259, %v883, 0
    %890 = vmatpush.bf16.msra.mxu0 0
    %891 = vmatpush.bf16.msra.mxu0 0
    %892 = vmatpush.bf16.msra.mxu0 0
    %893 = vmatpush.bf16.msra.mxu0 0
    %894 = vmatpush.bf16.msra.mxu0 0
    %895 = vmatpush.bf16.msra.mxu0 0
    %896 = vmatpush.bf16.msra.mxu0 0
    %897 = vmatpush.bf16.msra.mxu0 %v885
    %898 = vmatmul.bf16.gmra.mxu0 %v888
    %v899 = vpop.f32.mrf.mxu0
    %v900 = vadd.f32 0.0, %v899
    %v901 = vpop.f32.mrf.mxu0
    %v902 = vadd.f32 0.0, %v901
    %903 = vdwg.mxu0
    %v904 = vpack.c.bf16 %v902, %v900
    %v907 = vunpack.c.l.b16 %v729
    %v908 = vunpack.c.l.b16 %v730
    %v909 = vpack.c.b16 %v908, %v907
    %v912 = vsel %vm259, %v904, 0
    %914 = vmatpush.bf16.msra.mxu0 0
    %915 = vmatpush.bf16.msra.mxu0 0
    %916 = vmatpush.bf16.msra.mxu0 0
    %917 = vmatpush.bf16.msra.mxu0 0
    %918 = vmatpush.bf16.msra.mxu0 0
    %919 = vmatpush.bf16.msra.mxu0 0
    %920 = vmatpush.bf16.msra.mxu0 0
    %921 = vmatpush.bf16.msra.mxu0 %v909
    %922 = vmatmul.bf16.gmra.mxu0 %v912
    %v923 = vpop.f32.mrf.mxu0
    %v924 = vadd.f32 0.0, %v923
    %v925 = vpop.f32.mrf.mxu0
    %v926 = vadd.f32 0.0, %v925
    %927 = vdwg.mxu0
    %v928 = vadd.f32 %v831, %v924
    %v929 = vadd.f32 %v832, %v926
    %v930 = vadd.f32 %v928, %v678
    %v931 = vadd.f32 %v929, %v679
    %s932 = scalar_lea.vmem %s17, 1
    %v933 = vld [vmem:[%s932] sm:$0x1]
    %s934 = scalar_lea.vmem %s19, 1
    %v935 = vld [vmem:[%s934] sm:$0x1]
    %v936 = vsel %vm132, %v930, 0.0
    %937 = vadd.xlane.f32.xlu0 %v936
    %v938 = vpop.xlane.xlu0 %937
    %v939 = vsel %vm132, %v931, 0.0
    %940 = vadd.xlane.f32.xlu0 %v939
    %v941 = vpop.xlane.xlu0 %940
    %v942 = vmul.f32 %v938, %v145
    %v943 = vmul.f32 %v941, %v145
    %v944 = vsub.f32 %v930, %v942
    %v945 = vsub.f32 %v931, %v943
    %v946 = vmul.f32 %v944, %v944
    %v947 = vmul.f32 %v945, %v945
    %v948 = vsel %vm132, %v946, 0.0
    %949 = vadd.xlane.f32.xlu0 %v948
    %v950 = vpop.xlane.xlu0 %949
    %v951 = vsel %vm132, %v947, 0.0
    %952 = vadd.xlane.f32.xlu0 %v951
    %v953 = vpop.xlane.xlu0 %952
    %v954 = vmul.f32 %v950, %v145
    %v955 = vmul.f32 %v953, %v145
    %v956 = vadd.f32 %v954, 1e-12
    %v957 = vadd.f32 %v955, 1e-12
    %v958 = vrsqrt.pop %v956
    %v959 = vmul.f32 %v958, %v956
    %v960 = vmul.f32 %v959, %v958
    %v961 = vmul.f32 0.5, %v960
    %v962 = vsub.f32 1.5, %v961
    %v963 = vmul.f32 %v958, %v962
    %vm964 = vweird.f32 %v956
    %vm965 = vweird.f32 %v958
    %vm966 = vmor %vm964, %vm965
    %v967 = vsel %vm966, %v958, %v963
    %v968 = vrsqrt.pop %v957
    %v969 = vmul.f32 %v968, %v957
    %v970 = vmul.f32 %v969, %v968
    %v971 = vmul.f32 0.5, %v970
    %v972 = vsub.f32 1.5, %v971
    %v973 = vmul.f32 %v968, %v972
    %vm974 = vweird.f32 %v957
    %vm975 = vweird.f32 %v968
    %vm976 = vmor %vm974, %vm975
    %v977 = vsel %vm976, %v968, %v973
    %v978 = vmul.f32 %v944, %v967
    %v979 = vmul.f32 %v945, %v977
    %v981 = vperm.slane %v933, 0
    %v983 = vmul.f32 %v978, %v981
    %v984 = vmul.f32 %v979, %v981
    %v986 = vperm.slane %v935, 0
    %v988 = vadd.f32 %v983, %v986
    %v989 = vadd.f32 %v984, %v986
    %v990 = vpack.c.bf16 %v989, %v988
    %s991 = scalar_lea.vmem %s21, 16
    %v992 = vld [vmem:[%s991] sm:$0xf]
    %v993 = vld [vmem:[%s991 + $0x4] sm:$0xf]
    %v994 = vld [vmem:[%s991 + $0x8] sm:$0xf]
    %v995 = vld [vmem:[%s991 + $0xc] sm:$0xf]
    %s996 = scalar_lea.vmem %s23, 1
    %v997 = vld [vmem:[%s996] sm:$0x1]
    %v999 = vperm.slane %v997, 0
    %v1005 = vunpack.c.l.b16 %v992
    %v1006 = vunpack.c.l.b16 %v993
    %v1007 = vunpack.c.l.b16 %v994
    %v1008 = vunpack.c.l.b16 %v995
    %v1009 = vpack.c.b16 %v1006, %v1005
    %v1010 = vpack.c.b16 %v1008, %v1007
    %v1014 = vsel %vm132, %v990, 0
    %1016 = vmatpush.bf16.msra.mxu0 0
    %1017 = vmatpush.bf16.msra.mxu0 0
    %1018 = vmatpush.bf16.msra.mxu0 0
    %1019 = vmatpush.bf16.msra.mxu0 0
    %1020 = vmatpush.bf16.msra.mxu0 0
    %1021 = vmatpush.bf16.msra.mxu0 0
    %1022 = vmatpush.bf16.msra.mxu0 %v1010
    %1023 = vmatpush.bf16.msra.mxu0 %v1009
    %1024 = vmatmul.bf16.gmra.mxu0 %v1014
    %v1025 = vpop.f32.mrf.mxu0
    %v1026 = vadd.f32 %v999, %v1025
    %v1027 = vpop.f32.mrf.mxu0
    %v1028 = vadd.f32 %v999, %v1027
    %1029 = vdwg.mxu0
    %v1030 = vmul.f32 %v1026, 0.5
    %v1031 = vmul.f32 %v1028, 0.5
    %v1032 = vmul.f32 %v1026, 0.044715
    %v1033 = vmul.f32 %v1028, 0.044715
    %v1034 = vmul.f32 %v1032, %v1026
    %v1035 = vmul.f32 %v1033, %v1028
    %v1036 = vmul.f32 %v1034, %v1026
    %v1037 = vmul.f32 %v1035, %v1028
    %v1038 = vadd.f32 %v1026, %v1036
    %v1039 = vadd.f32 %v1028, %v1037
    %v1040 = vmul.f32 %v1038, 0.7978846
    %v1041 = vmul.f32 %v1039, 0.7978846
    %v1042 = vtanh.pop %v1040
    %v1043 = vtanh.pop %v1041
    %v1044 = vadd.f32 %v1042, 1.0
    %v1045 = vadd.f32 %v1043, 1.0
    %v1046 = vmul.f32 %v1030, %v1044
    %v1047 = vmul.f32 %v1031, %v1045
    %v1048 = vpack.c.bf16 %v1047, %v1046
    %s1049 = scalar_lea.vmem %s25, 32
    %v1050 = vld [vmem:[%s1049] sm:$0xf]
    %v1051 = vld [vmem:[%s1049 + $0x4] sm:$0xf]
    %v1052 = vld [vmem:[%s1049 + $0x8] sm:$0xf]
    %v1053 = vld [vmem:[%s1049 + $0xc] sm:$0xf]
    %v1054 = vld [vmem:[%s1049 + $0x10] sm:$0xf]
    %v1055 = vld [vmem:[%s1049 + $0x14] sm:$0xf]
    %v1056 = vld [vmem:[%s1049 + $0x18] sm:$0xf]
    %v1057 = vld [vmem:[%s1049 + $0x1c] sm:$0xf]
    %s1058 = scalar_lea.vmem %s27, 1
    %v1059 = vld [vmem:[%s1058] sm:$0x1]
    %v1061 = vperm.slane %v1059, 0
    %v1071 = vunpack.c.l.b16 %v1050
    %v1072 = vunpack.c.l.b16 %v1051
    %v1073 = vunpack.c.l.b16 %v1052
    %v1074 = vunpack.c.l.b16 %v1053
    %v1075 = vunpack.c.l.b16 %v1054
    %v1076 = vunpack.c.l.b16 %v1055
    %v1077 = vunpack.c.l.b16 %v1056
    %v1078 = vunpack.c.l.b16 %v1057
    %v1079 = vpack.c.b16 %v1072, %v1071
    %v1080 = vpack.c.b16 %v1074, %v1073
    %v1081 = vpack.c.b16 %v1076, %v1075
    %v1082 = vpack.c.b16 %v1078, %v1077
    %v1088 = vsel %vm604, %v1048, 0
    %1090 = vmatpush.bf16.msra.mxu0 0
    %1091 = vmatpush.bf16.msra.mxu0 0
    %1092 = vmatpush.bf16.msra.mxu0 0
    %1093 = vmatpush.bf16.msra.mxu0 0
    %1094 = vmatpush.bf16.msra.mxu0 %v1082
    %1095 = vmatpush.bf16.msra.mxu0 %v1081
    %1096 = vmatpush.bf16.msra.mxu0 %v1080
    %1097 = vmatpush.bf16.msra.mxu0 %v1079
    %1098 = vmatmul.bf16.gmra.mxu0 %v1088
    %v1099 = vpop.f32.mrf.mxu0
    %v1100 = vadd.f32 %v1061, %v1099
    %v1101 = vpop.f32.mrf.mxu0
    %v1102 = vadd.f32 %v1061, %v1101
    %1103 = vdwg.mxu0
    %v1104 = vadd.f32 %v1100, %v988
    %v1105 = vadd.f32 %v1102, %v989
    %s1106 = scalar_lea.vmem %s29, 1
    %v1107 = vld [vmem:[%s1106] sm:$0x1]
    %s1108 = scalar_lea.vmem %s31, 1
    %v1109 = vld [vmem:[%s1108] sm:$0x1]
    %v1110 = vsel %vm132, %v1104, 0.0
    %1111 = vadd.xlane.f32.xlu0 %v1110
    %v1112 = vpop.xlane.xlu0 %1111
    %v1113 = vsel %vm132, %v1105, 0.0
    %1114 = vadd.xlane.f32.xlu0 %v1113
    %v1115 = vpop.xlane.xlu0 %1114
    %v1116 = vmul.f32 %v1112, %v145
    %v1117 = vmul.f32 %v1115, %v145
    %v1118 = vsub.f32 %v1104, %v1116
    %v1119 = vsub.f32 %v1105, %v1117
    %v1120 = vmul.f32 %v1118, %v1118
    %v1121 = vmul.f32 %v1119, %v1119
    %v1122 = vsel %vm132, %v1120, 0.0
    %1123 = vadd.xlane.f32.xlu0 %v1122
    %v1124 = vpop.xlane.xlu0 %1123
    %v1125 = vsel %vm132, %v1121, 0.0
    %1126 = vadd.xlane.f32.xlu0 %v1125
    %v1127 = vpop.xlane.xlu0 %1126
    %v1128 = vmul.f32 %v1124, %v145
    %v1129 = vmul.f32 %v1127, %v145
    %v1130 = vadd.f32 %v1128, 1e-12
    %v1131 = vadd.f32 %v1129, 1e-12
    %v1132 = vrsqrt.pop %v1130
    %v1133 = vmul.f32 %v1132, %v1130
    %v1134 = vmul.f32 %v1133, %v1132
    %v1135 = vmul.f32 0.5, %v1134
    %v1136 = vsub.f32 1.5, %v1135
    %v1137 = vmul.f32 %v1132, %v1136
    %vm1138 = vweird.f32 %v1130
    %vm1139 = vweird.f32 %v1132
    %vm1140 = vmor %vm1138, %vm1139
    %v1141 = vsel %vm1140, %v1132, %v1137
    %v1142 = vrsqrt.pop %v1131
    %v1143 = vmul.f32 %v1142, %v1131
    %v1144 = vmul.f32 %v1143, %v1142
    %v1145 = vmul.f32 0.5, %v1144
    %v1146 = vsub.f32 1.5, %v1145
    %v1147 = vmul.f32 %v1142, %v1146
    %vm1148 = vweird.f32 %v1131
    %vm1149 = vweird.f32 %v1142
    %vm1150 = vmor %vm1148, %vm1149
    %v1151 = vsel %vm1150, %v1142, %v1147
    %v1152 = vmul.f32 %v1118, %v1141
    %v1153 = vmul.f32 %v1119, %v1151
    %v1155 = vperm.slane %v1107, 0
    %v1157 = vmul.f32 %v1152, %v1155
    %v1158 = vmul.f32 %v1153, %v1155
    %v1160 = vperm.slane %v1109, 0
    %v1162 = vadd.f32 %v1157, %v1160
    %v1163 = vadd.f32 %v1158, %v1160
    %v1165 = vrot.slane %v1163, 7
    %v1167 = vsel %vm683, %v1162, %v1165
    %v1168 = vpack.c.bf16 %v1167, %v1167
    %v1173 = vunpack.c.l.b16 %v204
    %v1174 = vunpack.c.l.b16 %v205
    %v1175 = vunpack.c.l.b16 %v206
    %v1176 = vunpack.c.l.b16 %v207
    %v1177 = vpack.c.b16 %v1174, %v1173
    %v1178 = vpack.c.b16 %v1176, %v1175
    %v1182 = vsel %vm132, %v1168, 0
    %1184 = vmatpush.bf16.msra.mxu0 0
    %1185 = vmatpush.bf16.msra.mxu0 0
    %1186 = vmatpush.bf16.msra.mxu0 0
    %1187 = vmatpush.bf16.msra.mxu0 0
    %1188 = vmatpush.bf16.msra.mxu0 0
    %1189 = vmatpush.bf16.msra.mxu0 0
    %1190 = vmatpush.bf16.msra.mxu0 %v1178
    %1191 = vmatpush.bf16.msra.mxu0 %v1177
    %1192 = vmatmul.bf16.gmra.mxu0 %v1182
    %v1193 = vpop.f32.mrf.mxu0
    %v1194 = vadd.f32 0.0, %v1193
    %v1195 = vpop.f32.mrf.mxu0
    %1196 = vdwg.mxu0
    %v1201 = vunpack.c.l.b16 %v208
    %v1202 = vunpack.c.l.b16 %v209
    %v1203 = vunpack.c.l.b16 %v210
    %v1204 = vunpack.c.l.b16 %v211
    %v1205 = vpack.c.b16 %v1202, %v1201
    %v1206 = vpack.c.b16 %v1204, %v1203
    %v1210 = vsel %vm132, %v685, 0
    %1212 = vmatpush.bf16.msra.mxu0 0
    %1213 = vmatpush.bf16.msra.mxu0 0
    %1214 = vmatpush.bf16.msra.mxu0 0
    %1215 = vmatpush.bf16.msra.mxu0 0
    %1216 = vmatpush.bf16.msra.mxu0 0
    %1217 = vmatpush.bf16.msra.mxu0 0
    %1218 = vmatpush.bf16.msra.mxu0 %v1206
    %1219 = vmatpush.bf16.msra.mxu0 %v1205
    %1220 = vmatmul.bf16.gmra.mxu0 %v1210
    %v1221 = vpop.f32.mrf.mxu0
    %v1222 = vadd.f32 %v1194, %v1221
    %v1223 = vpop.f32.mrf.mxu0
    %1224 = vdwg.mxu0
    %v1225 = vpack.c.bf16 %v1163, %v1162
    %s1226 = scalar_lea.vmem %s9, 32
    %v1227 = vld [vmem:[%s1226] sm:$0xf]
    %v1228 = vld [vmem:[%s1226 + $0x4] sm:$0xf]
    %v1229 = vld [vmem:[%s1226 + $0x8] sm:$0xf]
    %v1230 = vld [vmem:[%s1226 + $0xc] sm:$0xf]
    %s1231 = scalar_lea.vmem %s11, 2
    %v1232 = vld [vmem:[%s1231] sm:$0x1]
    %v1234 = vperm.slane %v1232, 0
    %v1240 = vunpack.c.l.b16 %v1227
    %v1241 = vunpack.c.l.b16 %v1228
    %v1242 = vunpack.c.l.b16 %v1229
    %v1243 = vunpack.c.l.b16 %v1230
    %v1244 = vpack.c.b16 %v1241, %v1240
    %v1245 = vpack.c.b16 %v1243, %v1242
    %v1249 = vsel %vm132, %v1225, 0
    %1251 = vmatpush.bf16.msra.mxu0 0
    %1252 = vmatpush.bf16.msra.mxu0 0
    %1253 = vmatpush.bf16.msra.mxu0 0
    %1254 = vmatpush.bf16.msra.mxu0 0
    %1255 = vmatpush.bf16.msra.mxu0 0
    %1256 = vmatpush.bf16.msra.mxu0 0
    %1257 = vmatpush.bf16.msra.mxu0 %v1245
    %1258 = vmatpush.bf16.msra.mxu0 %v1244
    %1259 = vmatmul.bf16.gmra.mxu0 %v1249
    %v1260 = vpop.f32.mrf.mxu0
    %v1261 = vadd.f32 %v1234, %v1260
    %v1262 = vpop.f32.mrf.mxu0
    %v1263 = vadd.f32 %v1234, %v1262
    %1264 = vdwg.mxu0
    %s1265 = scalar_lea.vmem %s13, 32
    %v1266 = vld [vmem:[%s1265] sm:$0xf]
    %v1267 = vld [vmem:[%s1265 + $0x4] sm:$0xf]
    %v1268 = vld [vmem:[%s1265 + $0x8] sm:$0xf]
    %v1269 = vld [vmem:[%s1265 + $0xc] sm:$0xf]
    %s1270 = scalar_lea.vmem %s15, 2
    %v1271 = vld [vmem:[%s1270] sm:$0x1]
    %v1272 = vpack.c.bf16 %v1263, %v1261
    %1274 = vrot.lane.b32.xlu0 %v1272, 96
    %v1275 = vpop.permute.xlu0 %1274
    %v1277 = vsel %vm259, %v1272, 0
    %v1280 = vsel %vm259, %v1275, 0
    %1282 = vmatpush.bf16.xpose.msra.mxu0 0
    %1283 = vmatpush.bf16.xpose.msra.mxu0 0
    %1284 = vmatpush.bf16.xpose.msra.mxu0 0
    %1285 = vmatpush.bf16.xpose.msra.mxu0 0
    %1286 = vmatpush.bf16.xpose.msra.mxu0 0
    %1287 = vmatpush.bf16.xpose.msra.mxu0 0
    %1288 = vmatpush.bf16.xpose.msra.mxu0 0
    %1289 = vmatpush.bf16.xpose.msra.mxu0 %v1280
    %1290 = vmatmul.bf16.gmra.mxu0 %v1277
    %v1291 = vpop.f32.mrf.mxu0
    %v1292 = vadd.f32 0.0, %v1291
    %v1293 = vpop.f32.mrf.mxu0
    %v1294 = vadd.f32 0.0, %v1293
    %1295 = vdwg.mxu0
    %v1296 = vmul.f32 %v1292, 0.25
    %v1297 = vmul.f32 %v1294, 0.25
    %v1298 = vadd.f32 %v1296, %v194
    %v1299 = vadd.f32 %v1297, %v195
    %v1300 = vsel %vm259, %v1298, -inf
    %1301 = vmax.xlane.f32.xlu0 %v1300
    %v1302 = vpop.xlane.xlu0 %1301
    %v1303 = vsel %vm259, %v1299, -inf
    %1304 = vmax.xlane.f32.xlu0 %v1303
    %v1305 = vpop.xlane.xlu0 %1304
    %v1306 = vsub.f32 %v1298, %v1302
    %v1307 = vsub.f32 %v1299, %v1305
    %v1308 = vmul.f32 %v1306, 1.442695
    %v1309 = vpow.pop %v1308
    %v1310 = vmul.f32 %v1307, 1.442695
    %v1311 = vpow.pop %v1310
    %v1312 = vsel %vm259, %v1309, 0.0
    %1313 = vadd.xlane.f32.xlu0 %v1312
    %v1314 = vpop.xlane.xlu0 %1313
    %v1315 = vsel %vm259, %v1311, 0.0
    %1316 = vadd.xlane.f32.xlu0 %v1315
    %v1317 = vpop.xlane.xlu0 %1316
    %v1318 = vrcp.pop %v1314
    %v1319 = vrcp.pop %v1317
    %v1320 = vmul.f32 %v1309, %v1318
    %v1321 = vmul.f32 %v1311, %v1319
    %v1322 = vpack.c.bf16 %v1321, %v1320
    %1323 = vrot.lane.b32.xlu0 %v1272, 64
    %v1324 = vpop.permute.xlu0 %1323
    %v1327 = vsel %vm259, %v1322, 0
    %1329 = vmatpush.bf16.msra.mxu0 0
    %1330 = vmatpush.bf16.msra.mxu0 0
    %1331 = vmatpush.bf16.msra.mxu0 0
    %1332 = vmatpush.bf16.msra.mxu0 0
    %1333 = vmatpush.bf16.msra.mxu0 0
    %1334 = vmatpush.bf16.msra.mxu0 0
    %1335 = vmatpush.bf16.msra.mxu0 0
    %1336 = vmatpush.bf16.msra.mxu0 %v1324
    %1337 = vmatmul.bf16.gmra.mxu0 %v1327
    %v1338 = vpop.f32.mrf.mxu0
    %v1339 = vadd.f32 0.0, %v1338
    %v1340 = vpop.f32.mrf.mxu0
    %v1341 = vadd.f32 0.0, %v1340
    %1342 = vdwg.mxu0
    %v1343 = vpack.c.bf16 %v1341, %v1339
    %v1346 = vunpack.c.l.b16 %v1266
    %v1347 = vunpack.c.l.b16 %v1267
    %v1348 = vpack.c.b16 %v1347, %v1346
    %v1351 = vsel %vm259, %v1343, 0
    %1353 = vmatpush.bf16.msra.mxu0 0
    %1354 = vmatpush.bf16.msra.mxu0 0
    %1355 = vmatpush.bf16.msra.mxu0 0
    %1356 = vmatpush.bf16.msra.mxu0 0
    %1357 = vmatpush.bf16.msra.mxu0 0
    %1358 = vmatpush.bf16.msra.mxu0 0
    %1359 = vmatpush.bf16.msra.mxu0 0
    %1360 = vmatpush.bf16.msra.mxu0 %v1348
    %1361 = vmatmul.bf16.gmra.mxu0 %v1351
    %v1362 = vpop.f32.mrf.mxu0
    %v1363 = vadd.f32 0.0, %v1362
    %v1364 = vpop.f32.mrf.mxu0
    %v1365 = vadd.f32 0.0, %v1364
    %1366 = vdwg.mxu0
    %v1368 = vperm.slane %v1271, 0
    %v1370 = vadd.f32 %v1368, %v1363
    %v1371 = vadd.f32 %v1368, %v1365
    %1372 = vrot.lane.b32.xlu0 %v1272, 112
    %v1373 = vpop.permute.xlu0 %1372
    %1374 = vrot.lane.b32.xlu0 %v1272, 80
    %v1375 = vpop.permute.xlu0 %1374
    %v1377 = vsel %vm259, %v1373, 0
    %v1380 = vsel %vm259, %v1375, 0
    %1382 = vmatpush.bf16.xpose.msra.mxu0 0
    %1383 = vmatpush.bf16.xpose.msra.mxu0 0
    %1384 = vmatpush.bf16.xpose.msra.mxu0 0
    %1385 = vmatpush.bf16.xpose.msra.mxu0 0
    %1386 = vmatpush.bf16.xpose.msra.mxu0 0
    %1387 = vmatpush.bf16.xpose.msra.mxu0 0
    %1388 = vmatpush.bf16.xpose.msra.mxu0 0
    %1389 = vmatpush.bf16.xpose.msra.mxu0 %v1380
    %1390 = vmatmul.bf16.gmra.mxu0 %v1377
    %v1391 = vpop.f32.mrf.mxu0
    %v1392 = vadd.f32 0.0, %v1391
    %v1393 = vpop.f32.mrf.mxu0
    %v1394 = vadd.f32 0.0, %v1393
    %1395 = vdwg.mxu0
    %v1396 = vmul.f32 %v1392, 0.25
    %v1397 = vmul.f32 %v1394, 0.25
    %v1398 = vadd.f32 %v1396, %v194
    %v1399 = vadd.f32 %v1397, %v195
    %v1400 = vsel %vm259, %v1398, -inf
    %1401 = vmax.xlane.f32.xlu0 %v1400
    %v1402 = vpop.xlane.xlu0 %1401
    %v1403 = vsel %vm259, %v1399, -inf
    %1404 = vmax.xlane.f32.xlu0 %v1403
    %v1405 = vpop.xlane.xlu0 %1404
    %v1406 = vsub.f32 %v1398, %v1402
    %v1407 = vsub.f32 %v1399, %v1405
    %v1408 = vmul.f32 %v1406, 1.442695
    %v1409 = vpow.pop %v1408
    %v1410 = vmul.f32 %v1407, 1.442695
    %v1411 = vpow.pop %v1410
    %v1412 = vsel %vm259, %v1409, 0.0
    %1413 = vadd.xlane.f32.xlu0 %v1412
    %v1414 = vpop.xlane.xlu0 %1413
    %v1415 = vsel %vm259, %v1411, 0.0
    %1416 = vadd.xlane.f32.xlu0 %v1415
    %v1417 = vpop.xlane.xlu0 %1416
    %v1418 = vrcp.pop %v1414
    %v1419 = vrcp.pop %v1417
    %v1420 = vmul.f32 %v1409, %v1418
    %v1421 = vmul.f32 %v1411, %v1419
    %v1422 = vpack.c.bf16 %v1421, %v1420
    %1423 = vrot.lane.b32.xlu0 %v1272, 48
    %v1424 = vpop.permute.xlu0 %1423
    %v1427 = vsel %vm259, %v1422, 0
    %1429 = vmatpush.bf16.msra.mxu0 0
    %1430 = vmatpush.bf16.msra.mxu0 0
    %1431 = vmatpush.bf16.msra.mxu0 0
    %1432 = vmatpush.bf16.msra.mxu0 0
    %1433 = vmatpush.bf16.msra.mxu0 0
    %1434 = vmatpush.bf16.msra.mxu0 0
    %1435 = vmatpush.bf16.msra.mxu0 0
    %1436 = vmatpush.bf16.msra.mxu0 %v1424
    %1437 = vmatmul.bf16.gmra.mxu0 %v1427
    %v1438 = vpop.f32.mrf.mxu0
    %v1439 = vadd.f32 0.0, %v1438
    %v1440 = vpop.f32.mrf.mxu0
    %v1441 = vadd.f32 0.0, %v1440
    %1442 = vdwg.mxu0
    %v1443 = vpack.c.bf16 %v1441, %v1439
    %v1446 = vunpack.c.l.b16 %v1268
    %v1447 = vunpack.c.l.b16 %v1269
    %v1448 = vpack.c.b16 %v1447, %v1446
    %v1451 = vsel %vm259, %v1443, 0
    %1453 = vmatpush.bf16.msra.mxu0 0
    %1454 = vmatpush.bf16.msra.mxu0 0
    %1455 = vmatpush.bf16.msra.mxu0 0
    %1456 = vmatpush.bf16.msra.mxu0 0
    %1457 = vmatpush.bf16.msra.mxu0 0
    %1458 = vmatpush.bf16.msra.mxu0 0
    %1459 = vmatpush.bf16.msra.mxu0 0
    %1460 = vmatpush.bf16.msra.mxu0 %v1448
    %1461 = vmatmul.bf16.gmra.mxu0 %v1451
    %v1462 = vpop.f32.mrf.mxu0
    %v1463 = vadd.f32 0.0, %v1462
    %v1464 = vpop.f32.mrf.mxu0
    %v1465 = vadd.f32 0.0, %v1464
    %1466 = vdwg.mxu0
    %v1467 = vadd.f32 %v1370, %v1463
    %v1468 = vadd.f32 %v1371, %v1465
    %v1469 = vadd.f32 %v1467, %v1162
    %v1470 = vadd.f32 %v1468, %v1163
    %s1471 = scalar_lea.vmem %s17, 2
    %v1472 = vld [vmem:[%s1471] sm:$0x1]
    %s1473 = scalar_lea.vmem %s19, 2
    %v1474 = vld [vmem:[%s1473] sm:$0x1]
    %v1475 = vsel %vm132, %v1469, 0.0
    %1476 = vadd.xlane.f32.xlu0 %v1475
    %v1477 = vpop.xlane.xlu0 %1476
    %v1478 = vsel %vm132, %v1470, 0.0
    %1479 = vadd.xlane.f32.xlu0 %v1478
    %v1480 = vpop.xlane.xlu0 %1479
    %v1481 = vmul.f32 %v1477, %v145
    %v1482 = vmul.f32 %v1480, %v145
    %v1483 = vsub.f32 %v1469, %v1481
    %v1484 = vsub.f32 %v1470, %v1482
    %v1485 = vmul.f32 %v1483, %v1483
    %v1486 = vmul.f32 %v1484, %v1484
    %v1487 = vsel %vm132, %v1485, 0.0
    %1488 = vadd.xlane.f32.xlu0 %v1487
    %v1489 = vpop.xlane.xlu0 %1488
    %v1490 = vsel %vm132, %v1486, 0.0
    %1491 = vadd.xlane.f32.xlu0 %v1490
    %v1492 = vpop.xlane.xlu0 %1491
    %v1493 = vmul.f32 %v1489, %v145
    %v1494 = vmul.f32 %v1492, %v145
    %v1495 = vadd.f32 %v1493, 1e-12
    %v1496 = vadd.f32 %v1494, 1e-12
    %v1497 = vrsqrt.pop %v1495
    %v1498 = vmul.f32 %v1497, %v1495
    %v1499 = vmul.f32 %v1498, %v1497
    %v1500 = vmul.f32 0.5, %v1499
    %v1501 = vsub.f32 1.5, %v1500
    %v1502 = vmul.f32 %v1497, %v1501
    %vm1503 = vweird.f32 %v1495
    %vm1504 = vweird.f32 %v1497
    %vm1505 = vmor %vm1503, %vm1504
    %v1506 = vsel %vm1505, %v1497, %v1502
    %v1507 = vrsqrt.pop %v1496
    %v1508 = vmul.f32 %v1507, %v1496
    %v1509 = vmul.f32 %v1508, %v1507
    %v1510 = vmul.f32 0.5, %v1509
    %v1511 = vsub.f32 1.5, %v1510
    %v1512 = vmul.f32 %v1507, %v1511
    %vm1513 = vweird.f32 %v1496
    %vm1514 = vweird.f32 %v1507
    %vm1515 = vmor %vm1513, %vm1514
    %v1516 = vsel %vm1515, %v1507, %v1512
    %v1517 = vmul.f32 %v1483, %v1506
    %v1518 = vmul.f32 %v1484, %v1516
    %v1520 = vperm.slane %v1472, 0
    %v1522 = vmul.f32 %v1517, %v1520
    %v1523 = vmul.f32 %v1518, %v1520
    %v1525 = vperm.slane %v1474, 0
    %v1527 = vadd.f32 %v1522, %v1525
    %v1528 = vadd.f32 %v1523, %v1525
    %v1529 = vpack.c.bf16 %v1528, %v1527
    %s1530 = scalar_lea.vmem %s21, 32
    %v1531 = vld [vmem:[%s1530] sm:$0xf]
    %v1532 = vld [vmem:[%s1530 + $0x4] sm:$0xf]
    %v1533 = vld [vmem:[%s1530 + $0x8] sm:$0xf]
    %v1534 = vld [vmem:[%s1530 + $0xc] sm:$0xf]
    %s1535 = scalar_lea.vmem %s23, 2
    %v1536 = vld [vmem:[%s1535] sm:$0x1]
    %v1538 = vperm.slane %v1536, 0
    %v1544 = vunpack.c.l.b16 %v1531
    %v1545 = vunpack.c.l.b16 %v1532
    %v1546 = vunpack.c.l.b16 %v1533
    %v1547 = vunpack.c.l.b16 %v1534
    %v1548 = vpack.c.b16 %v1545, %v1544
    %v1549 = vpack.c.b16 %v1547, %v1546
    %v1553 = vsel %vm132, %v1529, 0
    %1555 = vmatpush.bf16.msra.mxu0 0
    %1556 = vmatpush.bf16.msra.mxu0 0
    %1557 = vmatpush.bf16.msra.mxu0 0
    %1558 = vmatpush.bf16.msra.mxu0 0
    %1559 = vmatpush.bf16.msra.mxu0 0
    %1560 = vmatpush.bf16.msra.mxu0 0
    %1561 = vmatpush.bf16.msra.mxu0 %v1549
    %1562 = vmatpush.bf16.msra.mxu0 %v1548
    %1563 = vmatmul.bf16.gmra.mxu0 %v1553
    %v1564 = vpop.f32.mrf.mxu0
    %v1565 = vadd.f32 %v1538, %v1564
    %v1566 = vpop.f32.mrf.mxu0
    %v1567 = vadd.f32 %v1538, %v1566
    %1568 = vdwg.mxu0
    %v1569 = vmul.f32 %v1565, 0.5
    %v1570 = vmul.f32 %v1567, 0.5
    %v1571 = vmul.f32 %v1565, 0.044715
    %v1572 = vmul.f32 %v1567, 0.044715
    %v1573 = vmul.f32 %v1571, %v1565
    %v1574 = vmul.f32 %v1572, %v1567
    %v1575 = vmul.f32 %v1573, %v1565
    %v1576 = vmul.f32 %v1574, %v1567
    %v1577 = vadd.f32 %v1565, %v1575
    %v1578 = vadd.f32 %v1567, %v1576
    %v1579 = vmul.f32 %v1577, 0.7978846
    %v1580 = vmul.f32 %v1578, 0.7978846
    %v1581 = vtanh.pop %v1579
    %v1582 = vtanh.pop %v1580
    %v1583 = vadd.f32 %v1581, 1.0
    %v1584 = vadd.f32 %v1582, 1.0
    %v1585 = vmul.f32 %v1569, %v1583
    %v1586 = vmul.f32 %v1570, %v1584
    %v1587 = vpack.c.bf16 %v1586, %v1585
    %s1588 = scalar_lea.vmem %s25, 64
    %v1589 = vld [vmem:[%s1588] sm:$0xf]
    %v1590 = vld [vmem:[%s1588 + $0x4] sm:$0xf]
    %v1591 = vld [vmem:[%s1588 + $0x8] sm:$0xf]
    %v1592 = vld [vmem:[%s1588 + $0xc] sm:$0xf]
    %v1593 = vld [vmem:[%s1588 + $0x10] sm:$0xf]
    %v1594 = vld [vmem:[%s1588 + $0x14] sm:$0xf]
    %v1595 = vld [vmem:[%s1588 + $0x18] sm:$0xf]
    %v1596 = vld [vmem:[%s1588 + $0x1c] sm:$0xf]
    %s1597 = scalar_lea.vmem %s27, 2
    %v1598 = vld [vmem:[%s1597] sm:$0x1]
    %v1600 = vperm.slane %v1598, 0
    %v1610 = vunpack.c.l.b16 %v1589
    %v1611 = vunpack.c.l.b16 %v1590
    %v1612 = vunpack.c.l.b16 %v1591
    %v1613 = vunpack.c.l.b16 %v1592
    %v1614 = vunpack.c.l.b16 %v1593
    %v1615 = vunpack.c.l.b16 %v1594
    %v1616 = vunpack.c.l.b16 %v1595
    %v1617 = vunpack.c.l.b16 %v1596
    %v1618 = vpack.c.b16 %v1611, %v1610
    %v1619 = vpack.c.b16 %v1613, %v1612
    %v1620 = vpack.c.b16 %v1615, %v1614
    %v1621 = vpack.c.b16 %v1617, %v1616
    %v1627 = vsel %vm604, %v1587, 0
    %1629 = vmatpush.bf16.msra.mxu0 0
    %1630 = vmatpush.bf16.msra.mxu0 0
    %1631 = vmatpush.bf16.msra.mxu0 0
    %1632 = vmatpush.bf16.msra.mxu0 0
    %1633 = vmatpush.bf16.msra.mxu0 %v1621
    %1634 = vmatpush.bf16.msra.mxu0 %v1620
    %1635 = vmatpush.bf16.msra.mxu0 %v1619
    %1636 = vmatpush.bf16.msra.mxu0 %v1618
    %1637 = vmatmul.bf16.gmra.mxu0 %v1627
    %v1638 = vpop.f32.mrf.mxu0
    %v1639 = vadd.f32 %v1600, %v1638
    %v1640 = vpop.f32.mrf.mxu0
    %v1641 = vadd.f32 %v1600, %v1640
    %1642 = vdwg.mxu0
    %v1643 = vadd.f32 %v1639, %v1527
    %v1644 = vadd.f32 %v1641, %v1528
    %s1645 = scalar_lea.vmem %s29, 2
    %v1646 = vld [vmem:[%s1645] sm:$0x1]
    %s1647 = scalar_lea.vmem %s31, 2
    %v1648 = vld [vmem:[%s1647] sm:$0x1]
    %v1649 = vsel %vm132, %v1643, 0.0
    %1650 = vadd.xlane.f32.xlu0 %v1649
    %v1651 = vpop.xlane.xlu0 %1650
    %v1652 = vsel %vm132, %v1644, 0.0
    %1653 = vadd.xlane.f32.xlu0 %v1652
    %v1654 = vpop.xlane.xlu0 %1653
    %v1655 = vmul.f32 %v1651, %v145
    %v1656 = vmul.f32 %v1654, %v145
    %v1657 = vsub.f32 %v1643, %v1655
    %v1658 = vsub.f32 %v1644, %v1656
    %v1659 = vmul.f32 %v1657, %v1657
    %v1660 = vmul.f32 %v1658, %v1658
    %v1661 = vsel %vm132, %v1659, 0.0
    %1662 = vadd.xlane.f32.xlu0 %v1661
    %v1663 = vpop.xlane.xlu0 %1662
    %v1664 = vsel %vm132, %v1660, 0.0
    %1665 = vadd.xlane.f32.xlu0 %v1664
    %v1666 = vpop.xlane.xlu0 %1665
    %v1667 = vmul.f32 %v1663, %v145
    %v1668 = vmul.f32 %v1666, %v145
    %v1669 = vadd.f32 %v1667, 1e-12
    %v1670 = vadd.f32 %v1668, 1e-12
    %v1671 = vrsqrt.pop %v1669
    %v1672 = vmul.f32 %v1671, %v1669
    %v1673 = vmul.f32 %v1672, %v1671
    %v1674 = vmul.f32 0.5, %v1673
    %v1675 = vsub.f32 1.5, %v1674
    %v1676 = vmul.f32 %v1671, %v1675
    %vm1677 = vweird.f32 %v1669
    %vm1678 = vweird.f32 %v1671
    %vm1679 = vmor %vm1677, %vm1678
    %v1680 = vsel %vm1679, %v1671, %v1676
    %v1681 = vrsqrt.pop %v1670
    %v1682 = vmul.f32 %v1681, %v1670
    %v1683 = vmul.f32 %v1682, %v1681
    %v1684 = vmul.f32 0.5, %v1683
    %v1685 = vsub.f32 1.5, %v1684
    %v1686 = vmul.f32 %v1681, %v1685
    %vm1687 = vweird.f32 %v1670
    %vm1688 = vweird.f32 %v1681
    %vm1689 = vmor %vm1687, %vm1688
    %v1690 = vsel %vm1689, %v1681, %v1686
    %v1691 = vmul.f32 %v1657, %v1680
    %v1692 = vmul.f32 %v1658, %v1690
    %v1694 = vperm.slane %v1646, 0
    %v1696 = vmul.f32 %v1691, %v1694
    %v1697 = vmul.f32 %v1692, %v1694
    %v1699 = vperm.slane %v1648, 0
    %v1701 = vadd.f32 %v1696, %v1699
    %v1702 = vadd.f32 %v1697, %v1699
    %v1704 = vrot.slane %v1702, 7
    %v1706 = vsel %vm683, %v1701, %v1704
    %v1707 = vpack.c.bf16 %v1706, %v1706
    %v1712 = vunpack.c.l.b16 %v200
    %v1713 = vunpack.c.l.b16 %v201
    %v1714 = vunpack.c.l.b16 %v202
    %v1715 = vunpack.c.l.b16 %v203
    %v1716 = vpack.c.b16 %v1713, %v1712
    %v1717 = vpack.c.b16 %v1715, %v1714
    %v1721 = vsel %vm132, %v1707, 0
    %1723 = vmatpush.bf16.msra.mxu0 0
    %1724 = vmatpush.bf16.msra.mxu0 0
    %1725 = vmatpush.bf16.msra.mxu0 0
    %1726 = vmatpush.bf16.msra.mxu0 0
    %1727 = vmatpush.bf16.msra.mxu0 0
    %1728 = vmatpush.bf16.msra.mxu0 0
    %1729 = vmatpush.bf16.msra.mxu0 %v1717
    %1730 = vmatpush.bf16.msra.mxu0 %v1716
    %1731 = vmatmul.bf16.gmra.mxu0 %v1721
    %v1732 = vpop.f32.mrf.mxu0
    %v1733 = vadd.f32 0.0, %v1732
    %v1734 = vpop.f32.mrf.mxu0
    %1735 = vdwg.mxu0
    %v1736 = vadd.f32 %v1222, %v1733
    %v1737 = vpack.c.bf16 %v1702, %v1701
    %s1738 = scalar_lea.vmem %s9, 48
    %v1739 = vld [vmem:[%s1738] sm:$0xf]
    %v1740 = vld [vmem:[%s1738 + $0x4] sm:$0xf]
    %v1741 = vld [vmem:[%s1738 + $0x8] sm:$0xf]
    %v1742 = vld [vmem:[%s1738 + $0xc] sm:$0xf]
    %s1743 = scalar_lea.vmem %s11, 3
    %v1744 = vld [vmem:[%s1743] sm:$0x1]
    %v1746 = vperm.slane %v1744, 0
    %v1752 = vunpack.c.l.b16 %v1739
    %v1753 = vunpack.c.l.b16 %v1740
    %v1754 = vunpack.c.l.b16 %v1741
    %v1755 = vunpack.c.l.b16 %v1742
    %v1756 = vpack.c.b16 %v1753, %v1752
    %v1757 = vpack.c.b16 %v1755, %v1754
    %v1761 = vsel %vm132, %v1737, 0
    %1763 = vmatpush.bf16.msra.mxu0 0
    %1764 = vmatpush.bf16.msra.mxu0 0
    %1765 = vmatpush.bf16.msra.mxu0 0
    %1766 = vmatpush.bf16.msra.mxu0 0
    %1767 = vmatpush.bf16.msra.mxu0 0
    %1768 = vmatpush.bf16.msra.mxu0 0
    %1769 = vmatpush.bf16.msra.mxu0 %v1757
    %1770 = vmatpush.bf16.msra.mxu0 %v1756
    %1771 = vmatmul.bf16.gmra.mxu0 %v1761
    %v1772 = vpop.f32.mrf.mxu0
    %v1773 = vadd.f32 %v1746, %v1772
    %v1774 = vpop.f32.mrf.mxu0
    %v1775 = vadd.f32 %v1746, %v1774
    %1776 = vdwg.mxu0
    %s1777 = scalar_lea.vmem %s13, 48
    %v1778 = vld [vmem:[%s1777] sm:$0xf]
    %v1779 = vld [vmem:[%s1777 + $0x4] sm:$0xf]
    %v1780 = vld [vmem:[%s1777 + $0x8] sm:$0xf]
    %v1781 = vld [vmem:[%s1777 + $0xc] sm:$0xf]
    %s1782 = scalar_lea.vmem %s15, 3
    %v1783 = vld [vmem:[%s1782] sm:$0x1]
    %v1784 = vpack.c.bf16 %v1775, %v1773
    %1786 = vrot.lane.b32.xlu0 %v1784, 96
    %v1787 = vpop.permute.xlu0 %1786
    %v1789 = vsel %vm259, %v1784, 0
    %v1792 = vsel %vm259, %v1787, 0
    %1794 = vmatpush.bf16.xpose.msra.mxu0 0
    %1795 = vmatpush.bf16.xpose.msra.mxu0 0
    %1796 = vmatpush.bf16.xpose.msra.mxu0 0
    %1797 = vmatpush.bf16.xpose.msra.mxu0 0
    %1798 = vmatpush.bf16.xpose.msra.mxu0 0
    %1799 = vmatpush.bf16.xpose.msra.mxu0 0
    %1800 = vmatpush.bf16.xpose.msra.mxu0 0
    %1801 = vmatpush.bf16.xpose.msra.mxu0 %v1792
    %1802 = vmatmul.bf16.gmra.mxu0 %v1789
    %v1803 = vpop.f32.mrf.mxu0
    %v1804 = vadd.f32 0.0, %v1803
    %v1805 = vpop.f32.mrf.mxu0
    %v1806 = vadd.f32 0.0, %v1805
    %1807 = vdwg.mxu0
    %v1808 = vmul.f32 %v1804, 0.25
    %v1809 = vmul.f32 %v1806, 0.25
    %v1810 = vadd.f32 %v1808, %v194
    %v1811 = vadd.f32 %v1809, %v195
    %v1812 = vsel %vm259, %v1810, -inf
    %1813 = vmax.xlane.f32.xlu0 %v1812
    %v1814 = vpop.xlane.xlu0 %1813
    %v1815 = vsel %vm259, %v1811, -inf
    %1816 = vmax.xlane.f32.xlu0 %v1815
    %v1817 = vpop.xlane.xlu0 %1816
    %v1818 = vsub.f32 %v1810, %v1814
    %v1819 = vsub.f32 %v1811, %v1817
    %v1820 = vmul.f32 %v1818, 1.442695
    %v1821 = vpow.pop %v1820
    %v1822 = vmul.f32 %v1819, 1.442695
    %v1823 = vpow.pop %v1822
    %v1824 = vsel %vm259, %v1821, 0.0
    %1825 = vadd.xlane.f32.xlu0 %v1824
    %v1826 = vpop.xlane.xlu0 %1825
    %v1827 = vsel %vm259, %v1823, 0.0
    %1828 = vadd.xlane.f32.xlu0 %v1827
    %v1829 = vpop.xlane.xlu0 %1828
    %v1830 = vrcp.pop %v1826
    %v1831 = vrcp.pop %v1829
    %v1832 = vmul.f32 %v1821, %v1830
    %v1833 = vmul.f32 %v1823, %v1831
    %v1834 = vpack.c.bf16 %v1833, %v1832
    %1835 = vrot.lane.b32.xlu0 %v1784, 64
    %v1836 = vpop.permute.xlu0 %1835
    %v1839 = vsel %vm259, %v1834, 0
    %1841 = vmatpush.bf16.msra.mxu0 0
    %1842 = vmatpush.bf16.msra.mxu0 0
    %1843 = vmatpush.bf16.msra.mxu0 0
    %1844 = vmatpush.bf16.msra.mxu0 0
    %1845 = vmatpush.bf16.msra.mxu0 0
    %1846 = vmatpush.bf16.msra.mxu0 0
    %1847 = vmatpush.bf16.msra.mxu0 0
    %1848 = vmatpush.bf16.msra.mxu0 %v1836
    %1849 = vmatmul.bf16.gmra.mxu0 %v1839
    %v1850 = vpop.f32.mrf.mxu0
    %v1851 = vadd.f32 0.0, %v1850
    %v1852 = vpop.f32.mrf.mxu0
    %v1853 = vadd.f32 0.0, %v1852
    %1854 = vdwg.mxu0
    %v1855 = vpack.c.bf16 %v1853, %v1851
    %v1858 = vunpack.c.l.b16 %v1778
    %v1859 = vunpack.c.l.b16 %v1779
    %v1860 = vpack.c.b16 %v1859, %v1858
    %v1863 = vsel %vm259, %v1855, 0
    %1865 = vmatpush.bf16.msra.mxu0 0
    %1866 = vmatpush.bf16.msra.mxu0 0
    %1867 = vmatpush.bf16.msra.mxu0 0
    %1868 = vmatpush.bf16.msra.mxu0 0
    %1869 = vmatpush.bf16.msra.mxu0 0
    %1870 = vmatpush.bf16.msra.mxu0 0
    %1871 = vmatpush.bf16.msra.mxu0 0
    %1872 = vmatpush.bf16.msra.mxu0 %v1860
    %1873 = vmatmul.bf16.gmra.mxu0 %v1863
    %v1874 = vpop.f32.mrf.mxu0
    %v1875 = vadd.f32 0.0, %v1874
    %v1876 = vpop.f32.mrf.mxu0
    %v1877 = vadd.f32 0.0, %v1876
    %1878 = vdwg.mxu0
    %v1880 = vperm.slane %v1783, 0
    %v1882 = vadd.f32 %v1880, %v1875
    %v1883 = vadd.f32 %v1880, %v1877
    %1884 = vrot.lane.b32.xlu0 %v1784, 112
    %v1885 = vpop.permute.xlu0 %1884
    %1886 = vrot.lane.b32.xlu0 %v1784, 80
    %v1887 = vpop.permute.xlu0 %1886
    %v1889 = vsel %vm259, %v1885, 0
    %v1892 = vsel %vm259, %v1887, 0
    %1894 = vmatpush.bf16.xpose.msra.mxu0 0
    %1895 = vmatpush.bf16.xpose.msra.mxu0 0
    %1896 = vmatpush.bf16.xpose.msra.mxu0 0
    %1897 = vmatpush.bf16.xpose.msra.mxu0 0
    %1898 = vmatpush.bf16.xpose.msra.mxu0 0
    %1899 = vmatpush.bf16.xpose.msra.mxu0 0
    %1900 = vmatpush.bf16.xpose.msra.mxu0 0
    %1901 = vmatpush.bf16.xpose.msra.mxu0 %v1892
    %1902 = vmatmul.bf16.gmra.mxu0 %v1889
    %v1903 = vpop.f32.mrf.mxu0
    %v1904 = vadd.f32 0.0, %v1903
    %v1905 = vpop.f32.mrf.mxu0
    %v1906 = vadd.f32 0.0, %v1905
    %1907 = vdwg.mxu0
    %v1908 = vmul.f32 %v1904, 0.25
    %v1909 = vmul.f32 %v1906, 0.25
    %v1910 = vadd.f32 %v1908, %v194
    %v1911 = vadd.f32 %v1909, %v195
    %v1912 = vsel %vm259, %v1910, -inf
    %1913 = vmax.xlane.f32.xlu0 %v1912
    %v1914 = vpop.xlane.xlu0 %1913
    %v1915 = vsel %vm259, %v1911, -inf
    %1916 = vmax.xlane.f32.xlu0 %v1915
    %v1917 = vpop.xlane.xlu0 %1916
    %v1918 = vsub.f32 %v1910, %v1914
    %v1919 = vsub.f32 %v1911, %v1917
    %v1920 = vmul.f32 %v1918, 1.442695
    %v1921 = vpow.pop %v1920
    %v1922 = vmul.f32 %v1919, 1.442695
    %v1923 = vpow.pop %v1922
    %v1924 = vsel %vm259, %v1921, 0.0
    %1925 = vadd.xlane.f32.xlu0 %v1924
    %v1926 = vpop.xlane.xlu0 %1925
    %v1927 = vsel %vm259, %v1923, 0.0
    %1928 = vadd.xlane.f32.xlu0 %v1927
    %v1929 = vpop.xlane.xlu0 %1928
    %v1930 = vrcp.pop %v1926
    %v1931 = vrcp.pop %v1929
    %v1932 = vmul.f32 %v1921, %v1930
    %v1933 = vmul.f32 %v1923, %v1931
    %v1934 = vpack.c.bf16 %v1933, %v1932
    %1935 = vrot.lane.b32.xlu0 %v1784, 48
    %v1936 = vpop.permute.xlu0 %1935
    %v1939 = vsel %vm259, %v1934, 0
    %1941 = vmatpush.bf16.msra.mxu0 0
    %1942 = vmatpush.bf16.msra.mxu0 0
    %1943 = vmatpush.bf16.msra.mxu0 0
    %1944 = vmatpush.bf16.msra.mxu0 0
    %1945 = vmatpush.bf16.msra.mxu0 0
    %1946 = vmatpush.bf16.msra.mxu0 0
    %1947 = vmatpush.bf16.msra.mxu0 0
    %1948 = vmatpush.bf16.msra.mxu0 %v1936
    %1949 = vmatmul.bf16.gmra.mxu0 %v1939
    %v1950 = vpop.f32.mrf.mxu0
    %v1951 = vadd.f32 0.0, %v1950
    %v1952 = vpop.f32.mrf.mxu0
    %v1953 = vadd.f32 0.0, %v1952
    %1954 = vdwg.mxu0
    %v1955 = vpack.c.bf16 %v1953, %v1951
    %v1958 = vunpack.c.l.b16 %v1780
    %v1959 = vunpack.c.l.b16 %v1781
    %v1960 = vpack.c.b16 %v1959, %v1958
    %v1963 = vsel %vm259, %v1955, 0
    %1965 = vmatpush.bf16.msra.mxu0 0
    %1966 = vmatpush.bf16.msra.mxu0 0
    %1967 = vmatpush.bf16.msra.mxu0 0
    %1968 = vmatpush.bf16.msra.mxu0 0
    %1969 = vmatpush.bf16.msra.mxu0 0
    %1970 = vmatpush.bf16.msra.mxu0 0
    %1971 = vmatpush.bf16.msra.mxu0 0
    %1972 = vmatpush.bf16.msra.mxu0 %v1960
    %1973 = vmatmul.bf16.gmra.mxu0 %v1963
    %v1974 = vpop.f32.mrf.mxu0
    %v1975 = vadd.f32 0.0, %v1974
    %v1976 = vpop.f32.mrf.mxu0
    %v1977 = vadd.f32 0.0, %v1976
    %1978 = vdwg.mxu0
    %v1979 = vadd.f32 %v1882, %v1975
    %v1980 = vadd.f32 %v1883, %v1977
    %v1981 = vadd.f32 %v1979, %v1701
    %v1982 = vadd.f32 %v1980, %v1702
    %s1983 = scalar_lea.vmem %s17, 3
    %v1984 = vld [vmem:[%s1983] sm:$0x1]
    %s1985 = scalar_lea.vmem %s19, 3
    %v1986 = vld [vmem:[%s1985] sm:$0x1]
    %v1987 = vsel %vm132, %v1981, 0.0
    %1988 = vadd.xlane.f32.xlu0 %v1987
    %v1989 = vpop.xlane.xlu0 %1988
    %v1990 = vsel %vm132, %v1982, 0.0
    %1991 = vadd.xlane.f32.xlu0 %v1990
    %v1992 = vpop.xlane.xlu0 %1991
    %v1993 = vmul.f32 %v1989, %v145
    %v1994 = vmul.f32 %v1992, %v145
    %v1995 = vsub.f32 %v1981, %v1993
    %v1996 = vsub.f32 %v1982, %v1994
    %v1997 = vmul.f32 %v1995, %v1995
    %v1998 = vmul.f32 %v1996, %v1996
    %v1999 = vsel %vm132, %v1997, 0.0
    %2000 = vadd.xlane.f32.xlu0 %v1999
    %v2001 = vpop.xlane.xlu0 %2000
    %v2002 = vsel %vm132, %v1998, 0.0
    %2003 = vadd.xlane.f32.xlu0 %v2002
    %v2004 = vpop.xlane.xlu0 %2003
    %v2005 = vmul.f32 %v2001, %v145
    %v2006 = vmul.f32 %v2004, %v145
    %v2007 = vadd.f32 %v2005, 1e-12
    %v2008 = vadd.f32 %v2006, 1e-12
    %v2009 = vrsqrt.pop %v2007
    %v2010 = vmul.f32 %v2009, %v2007
    %v2011 = vmul.f32 %v2010, %v2009
    %v2012 = vmul.f32 0.5, %v2011
    %v2013 = vsub.f32 1.5, %v2012
    %v2014 = vmul.f32 %v2009, %v2013
    %vm2015 = vweird.f32 %v2007
    %vm2016 = vweird.f32 %v2009
    %vm2017 = vmor %vm2015, %vm2016
    %v2018 = vsel %vm2017, %v2009, %v2014
    %v2019 = vrsqrt.pop %v2008
    %v2020 = vmul.f32 %v2019, %v2008
    %v2021 = vmul.f32 %v2020, %v2019
    %v2022 = vmul.f32 0.5, %v2021
    %v2023 = vsub.f32 1.5, %v2022
    %v2024 = vmul.f32 %v2019, %v2023
    %vm2025 = vweird.f32 %v2008
    %vm2026 = vweird.f32 %v2019
    %vm2027 = vmor %vm2025, %vm2026
    %v2028 = vsel %vm2027, %v2019, %v2024
    %v2029 = vmul.f32 %v1995, %v2018
    %v2030 = vmul.f32 %v1996, %v2028
    %v2032 = vperm.slane %v1984, 0
    %v2034 = vmul.f32 %v2029, %v2032
    %v2035 = vmul.f32 %v2030, %v2032
    %v2037 = vperm.slane %v1986, 0
    %v2039 = vadd.f32 %v2034, %v2037
    %v2040 = vadd.f32 %v2035, %v2037
    %v2041 = vpack.c.bf16 %v2040, %v2039
    %s2042 = scalar_lea.vmem %s21, 48
    %v2043 = vld [vmem:[%s2042] sm:$0xf]
    %v2044 = vld [vmem:[%s2042 + $0x4] sm:$0xf]
    %v2045 = vld [vmem:[%s2042 + $0x8] sm:$0xf]
    %v2046 = vld [vmem:[%s2042 + $0xc] sm:$0xf]
    %s2047 = scalar_lea.vmem %s23, 3
    %v2048 = vld [vmem:[%s2047] sm:$0x1]
    %v2050 = vperm.slane %v2048, 0
    %v2056 = vunpack.c.l.b16 %v2043
    %v2057 = vunpack.c.l.b16 %v2044
    %v2058 = vunpack.c.l.b16 %v2045
    %v2059 = vunpack.c.l.b16 %v2046
    %v2060 = vpack.c.b16 %v2057, %v2056
    %v2061 = vpack.c.b16 %v2059, %v2058
    %v2065 = vsel %vm132, %v2041, 0
    %2067 = vmatpush.bf16.msra.mxu0 0
    %2068 = vmatpush.bf16.msra.mxu0 0
    %2069 = vmatpush.bf16.msra.mxu0 0
    %2070 = vmatpush.bf16.msra.mxu0 0
    %2071 = vmatpush.bf16.msra.mxu0 0
    %2072 = vmatpush.bf16.msra.mxu0 0
    %2073 = vmatpush.bf16.msra.mxu0 %v2061
    %2074 = vmatpush.bf16.msra.mxu0 %v2060
    %2075 = vmatmul.bf16.gmra.mxu0 %v2065
    %v2076 = vpop.f32.mrf.mxu0
    %v2077 = vadd.f32 %v2050, %v2076
    %v2078 = vpop.f32.mrf.mxu0
    %v2079 = vadd.f32 %v2050, %v2078
    %2080 = vdwg.mxu0
    %v2081 = vmul.f32 %v2077, 0.5
    %v2082 = vmul.f32 %v2079, 0.5
    %v2083 = vmul.f32 %v2077, 0.044715
    %v2084 = vmul.f32 %v2079, 0.044715
    %v2085 = vmul.f32 %v2083, %v2077
    %v2086 = vmul.f32 %v2084, %v2079
    %v2087 = vmul.f32 %v2085, %v2077
    %v2088 = vmul.f32 %v2086, %v2079
    %v2089 = vadd.f32 %v2077, %v2087
    %v2090 = vadd.f32 %v2079, %v2088
    %v2091 = vmul.f32 %v2089, 0.7978846
    %v2092 = vmul.f32 %v2090, 0.7978846
    %v2093 = vtanh.pop %v2091
    %v2094 = vtanh.pop %v2092
    %v2095 = vadd.f32 %v2093, 1.0
    %v2096 = vadd.f32 %v2094, 1.0
    %v2097 = vmul.f32 %v2081, %v2095
    %v2098 = vmul.f32 %v2082, %v2096
    %v2099 = vpack.c.bf16 %v2098, %v2097
    %s2100 = scalar_lea.vmem %s25, 96
    %v2101 = vld [vmem:[%s2100] sm:$0xf]
    %v2102 = vld [vmem:[%s2100 + $0x4] sm:$0xf]
    %v2103 = vld [vmem:[%s2100 + $0x8] sm:$0xf]
    %v2104 = vld [vmem:[%s2100 + $0xc] sm:$0xf]
    %v2105 = vld [vmem:[%s2100 + $0x10] sm:$0xf]
    %v2106 = vld [vmem:[%s2100 + $0x14] sm:$0xf]
    %v2107 = vld [vmem:[%s2100 + $0x18] sm:$0xf]
    %v2108 = vld [vmem:[%s2100 + $0x1c] sm:$0xf]
    %s2109 = scalar_lea.vmem %s27, 3
    %v2110 = vld [vmem:[%s2109] sm:$0x1]
    %v2112 = vperm.slane %v2110, 0
    %v2122 = vunpack.c.l.b16 %v2101
    %v2123 = vunpack.c.l.b16 %v2102
    %v2124 = vunpack.c.l.b16 %v2103
    %v2125 = vunpack.c.l.b16 %v2104
    %v2126 = vunpack.c.l.b16 %v2105
    %v2127 = vunpack.c.l.b16 %v2106
    %v2128 = vunpack.c.l.b16 %v2107
    %v2129 = vunpack.c.l.b16 %v2108
    %v2130 = vpack.c.b16 %v2123, %v2122
    %v2131 = vpack.c.b16 %v2125, %v2124
    %v2132 = vpack.c.b16 %v2127, %v2126
    %v2133 = vpack.c.b16 %v2129, %v2128
    %v2139 = vsel %vm604, %v2099, 0
    %2141 = vmatpush.bf16.msra.mxu0 0
    %2142 = vmatpush.bf16.msra.mxu0 0
    %2143 = vmatpush.bf16.msra.mxu0 0
    %2144 = vmatpush.bf16.msra.mxu0 0
    %2145 = vmatpush.bf16.msra.mxu0 %v2133
    %2146 = vmatpush.bf16.msra.mxu0 %v2132
    %2147 = vmatpush.bf16.msra.mxu0 %v2131
    %2148 = vmatpush.bf16.msra.mxu0 %v2130
    %2149 = vmatmul.bf16.gmra.mxu0 %v2139
    %v2150 = vpop.f32.mrf.mxu0
    %v2151 = vadd.f32 %v2112, %v2150
    %v2152 = vpop.f32.mrf.mxu0
    %v2153 = vadd.f32 %v2112, %v2152
    %2154 = vdwg.mxu0
    %v2155 = vadd.f32 %v2151, %v2039
    %v2156 = vadd.f32 %v2153, %v2040
    %s2157 = scalar_lea.vmem %s29, 3
    %v2158 = vld [vmem:[%s2157] sm:$0x1]
    %s2159 = scalar_lea.vmem %s31, 3
    %v2160 = vld [vmem:[%s2159] sm:$0x1]
    %v2161 = vsel %vm132, %v2155, 0.0
    %2162 = vadd.xlane.f32.xlu0 %v2161
    %v2163 = vpop.xlane.xlu0 %2162
    %v2164 = vsel %vm132, %v2156, 0.0
    %2165 = vadd.xlane.f32.xlu0 %v2164
    %v2166 = vpop.xlane.xlu0 %2165
    %v2167 = vmul.f32 %v2163, %v145
    %v2168 = vmul.f32 %v2166, %v145
    %v2169 = vsub.f32 %v2155, %v2167
    %v2170 = vsub.f32 %v2156, %v2168
    %v2171 = vmul.f32 %v2169, %v2169
    %v2172 = vmul.f32 %v2170, %v2170
    %v2173 = vsel %vm132, %v2171, 0.0
    %2174 = vadd.xlane.f32.xlu0 %v2173
    %v2175 = vpop.xlane.xlu0 %2174
    %v2176 = vsel %vm132, %v2172, 0.0
    %2177 = vadd.xlane.f32.xlu0 %v2176
    %v2178 = vpop.xlane.xlu0 %2177
    %v2179 = vmul.f32 %v2175, %v145
    %v2180 = vmul.f32 %v2178, %v145
    %v2181 = vadd.f32 %v2179, 1e-12
    %v2182 = vadd.f32 %v2180, 1e-12
    %v2183 = vrsqrt.pop %v2181
    %v2184 = vmul.f32 %v2183, %v2181
    %v2185 = vmul.f32 %v2184, %v2183
    %v2186 = vmul.f32 0.5, %v2185
    %v2187 = vsub.f32 1.5, %v2186
    %v2188 = vmul.f32 %v2183, %v2187
    %vm2189 = vweird.f32 %v2181
    %vm2190 = vweird.f32 %v2183
    %vm2191 = vmor %vm2189, %vm2190
    %v2192 = vsel %vm2191, %v2183, %v2188
    %v2193 = vrsqrt.pop %v2182
    %v2194 = vmul.f32 %v2193, %v2182
    %v2195 = vmul.f32 %v2194, %v2193
    %v2196 = vmul.f32 0.5, %v2195
    %v2197 = vsub.f32 1.5, %v2196
    %v2198 = vmul.f32 %v2193, %v2197
    %vm2199 = vweird.f32 %v2182
    %vm2200 = vweird.f32 %v2193
    %vm2201 = vmor %vm2199, %vm2200
    %v2202 = vsel %vm2201, %v2193, %v2198
    %v2203 = vmul.f32 %v2169, %v2192
    %v2204 = vmul.f32 %v2170, %v2202
    %v2206 = vperm.slane %v2158, 0
    %v2208 = vmul.f32 %v2203, %v2206
    %v2209 = vmul.f32 %v2204, %v2206
    %v2211 = vperm.slane %v2160, 0
    %v2213 = vadd.f32 %v2208, %v2211
    %v2214 = vadd.f32 %v2209, %v2211
    %v2216 = vrot.slane %v2214, 7
    %v2218 = vsel %vm683, %v2213, %v2216
    %v2219 = vpack.c.bf16 %v2218, %v2218
    %v2224 = vunpack.c.l.b16 %v196
    %v2225 = vunpack.c.l.b16 %v197
    %v2226 = vunpack.c.l.b16 %v198
    %v2227 = vunpack.c.l.b16 %v199
    %v2228 = vpack.c.b16 %v2225, %v2224
    %v2229 = vpack.c.b16 %v2227, %v2226
    %v2233 = vsel %vm132, %v2219, 0
    %2235 = vmatpush.bf16.msra.mxu0 0
    %2236 = vmatpush.bf16.msra.mxu0 0
    %2237 = vmatpush.bf16.msra.mxu0 0
    %2238 = vmatpush.bf16.msra.mxu0 0
    %2239 = vmatpush.bf16.msra.mxu0 0
    %2240 = vmatpush.bf16.msra.mxu0 0
    %2241 = vmatpush.bf16.msra.mxu0 %v2229
    %2242 = vmatpush.bf16.msra.mxu0 %v2228
    %2243 = vmatmul.bf16.gmra.mxu0 %v2233
    %v2244 = vpop.f32.mrf.mxu0
    %v2245 = vadd.f32 0.0, %v2244
    %v2246 = vpop.f32.mrf.mxu0
    %2247 = vdwg.mxu0
    %v2248 = vadd.f32 %v1736, %v2245
    %v2249 = vld [vmem:[%s35] sm:$0xff]
    %v2250 = vld [vmem:[%s35 + $0x8] sm:$0xff]
    %v2251 = vld [vmem:[%s35 + $0x10] sm:$0xff]
    %v2252 = vld [vmem:[%s35 + $0x18] sm:$0xff]
    %v2253 = vld [vmem:[%s35 + $0x20] sm:$0xff]
    %v2254 = vld [vmem:[%s35 + $0x28] sm:$0xff]
    %v2255 = vld [vmem:[%s35 + $0x30] sm:$0xff]
    %v2256 = vld [vmem:[%s35 + $0x38] sm:$0xff]
    %v2257 = vpack.c.bf16 %v2250, %v2249
    %v2258 = vpack.c.bf16 %v2252, %v2251
    %v2259 = vpack.c.bf16 %v2254, %v2253
    %v2260 = vpack.c.bf16 %v2256, %v2255
    %v2261 = vld [vmem:[%s37] sm:$0xf]
    %v2262 = vld [vmem:[%s37 + $0x4] sm:$0xf]
    %v2263 = vld [vmem:[%s37 + $0x8] sm:$0xf]
    %v2264 = vld [vmem:[%s37 + $0xc] sm:$0xf]
    %v2265 = vld [vmem:[%s37 + $0x10] sm:$0xf]
    %v2266 = vld [vmem:[%s37 + $0x14] sm:$0xf]
    %v2267 = vld [vmem:[%s37 + $0x18] sm:$0x7]
    %v2268 = vld [vmem:[%s39] sm:$0x1]
    %v2270 = vperm.slane %v2268, 0
    %v2279 = vunpack.c.l.b16 %v2261
    %v2280 = vunpack.c.l.b16 %v2262
    %v2281 = vunpack.c.l.b16 %v2263
    %v2282 = vunpack.c.l.b16 %v2264
    %v2283 = vunpack.c.l.b16 %v2265
    %v2284 = vunpack.c.l.b16 %v2266
    %v2285 = vunpack.c.l.b16 %v2267
    %v2286 = vpack.c.b16 %v2280, %v2279
    %v2287 = vpack.c.b16 %v2282, %v2281
    %v2288 = vpack.c.b16 %v2284, %v2283
    %v2289 = vpack.c.b16 %v2285, %v2285
    %vm2293 = vcmask 441344
    %v2295 = vsel %vm2293, %v2257, 0
    %v2298 = vsel %vm2293, %v2258, 0
    %v2301 = vsel %vm2293, %v2259, 0
    %v2304 = vsel %vm2293, %v2260, 0
    %vm2306 = vcmask 1042432
    %v2308 = vsel %vm2306, %v2289, 0
    %2310 = vmatpush.bf16.msra.mxu0 0
    %2311 = vmatpush.bf16.msra.mxu0 0
    %2312 = vmatpush.bf16.msra.mxu0 0
    %2313 = vmatpush.bf16.msra.mxu0 0
    %2314 = vmatpush.bf16.msra.mxu0 %v2308
    %2315 = vmatpush.bf16.msra.mxu0 %v2288
    %2316 = vmatpush.bf16.msra.mxu0 %v2287
    %2317 = vmatpush.bf16.msra.mxu0 %v2286
    %2318 = vmatmul.bf16.gmra.mxu0 %v2295
    %v2319 = vpop.f32.mrf.mxu0
    %v2320 = vadd.f32 %v2270, %v2319
    %v2321 = vpop.f32.mrf.mxu0
    %v2322 = vadd.f32 %v2270, %v2321
    %2323 = vmatmul.bf16.gmra.mxu0 %v2298
    %v2324 = vpop.f32.mrf.mxu0
    %v2325 = vadd.f32 %v2270, %v2324
    %v2326 = vpop.f32.mrf.mxu0
    %v2327 = vadd.f32 %v2270, %v2326
    %2328 = vmatmul.bf16.gmra.mxu0 %v2301
    %v2329 = vpop.f32.mrf.mxu0
    %v2330 = vadd.f32 %v2270, %v2329
    %v2331 = vpop.f32.mrf.mxu0
    %v2332 = vadd.f32 %v2270, %v2331
    %2333 = vmatmul.bf16.gmra.mxu0 %v2304
    %v2334 = vpop.f32.mrf.mxu0
    %v2335 = vadd.f32 %v2270, %v2334
    %v2336 = vpop.f32.mrf.mxu0
    %v2337 = vadd.f32 %v2270, %v2336
    %2338 = vdwg.mxu0
    %v2339 = vmax.f32 %v2320, 0.0
    %v2340 = vmax.f32 %v2322, 0.0
    %v2341 = vmax.f32 %v2325, 0.0
    %v2342 = vmax.f32 %v2327, 0.0
    %v2343 = vmax.f32 %v2330, 0.0
    %v2344 = vmax.f32 %v2332, 0.0
    %v2345 = vmax.f32 %v2335, 0.0
    %v2346 = vmax.f32 %v2337, 0.0
    %v2347 = vld [vmem:[%s41] sm:$0xf]
    %v2348 = vld [vmem:[%s41 + $0x4] sm:$0xf]
    %v2349 = vld [vmem:[%s41 + $0x8] sm:$0xf]
    %v2350 = vld [vmem:[%s41 + $0xc] sm:$0xf]
    %v2351 = vld [vmem:[%s41 + $0x10] sm:$0xf]
    %v2352 = vld [vmem:[%s41 + $0x14] sm:$0xf]
    %v2353 = vld [vmem:[%s41 + $0x18] sm:$0xf]
    %v2354 = vld [vmem:[%s41 + $0x1c] sm:$0xf]
    %v2355 = vld [vmem:[%s41 + $0x20] sm:$0xf]
    %v2356 = vld [vmem:[%s41 + $0x24] sm:$0xf]
    %v2357 = vld [vmem:[%s41 + $0x28] sm:$0xf]
    %v2358 = vld [vmem:[%s41 + $0x2c] sm:$0xf]
    %v2359 = vld [vmem:[%s41 + $0x30] sm:$0xf]
    %v2360 = vld [vmem:[%s41 + $0x34] sm:$0xf]
    %v2361 = vld [vmem:[%s41 + $0x38] sm:$0xf]
    %v2362 = vld [vmem:[%s41 + $0x3c] sm:$0xf]
    %v2363 = vld [vmem:[%s41 + $0x40] sm:$0xf]
    %v2364 = vld [vmem:[%s41 + $0x44] sm:$0xf]
    %v2365 = vld [vmem:[%s41 + $0x48] sm:$0xf]
    %v2366 = vld [vmem:[%s41 + $0x4c] sm:$0xf]
    %v2367 = vld [vmem:[%s41 + $0x50] sm:$0xf]
    %v2368 = vld [vmem:[%s41 + $0x54] sm:$0xf]
    %v2369 = vld [vmem:[%s41 + $0x58] sm:$0xf]
    %v2370 = vld [vmem:[%s41 + $0x5c] sm:$0xf]
    %v2371 = vld [vmem:[%s41 + $0x60] sm:$0xf]
    %v2372 = vld [vmem:[%s41 + $0x64] sm:$0xf]
    %v2373 = vld [vmem:[%s41 + $0x68] sm:$0xf]
    %v2374 = vld [vmem:[%s41 + $0x6c] sm:$0xf]
    %v2375 = vld [vmem:[%s41 + $0x70] sm:$0xf]
    %v2376 = vld [vmem:[%s41 + $0x74] sm:$0xf]
    %v2377 = vld [vmem:[%s41 + $0x78] sm:$0xf]
    %v2378 = vld [vmem:[%s41 + $0x7c] sm:$0xf]
    %v2379 = vld [vmem:[%s41 + $0x80] sm:$0xf]
    %v2380 = vld [vmem:[%s41 + $0x84] sm:$0xf]
    %v2381 = vld [vmem:[%s41 + $0x88] sm:$0xf]
    %v2382 = vld [vmem:[%s41 + $0x8c] sm:$0xf]
    %v2383 = vld [vmem:[%s41 + $0x90] sm:$0xf]
    %v2384 = vld [vmem:[%s41 + $0x94] sm:$0xf]
    %v2385 = vld [vmem:[%s41 + $0x98] sm:$0xf]
    %v2386 = vld [vmem:[%s41 + $0x9c] sm:$0xf]
    %v2387 = vld [vmem:[%s41 + $0xa0] sm:$0xf]
    %v2388 = vld [vmem:[%s41 + $0xa4] sm:$0xf]
    %v2389 = vld [vmem:[%s41 + $0xa8] sm:$0xf]
    %v2390 = vld [vmem:[%s41 + $0xac] sm:$0xf]
    %v2391 = vld [vmem:[%s41 + $0xb0] sm:$0xf]
    %v2392 = vld [vmem:[%s41 + $0xb4] sm:$0xf]
    %v2393 = vld [vmem:[%s41 + $0xb8] sm:$0xf]
    %v2394 = vld [vmem:[%s41 + $0xbc] sm:$0xf]
    %v2395 = vld [vmem:[%s41 + $0xc0] sm:$0xf]
    %v2396 = vld [vmem:[%s41 + $0xc4] sm:$0xf]
    %v2397 = vld [vmem:[%s41 + $0xc8] sm:$0xf]
    %v2398 = vld [vmem:[%s41 + $0xcc] sm:$0xf]
    %v2399 = vld [vmem:[%s41 + $0xd0] sm:$0xf]
    %v2400 = vld [vmem:[%s41 + $0xd4] sm:$0xf]
    %v2401 = vld [vmem:[%s41 + $0xd8] sm:$0xf]
    %v2402 = vld [vmem:[%s41 + $0xdc] sm:$0xf]
    %v2403 = vld [vmem:[%s41 + $0xe0] sm:$0xf]
    %v2404 = vld [vmem:[%s41 + $0xe4] sm:$0xf]
    %v2405 = vld [vmem:[%s41 + $0xe8] sm:$0xf]
    %v2406 = vld [vmem:[%s41 + $0xec] sm:$0xf]
    %v2407 = vld [vmem:[%s41 + $0xf0] sm:$0xf]
    %v2408 = vld [vmem:[%s41 + $0xf4] sm:$0xf]
    %v2409 = vld [vmem:[%s41 + $0xf8] sm:$0xf]
    %v2410 = vld [vmem:[%s41 + $0xfc] sm:$0xf]
    %v2411 = vld [vmem:[%s41 + $0x100] sm:$0xf]
    %v2412 = vld [vmem:[%s41 + $0x104] sm:$0xf]
    %v2413 = vld [vmem:[%s41 + $0x108] sm:$0xf]
    %v2414 = vld [vmem:[%s41 + $0x10c] sm:$0xf]
    %v2415 = vld [vmem:[%s41 + $0x110] sm:$0xf]
    %v2416 = vld [vmem:[%s41 + $0x114] sm:$0xf]
    %v2417 = vld [vmem:[%s41 + $0x118] sm:$0xf]
    %v2418 = vld [vmem:[%s41 + $0x11c] sm:$0xf]
    %v2419 = vpack.c.bf16 %v2340, %v2339
    %v2420 = vpack.c.bf16 %v2342, %v2341
    %v2421 = vpack.c.bf16 %v2344, %v2343
    %v2422 = vpack.c.bf16 %v2346, %v2345
    %v2495 = vunpack.c.l.b16 %v2347
    %v2496 = vunpack.c.l.b16 %v2348
    %v2497 = vunpack.c.l.b16 %v2349
    %v2498 = vunpack.c.l.b16 %v2350
    %v2499 = vunpack.c.l.b16 %v2351
    %v2500 = vunpack.c.l.b16 %v2352
    %v2501 = vunpack.c.l.b16 %v2353
    %v2502 = vunpack.c.l.b16 %v2354
    %v2503 = vunpack.c.l.b16 %v2355
    %v2504 = vunpack.c.l.b16 %v2356
    %v2505 = vunpack.c.l.b16 %v2357
    %v2506 = vunpack.c.l.b16 %v2358
    %v2507 = vunpack.c.l.b16 %v2359
    %v2508 = vunpack.c.l.b16 %v2360
    %v2509 = vunpack.c.l.b16 %v2361
    %v2510 = vunpack.c.l.b16 %v2362
    %v2511 = vunpack.c.l.b16 %v2363
    %v2512 = vunpack.c.l.b16 %v2364
    %v2513 = vunpack.c.l.b16 %v2365
    %v2514 = vunpack.c.l.b16 %v2366
    %v2515 = vunpack.c.l.b16 %v2367
    %v2516 = vunpack.c.l.b16 %v2368
    %v2517 = vunpack.c.l.b16 %v2369
    %v2518 = vunpack.c.l.b16 %v2370
    %v2519 = vunpack.c.l.b16 %v2371
    %v2520 = vunpack.c.l.b16 %v2372
    %v2521 = vunpack.c.l.b16 %v2373
    %v2522 = vunpack.c.l.b16 %v2374
    %v2523 = vunpack.c.l.b16 %v2375
    %v2524 = vunpack.c.l.b16 %v2376
    %v2525 = vunpack.c.l.b16 %v2377
    %v2526 = vunpack.c.l.b16 %v2378
    %v2527 = vunpack.c.l.b16 %v2379
    %v2528 = vunpack.c.l.b16 %v2380
    %v2529 = vunpack.c.l.b16 %v2381
    %v2530 = vunpack.c.l.b16 %v2382
    %v2531 = vunpack.c.l.b16 %v2383
    %v2532 = vunpack.c.l.b16 %v2384
    %v2533 = vunpack.c.l.b16 %v2385
    %v2534 = vunpack.c.l.b16 %v2386
    %v2535 = vunpack.c.l.b16 %v2387
    %v2536 = vunpack.c.l.b16 %v2388
    %v2537 = vunpack.c.l.b16 %v2389
    %v2538 = vunpack.c.l.b16 %v2390
    %v2539 = vunpack.c.l.b16 %v2391
    %v2540 = vunpack.c.l.b16 %v2392
    %v2541 = vunpack.c.l.b16 %v2393
    %v2542 = vunpack.c.l.b16 %v2394
    %v2543 = vunpack.c.l.b16 %v2395
    %v2544 = vunpack.c.l.b16 %v2396
    %v2545 = vunpack.c.l.b16 %v2397
    %v2546 = vunpack.c.l.b16 %v2398
    %v2547 = vunpack.c.l.b16 %v2399
    %v2548 = vunpack.c.l.b16 %v2400
    %v2549 = vunpack.c.l.b16 %v2401
    %v2550 = vunpack.c.l.b16 %v2402
    %v2551 = vunpack.c.l.b16 %v2403
    %v2552 = vunpack.c.l.b16 %v2404
    %v2553 = vunpack.c.l.b16 %v2405
    %v2554 = vunpack.c.l.b16 %v2406
    %v2555 = vunpack.c.l.b16 %v2407
    %v2556 = vunpack.c.l.b16 %v2408
    %v2557 = vunpack.c.l.b16 %v2409
    %v2558 = vunpack.c.l.b16 %v2410
    %v2559 = vunpack.c.l.b16 %v2411
    %v2560 = vunpack.c.l.b16 %v2412
    %v2561 = vunpack.c.l.b16 %v2413
    %v2562 = vunpack.c.l.b16 %v2414
    %v2563 = vunpack.c.l.b16 %v2415
    %v2564 = vunpack.c.l.b16 %v2416
    %v2565 = vunpack.c.l.b16 %v2417
    %v2566 = vunpack.c.l.b16 %v2418
    %v2567 = vpack.c.b16 %v2496, %v2495
    %v2568 = vpack.c.b16 %v2498, %v2497
    %v2569 = vpack.c.b16 %v2500, %v2499
    %v2570 = vpack.c.b16 %v2502, %v2501
    %v2571 = vpack.c.b16 %v2504, %v2503
    %v2572 = vpack.c.b16 %v2506, %v2505
    %v2573 = vpack.c.b16 %v2508, %v2507
    %v2574 = vpack.c.b16 %v2510, %v2509
    %v2575 = vpack.c.b16 %v2512, %v2511
    %v2576 = vpack.c.b16 %v2514, %v2513
    %v2577 = vpack.c.b16 %v2516, %v2515
    %v2578 = vpack.c.b16 %v2518, %v2517
    %v2579 = vpack.c.b16 %v2520, %v2519
    %v2580 = vpack.c.b16 %v2522, %v2521
    %v2581 = vpack.c.b16 %v2524, %v2523
    %v2582 = vpack.c.b16 %v2526, %v2525
    %v2583 = vpack.c.b16 %v2528, %v2527
    %v2584 = vpack.c.b16 %v2530, %v2529
    %v2585 = vpack.c.b16 %v2532, %v2531
    %v2586 = vpack.c.b16 %v2534, %v2533
    %v2587 = vpack.c.b16 %v2536, %v2535
    %v2588 = vpack.c.b16 %v2538, %v2537
    %v2589 = vpack.c.b16 %v2540, %v2539
    %v2590 = vpack.c.b16 %v2542, %v2541
    %v2591 = vpack.c.b16 %v2544, %v2543
    %v2592 = vpack.c.b16 %v2546, %v2545
    %v2593 = vpack.c.b16 %v2548, %v2547
    %v2594 = vpack.c.b16 %v2550, %v2549
    %v2595 = vpack.c.b16 %v2552, %v2551
    %v2596 = vpack.c.b16 %v2554, %v2553
    %v2597 = vpack.c.b16 %v2556, %v2555
    %v2598 = vpack.c.b16 %v2558, %v2557
    %v2599 = vpack.c.b16 %v2560, %v2559
    %v2600 = vpack.c.b16 %v2562, %v2561
    %v2601 = vpack.c.b16 %v2564, %v2563
    %v2602 = vpack.c.b16 %v2566, %v2565
    %v2604 = vsel %vm604, %v2567, 0
    %v2607 = vsel %vm604, %v2568, 0
    %v2610 = vsel %vm604, %v2569, 0
    %v2613 = vsel %vm604, %v2570, 0
    %v2616 = vsel %vm604, %v2571, 0
    %v2619 = vsel %vm604, %v2572, 0
    %v2622 = vsel %vm604, %v2573, 0
    %v2625 = vsel %vm604, %v2574, 0
    %v2628 = vsel %vm604, %v2575, 0
    %v2631 = vsel %vm604, %v2576, 0
    %v2634 = vsel %vm604, %v2577, 0
    %v2637 = vsel %vm604, %v2578, 0
    %v2640 = vsel %vm604, %v2579, 0
    %v2643 = vsel %vm604, %v2580, 0
    %v2646 = vsel %vm604, %v2581, 0
    %v2649 = vsel %vm604, %v2582, 0
    %v2652 = vsel %vm604, %v2583, 0
    %v2655 = vsel %vm604, %v2584, 0
    %v2658 = vsel %vm604, %v2585, 0
    %v2661 = vsel %vm604, %v2586, 0
    %v2664 = vsel %vm604, %v2587, 0
    %v2667 = vsel %vm604, %v2588, 0
    %v2670 = vsel %vm604, %v2589, 0
    %v2673 = vsel %vm604, %v2590, 0
    %v2676 = vsel %vm604, %v2591, 0
    %v2679 = vsel %vm604, %v2592, 0
    %v2682 = vsel %vm604, %v2593, 0
    %v2685 = vsel %vm604, %v2594, 0
    %v2688 = vsel %vm604, %v2595, 0
    %v2691 = vsel %vm604, %v2596, 0
    %v2694 = vsel %vm604, %v2597, 0
    %v2697 = vsel %vm604, %v2598, 0
    %v2700 = vsel %vm604, %v2599, 0
    %v2703 = vsel %vm604, %v2600, 0
    %v2706 = vsel %vm604, %v2601, 0
    %v2709 = vsel %vm604, %v2602, 0
    %2711 = vmatpush.bf16.msra.mxu0 0
    %2712 = vmatpush.bf16.msra.mxu0 0
    %2713 = vmatpush.bf16.msra.mxu0 0
    %2714 = vmatpush.bf16.msra.mxu0 0
    %2715 = vmatpush.bf16.msra.mxu0 %v2422
    %2716 = vmatpush.bf16.msra.mxu0 %v2421
    %2717 = vmatpush.bf16.msra.mxu0 %v2420
    %2718 = vmatpush.bf16.msra.mxu0 %v2419
    %2719 = vmatmul.bf16.gmra.mxu0 %v2604
    %v2720 = vpop.f32.mrf.mxu0
    %v2721 = vadd.f32 0.0, %v2720
    %v2722 = vpop.f32.mrf.mxu0
    %v2723 = vadd.f32 0.0, %v2722
    %2724 = vmatmul.bf16.gmra.mxu0 %v2607
    %v2725 = vpop.f32.mrf.mxu0
    %v2726 = vadd.f32 0.0, %v2725
    %v2727 = vpop.f32.mrf.mxu0
    %v2728 = vadd.f32 0.0, %v2727
    %2729 = vmatmul.bf16.gmra.mxu0 %v2610
    %v2730 = vpop.f32.mrf.mxu0
    %v2731 = vadd.f32 0.0, %v2730
    %v2732 = vpop.f32.mrf.mxu0
    %v2733 = vadd.f32 0.0, %v2732
    %2734 = vmatmul.bf16.gmra.mxu0 %v2613
    %v2735 = vpop.f32.mrf.mxu0
    %v2736 = vadd.f32 0.0, %v2735
    %v2737 = vpop.f32.mrf.mxu0
    %v2738 = vadd.f32 0.0, %v2737
    %2739 = vmatmul.bf16.gmra.mxu0 %v2616
    %v2740 = vpop.f32.mrf.mxu0
    %v2741 = vadd.f32 0.0, %v2740
    %v2742 = vpop.f32.mrf.mxu0
    %v2743 = vadd.f32 0.0, %v2742
    %2744 = vmatmul.bf16.gmra.mxu0 %v2619
    %v2745 = vpop.f32.mrf.mxu0
    %v2746 = vadd.f32 0.0, %v2745
    %v2747 = vpop.f32.mrf.mxu0
    %v2748 = vadd.f32 0.0, %v2747
    %2749 = vmatmul.bf16.gmra.mxu0 %v2622
    %v2750 = vpop.f32.mrf.mxu0
    %v2751 = vadd.f32 0.0, %v2750
    %v2752 = vpop.f32.mrf.mxu0
    %v2753 = vadd.f32 0.0, %v2752
    %2754 = vmatmul.bf16.gmra.mxu0 %v2625
    %v2755 = vpop.f32.mrf.mxu0
    %v2756 = vadd.f32 0.0, %v2755
    %v2757 = vpop.f32.mrf.mxu0
    %v2758 = vadd.f32 0.0, %v2757
    %2759 = vmatmul.bf16.gmra.mxu0 %v2628
    %v2760 = vpop.f32.mrf.mxu0
    %v2761 = vadd.f32 0.0, %v2760
    %v2762 = vpop.f32.mrf.mxu0
    %v2763 = vadd.f32 0.0, %v2762
    %2764 = vmatmul.bf16.gmra.mxu0 %v2631
    %v2765 = vpop.f32.mrf.mxu0
    %v2766 = vadd.f32 0.0, %v2765
    %v2767 = vpop.f32.mrf.mxu0
    %v2768 = vadd.f32 0.0, %v2767
    %2769 = vmatmul.bf16.gmra.mxu0 %v2634
    %v2770 = vpop.f32.mrf.mxu0
    %v2771 = vadd.f32 0.0, %v2770
    %v2772 = vpop.f32.mrf.mxu0
    %v2773 = vadd.f32 0.0, %v2772
    %2774 = vmatmul.bf16.gmra.mxu0 %v2637
    %v2775 = vpop.f32.mrf.mxu0
    %v2776 = vadd.f32 0.0, %v2775
    %v2777 = vpop.f32.mrf.mxu0
    %v2778 = vadd.f32 0.0, %v2777
    %2779 = vmatmul.bf16.gmra.mxu0 %v2640
    %v2780 = vpop.f32.mrf.mxu0
    %v2781 = vadd.f32 0.0, %v2780
    %v2782 = vpop.f32.mrf.mxu0
    %v2783 = vadd.f32 0.0, %v2782
    %2784 = vmatmul.bf16.gmra.mxu0 %v2643
    %v2785 = vpop.f32.mrf.mxu0
    %v2786 = vadd.f32 0.0, %v2785
    %v2787 = vpop.f32.mrf.mxu0
    %v2788 = vadd.f32 0.0, %v2787
    %2789 = vmatmul.bf16.gmra.mxu0 %v2646
    %v2790 = vpop.f32.mrf.mxu0
    %v2791 = vadd.f32 0.0, %v2790
    %v2792 = vpop.f32.mrf.mxu0
    %v2793 = vadd.f32 0.0, %v2792
    %2794 = vmatmul.bf16.gmra.mxu0 %v2649
    %v2795 = vpop.f32.mrf.mxu0
    %v2796 = vadd.f32 0.0, %v2795
    %v2797 = vpop.f32.mrf.mxu0
    %v2798 = vadd.f32 0.0, %v2797
    %2799 = vmatmul.bf16.gmra.mxu0 %v2652
    %v2800 = vpop.f32.mrf.mxu0
    %v2801 = vadd.f32 0.0, %v2800
    %v2802 = vpop.f32.mrf.mxu0
    %v2803 = vadd.f32 0.0, %v2802
    %2804 = vmatmul.bf16.gmra.mxu0 %v2655
    %v2805 = vpop.f32.mrf.mxu0
    %v2806 = vadd.f32 0.0, %v2805
    %v2807 = vpop.f32.mrf.mxu0
    %v2808 = vadd.f32 0.0, %v2807
    %2809 = vmatmul.bf16.gmra.mxu0 %v2658
    %v2810 = vpop.f32.mrf.mxu0
    %v2811 = vadd.f32 0.0, %v2810
    %v2812 = vpop.f32.mrf.mxu0
    %v2813 = vadd.f32 0.0, %v2812
    %2814 = vmatmul.bf16.gmra.mxu0 %v2661
    %v2815 = vpop.f32.mrf.mxu0
    %v2816 = vadd.f32 0.0, %v2815
    %v2817 = vpop.f32.mrf.mxu0
    %v2818 = vadd.f32 0.0, %v2817
    %2819 = vmatmul.bf16.gmra.mxu0 %v2664
    %v2820 = vpop.f32.mrf.mxu0
    %v2821 = vadd.f32 0.0, %v2820
    %v2822 = vpop.f32.mrf.mxu0
    %v2823 = vadd.f32 0.0, %v2822
    %2824 = vmatmul.bf16.gmra.mxu0 %v2667
    %v2825 = vpop.f32.mrf.mxu0
    %v2826 = vadd.f32 0.0, %v2825
    %v2827 = vpop.f32.mrf.mxu0
    %v2828 = vadd.f32 0.0, %v2827
    %2829 = vmatmul.bf16.gmra.mxu0 %v2670
    %v2830 = vpop.f32.mrf.mxu0
    %v2831 = vadd.f32 0.0, %v2830
    %v2832 = vpop.f32.mrf.mxu0
    %v2833 = vadd.f32 0.0, %v2832
    %2834 = vmatmul.bf16.gmra.mxu0 %v2673
    %v2835 = vpop.f32.mrf.mxu0
    %v2836 = vadd.f32 0.0, %v2835
    %v2837 = vpop.f32.mrf.mxu0
    %v2838 = vadd.f32 0.0, %v2837
    %2839 = vmatmul.bf16.gmra.mxu0 %v2676
    %v2840 = vpop.f32.mrf.mxu0
    %v2841 = vadd.f32 0.0, %v2840
    %v2842 = vpop.f32.mrf.mxu0
    %v2843 = vadd.f32 0.0, %v2842
    %2844 = vmatmul.bf16.gmra.mxu0 %v2679
    %v2845 = vpop.f32.mrf.mxu0
    %v2846 = vadd.f32 0.0, %v2845
    %v2847 = vpop.f32.mrf.mxu0
    %v2848 = vadd.f32 0.0, %v2847
    %2849 = vmatmul.bf16.gmra.mxu0 %v2682
    %v2850 = vpop.f32.mrf.mxu0
    %v2851 = vadd.f32 0.0, %v2850
    %v2852 = vpop.f32.mrf.mxu0
    %v2853 = vadd.f32 0.0, %v2852
    %2854 = vmatmul.bf16.gmra.mxu0 %v2685
    %v2855 = vpop.f32.mrf.mxu0
    %v2856 = vadd.f32 0.0, %v2855
    %v2857 = vpop.f32.mrf.mxu0
    %v2858 = vadd.f32 0.0, %v2857
    %2859 = vmatmul.bf16.gmra.mxu0 %v2688
    %v2860 = vpop.f32.mrf.mxu0
    %v2861 = vadd.f32 0.0, %v2860
    %v2862 = vpop.f32.mrf.mxu0
    %v2863 = vadd.f32 0.0, %v2862
    %2864 = vmatmul.bf16.gmra.mxu0 %v2691
    %v2865 = vpop.f32.mrf.mxu0
    %v2866 = vadd.f32 0.0, %v2865
    %v2867 = vpop.f32.mrf.mxu0
    %v2868 = vadd.f32 0.0, %v2867
    %2869 = vmatmul.bf16.gmra.mxu0 %v2694
    %v2870 = vpop.f32.mrf.mxu0
    %v2871 = vadd.f32 0.0, %v2870
    %v2872 = vpop.f32.mrf.mxu0
    %v2873 = vadd.f32 0.0, %v2872
    %2874 = vmatmul.bf16.gmra.mxu0 %v2697
    %v2875 = vpop.f32.mrf.mxu0
    %v2876 = vadd.f32 0.0, %v2875
    %v2877 = vpop.f32.mrf.mxu0
    %v2878 = vadd.f32 0.0, %v2877
    %2879 = vmatmul.bf16.gmra.mxu0 %v2700
    %v2880 = vpop.f32.mrf.mxu0
    %v2881 = vadd.f32 0.0, %v2880
    %v2882 = vpop.f32.mrf.mxu0
    %v2883 = vadd.f32 0.0, %v2882
    %2884 = vmatmul.bf16.gmra.mxu0 %v2703
    %v2885 = vpop.f32.mrf.mxu0
    %v2886 = vadd.f32 0.0, %v2885
    %v2887 = vpop.f32.mrf.mxu0
    %v2888 = vadd.f32 0.0, %v2887
    %2889 = vmatmul.bf16.gmra.mxu0 %v2706
    %v2890 = vpop.f32.mrf.mxu0
    %v2891 = vadd.f32 0.0, %v2890
    %v2892 = vpop.f32.mrf.mxu0
    %v2893 = vadd.f32 0.0, %v2892
    %2894 = vmatmul.bf16.gmra.mxu0 %v2709
    %v2895 = vpop.f32.mrf.mxu0
    %v2896 = vadd.f32 0.0, %v2895
    %v2897 = vpop.f32.mrf.mxu0
    %v2898 = vadd.f32 0.0, %v2897
    %2899 = vdwg.mxu0
    %v2900 = vpack.c.bf16 %v2723, %v2721
    %v2901 = vpack.c.bf16 %v2728, %v2726
    %v2902 = vpack.c.bf16 %v2733, %v2731
    %v2903 = vpack.c.bf16 %v2738, %v2736
    %v2904 = vld [vmem:[%s43] sm:$0xf]
    %v2905 = vld [vmem:[%s43 + $0x4] sm:$0xf]
    %v2906 = vld [vmem:[%s43 + $0x8] sm:$0xf]
    %v2907 = vld [vmem:[%s43 + $0xc] sm:$0xf]
    %v2908 = vpack.c.bf16 %v2743, %v2741
    %v2909 = vpack.c.bf16 %v2748, %v2746
    %v2910 = vpack.c.bf16 %v2753, %v2751
    %v2911 = vpack.c.bf16 %v2758, %v2756
    %s2912 = scalar_lea.vmem %s43, 16
    %v2913 = vld [vmem:[%s2912] sm:$0xf]
    %v2914 = vld [vmem:[%s2912 + $0x4] sm:$0xf]
    %v2915 = vld [vmem:[%s2912 + $0x8] sm:$0xf]
    %v2916 = vld [vmem:[%s2912 + $0xc] sm:$0xf]
    %v2921 = vunpack.c.l.b16 %v2913
    %v2922 = vunpack.c.l.b16 %v2914
    %v2923 = vunpack.c.l.b16 %v2915
    %v2924 = vunpack.c.l.b16 %v2916
    %v2925 = vpack.c.b16 %v2922, %v2921
    %v2926 = vpack.c.b16 %v2924, %v2923
    %v2930 = vsel %vm132, %v2908, 0
    %v2933 = vsel %vm132, %v2909, 0
    %v2936 = vsel %vm132, %v2910, 0
    %v2939 = vsel %vm132, %v2911, 0
    %2941 = vmatpush.bf16.msra.mxu0 0
    %2942 = vmatpush.bf16.msra.mxu0 0
    %2943 = vmatpush.bf16.msra.mxu0 0
    %2944 = vmatpush.bf16.msra.mxu0 0
    %2945 = vmatpush.bf16.msra.mxu0 0
    %2946 = vmatpush.bf16.msra.mxu0 0
    %2947 = vmatpush.bf16.msra.mxu0 %v2926
    %2948 = vmatpush.bf16.msra.mxu0 %v2925
    %2949 = vmatmul.bf16.gmra.mxu0 %v2930
    %v2950 = vpop.f32.mrf.mxu0
    %v2951 = vadd.f32 0.0, %v2950
    %v2952 = vpop.f32.mrf.mxu0
    %v2953 = vadd.f32 0.0, %v2952
    %2954 = vmatmul.bf16.gmra.mxu0 %v2933
    %v2955 = vpop.f32.mrf.mxu0
    %v2956 = vadd.f32 0.0, %v2955
    %v2957 = vpop.f32.mrf.mxu0
    %v2958 = vadd.f32 0.0, %v2957
    %2959 = vmatmul.bf16.gmra.mxu0 %v2936
    %v2960 = vpop.f32.mrf.mxu0
    %v2961 = vadd.f32 0.0, %v2960
    %v2962 = vpop.f32.mrf.mxu0
    %v2963 = vadd.f32 0.0, %v2962
    %2964 = vmatmul.bf16.gmra.mxu0 %v2939
    %v2965 = vpop.f32.mrf.mxu0
    %v2966 = vadd.f32 0.0, %v2965
    %v2967 = vpop.f32.mrf.mxu0
    %v2968 = vadd.f32 0.0, %v2967
    %2969 = vdwg.mxu0
    %v2974 = vunpack.c.l.b16 %v2904
    %v2975 = vunpack.c.l.b16 %v2905
    %v2976 = vunpack.c.l.b16 %v2906
    %v2977 = vunpack.c.l.b16 %v2907
    %v2978 = vpack.c.b16 %v2975, %v2974
    %v2979 = vpack.c.b16 %v2977, %v2976
    %v2983 = vsel %vm132, %v2900, 0
    %v2986 = vsel %vm132, %v2901, 0
    %v2989 = vsel %vm132, %v2902, 0
    %v2992 = vsel %vm132, %v2903, 0
    %2994 = vmatpush.bf16.msra.mxu0 0
    %2995 = vmatpush.bf16.msra.mxu0 0
    %2996 = vmatpush.bf16.msra.mxu0 0
    %2997 = vmatpush.bf16.msra.mxu0 0
    %2998 = vmatpush.bf16.msra.mxu0 0
    %2999 = vmatpush.bf16.msra.mxu0 0
    %3000 = vmatpush.bf16.msra.mxu0 %v2979
    %3001 = vmatpush.bf16.msra.mxu0 %v2978
    %3002 = vmatmul.bf16.gmra.mxu0 %v2983
    %v3003 = vpop.f32.mrf.mxu0
    %v3004 = vadd.f32 %v2951, %v3003
    %v3005 = vpop.f32.mrf.mxu0
    %v3006 = vadd.f32 %v2953, %v3005
    %3007 = vmatmul.bf16.gmra.mxu0 %v2986
    %v3008 = vpop.f32.mrf.mxu0
    %v3009 = vadd.f32 %v2956, %v3008
    %v3010 = vpop.f32.mrf.mxu0
    %v3011 = vadd.f32 %v2958, %v3010
    %3012 = vmatmul.bf16.gmra.mxu0 %v2989
    %v3013 = vpop.f32.mrf.mxu0
    %v3014 = vadd.f32 %v2961, %v3013
    %v3015 = vpop.f32.mrf.mxu0
    %v3016 = vadd.f32 %v2963, %v3015
    %3017 = vmatmul.bf16.gmra.mxu0 %v2992
    %v3018 = vpop.f32.mrf.mxu0
    %v3019 = vadd.f32 %v2966, %v3018
    %v3020 = vpop.f32.mrf.mxu0
    %v3021 = vadd.f32 %v2968, %v3020
    %3022 = vdwg.mxu0
    %v3023 = vpack.c.bf16 %v2763, %v2761
    %v3024 = vpack.c.bf16 %v2768, %v2766
    %v3025 = vpack.c.bf16 %v2773, %v2771
    %v3026 = vpack.c.bf16 %v2778, %v2776
    %s3027 = scalar_lea.vmem %s43, 32
    %v3028 = vld [vmem:[%s3027] sm:$0xf]
    %v3029 = vld [vmem:[%s3027 + $0x4] sm:$0xf]
    %v3030 = vld [vmem:[%s3027 + $0x8] sm:$0xf]
    %v3031 = vld [vmem:[%s3027 + $0xc] sm:$0xf]
    %v3036 = vunpack.c.l.b16 %v3028
    %v3037 = vunpack.c.l.b16 %v3029
    %v3038 = vunpack.c.l.b16 %v3030
    %v3039 = vunpack.c.l.b16 %v3031
    %v3040 = vpack.c.b16 %v3037, %v3036
    %v3041 = vpack.c.b16 %v3039, %v3038
    %v3045 = vsel %vm132, %v3023, 0
    %v3048 = vsel %vm132, %v3024, 0
    %v3051 = vsel %vm132, %v3025, 0
    %v3054 = vsel %vm132, %v3026, 0
    %3056 = vmatpush.bf16.msra.mxu0 0
    %3057 = vmatpush.bf16.msra.mxu0 0
    %3058 = vmatpush.bf16.msra.mxu0 0
    %3059 = vmatpush.bf16.msra.mxu0 0
    %3060 = vmatpush.bf16.msra.mxu0 0
    %3061 = vmatpush.bf16.msra.mxu0 0
    %3062 = vmatpush.bf16.msra.mxu0 %v3041
    %3063 = vmatpush.bf16.msra.mxu0 %v3040
    %3064 = vmatmul.bf16.gmra.mxu0 %v3045
    %v3065 = vpop.f32.mrf.mxu0
    %v3066 = vadd.f32 0.0, %v3065
    %v3067 = vpop.f32.mrf.mxu0
    %v3068 = vadd.f32 0.0, %v3067
    %3069 = vmatmul.bf16.gmra.mxu0 %v3048
    %v3070 = vpop.f32.mrf.mxu0
    %v3071 = vadd.f32 0.0, %v3070
    %v3072 = vpop.f32.mrf.mxu0
    %v3073 = vadd.f32 0.0, %v3072
    %3074 = vmatmul.bf16.gmra.mxu0 %v3051
    %v3075 = vpop.f32.mrf.mxu0
    %v3076 = vadd.f32 0.0, %v3075
    %v3077 = vpop.f32.mrf.mxu0
    %v3078 = vadd.f32 0.0, %v3077
    %3079 = vmatmul.bf16.gmra.mxu0 %v3054
    %v3080 = vpop.f32.mrf.mxu0
    %v3081 = vadd.f32 0.0, %v3080
    %v3082 = vpop.f32.mrf.mxu0
    %v3083 = vadd.f32 0.0, %v3082
    %3084 = vdwg.mxu0
    %v3085 = vadd.f32 %v3004, %v3066
    %v3086 = vadd.f32 %v3006, %v3068
    %v3087 = vadd.f32 %v3009, %v3071
    %v3088 = vadd.f32 %v3011, %v3073
    %v3089 = vadd.f32 %v3014, %v3076
    %v3090 = vadd.f32 %v3016, %v3078
    %v3091 = vadd.f32 %v3019, %v3081
    %v3092 = vadd.f32 %v3021, %v3083
    %v3093 = vpack.c.bf16 %v2783, %v2781
    %v3094 = vpack.c.bf16 %v2788, %v2786
    %v3095 = vpack.c.bf16 %v2793, %v2791
    %v3096 = vpack.c.bf16 %v2798, %v2796
    %s3097 = scalar_lea.vmem %s43, 48
    %v3098 = vld [vmem:[%s3097] sm:$0xf]
    %v3099 = vld [vmem:[%s3097 + $0x4] sm:$0xf]
    %v3100 = vld [vmem:[%s3097 + $0x8] sm:$0xf]
    %v3101 = vld [vmem:[%s3097 + $0xc] sm:$0xf]
    %v3106 = vunpack.c.l.b16 %v3098
    %v3107 = vunpack.c.l.b16 %v3099
    %v3108 = vunpack.c.l.b16 %v3100
    %v3109 = vunpack.c.l.b16 %v3101
    %v3110 = vpack.c.b16 %v3107, %v3106
    %v3111 = vpack.c.b16 %v3109, %v3108
    %v3115 = vsel %vm132, %v3093, 0
    %v3118 = vsel %vm132, %v3094, 0
    %v3121 = vsel %vm132, %v3095, 0
    %v3124 = vsel %vm132, %v3096, 0
    %3126 = vmatpush.bf16.msra.mxu0 0
    %3127 = vmatpush.bf16.msra.mxu0 0
    %3128 = vmatpush.bf16.msra.mxu0 0
    %3129 = vmatpush.bf16.msra.mxu0 0
    %3130 = vmatpush.bf16.msra.mxu0 0
    %3131 = vmatpush.bf16.msra.mxu0 0
    %3132 = vmatpush.bf16.msra.mxu0 %v3111
    %3133 = vmatpush.bf16.msra.mxu0 %v3110
    %3134 = vmatmul.bf16.gmra.mxu0 %v3115
    %v3135 = vpop.f32.mrf.mxu0
    %v3136 = vadd.f32 0.0, %v3135
    %v3137 = vpop.f32.mrf.mxu0
    %v3138 = vadd.f32 0.0, %v3137
    %3139 = vmatmul.bf16.gmra.mxu0 %v3118
    %v3140 = vpop.f32.mrf.mxu0
    %v3141 = vadd.f32 0.0, %v3140
    %v3142 = vpop.f32.mrf.mxu0
    %v3143 = vadd.f32 0.0, %v3142
    %3144 = vmatmul.bf16.gmra.mxu0 %v3121
    %v3145 = vpop.f32.mrf.mxu0
    %v3146 = vadd.f32 0.0, %v3145
    %v3147 = vpop.f32.mrf.mxu0
    %v3148 = vadd.f32 0.0, %v3147
    %3149 = vmatmul.bf16.gmra.mxu0 %v3124
    %v3150 = vpop.f32.mrf.mxu0
    %v3151 = vadd.f32 0.0, %v3150
    %v3152 = vpop.f32.mrf.mxu0
    %v3153 = vadd.f32 0.0, %v3152
    %3154 = vdwg.mxu0
    %v3155 = vadd.f32 %v3085, %v3136
    %v3156 = vadd.f32 %v3086, %v3138
    %v3157 = vadd.f32 %v3087, %v3141
    %v3158 = vadd.f32 %v3088, %v3143
    %v3159 = vadd.f32 %v3089, %v3146
    %v3160 = vadd.f32 %v3090, %v3148
    %v3161 = vadd.f32 %v3091, %v3151
    %v3162 = vadd.f32 %v3092, %v3153
    %v3163 = vpack.c.bf16 %v2803, %v2801
    %v3164 = vpack.c.bf16 %v2808, %v2806
    %v3165 = vpack.c.bf16 %v2813, %v2811
    %v3166 = vpack.c.bf16 %v2818, %v2816
    %s3167 = scalar_lea.vmem %s43, 64
    %v3168 = vld [vmem:[%s3167] sm:$0xf]
    %v3169 = vld [vmem:[%s3167 + $0x4] sm:$0xf]
    %v3170 = vld [vmem:[%s3167 + $0x8] sm:$0xf]
    %v3171 = vld [vmem:[%s3167 + $0xc] sm:$0xf]
    %v3176 = vunpack.c.l.b16 %v3168
    %v3177 = vunpack.c.l.b16 %v3169
    %v3178 = vunpack.c.l.b16 %v3170
    %v3179 = vunpack.c.l.b16 %v3171
    %v3180 = vpack.c.b16 %v3177, %v3176
    %v3181 = vpack.c.b16 %v3179, %v3178
    %v3185 = vsel %vm132, %v3163, 0
    %v3188 = vsel %vm132, %v3164, 0
    %v3191 = vsel %vm132, %v3165, 0
    %v3194 = vsel %vm132, %v3166, 0
    %3196 = vmatpush.bf16.msra.mxu0 0
    %3197 = vmatpush.bf16.msra.mxu0 0
    %3198 = vmatpush.bf16.msra.mxu0 0
    %3199 = vmatpush.bf16.msra.mxu0 0
    %3200 = vmatpush.bf16.msra.mxu0 0
    %3201 = vmatpush.bf16.msra.mxu0 0
    %3202 = vmatpush.bf16.msra.mxu0 %v3181
    %3203 = vmatpush.bf16.msra.mxu0 %v3180
    %3204 = vmatmul.bf16.gmra.mxu0 %v3185
    %v3205 = vpop.f32.mrf.mxu0
    %v3206 = vadd.f32 0.0, %v3205
    %v3207 = vpop.f32.mrf.mxu0
    %v3208 = vadd.f32 0.0, %v3207
    %3209 = vmatmul.bf16.gmra.mxu0 %v3188
    %v3210 = vpop.f32.mrf.mxu0
    %v3211 = vadd.f32 0.0, %v3210
    %v3212 = vpop.f32.mrf.mxu0
    %v3213 = vadd.f32 0.0, %v3212
    %3214 = vmatmul.bf16.gmra.mxu0 %v3191
    %v3215 = vpop.f32.mrf.mxu0
    %v3216 = vadd.f32 0.0, %v3215
    %v3217 = vpop.f32.mrf.mxu0
    %v3218 = vadd.f32 0.0, %v3217
    %3219 = vmatmul.bf16.gmra.mxu0 %v3194
    %v3220 = vpop.f32.mrf.mxu0
    %v3221 = vadd.f32 0.0, %v3220
    %v3222 = vpop.f32.mrf.mxu0
    %v3223 = vadd.f32 0.0, %v3222
    %3224 = vdwg.mxu0
    %v3225 = vadd.f32 %v3155, %v3206
    %v3226 = vadd.f32 %v3156, %v3208
    %v3227 = vadd.f32 %v3157, %v3211
    %v3228 = vadd.f32 %v3158, %v3213
    %v3229 = vadd.f32 %v3159, %v3216
    %v3230 = vadd.f32 %v3160, %v3218
    %v3231 = vadd.f32 %v3161, %v3221
    %v3232 = vadd.f32 %v3162, %v3223
    %v3233 = vpack.c.bf16 %v2823, %v2821
    %v3234 = vpack.c.bf16 %v2828, %v2826
    %v3235 = vpack.c.bf16 %v2833, %v2831
    %v3236 = vpack.c.bf16 %v2838, %v2836
    %s3237 = scalar_lea.vmem %s43, 80
    %v3238 = vld [vmem:[%s3237] sm:$0xf]
    %v3239 = vld [vmem:[%s3237 + $0x4] sm:$0xf]
    %v3240 = vld [vmem:[%s3237 + $0x8] sm:$0xf]
    %v3241 = vld [vmem:[%s3237 + $0xc] sm:$0xf]
    %v3246 = vunpack.c.l.b16 %v3238
    %v3247 = vunpack.c.l.b16 %v3239
    %v3248 = vunpack.c.l.b16 %v3240
    %v3249 = vunpack.c.l.b16 %v3241
    %v3250 = vpack.c.b16 %v3247, %v3246
    %v3251 = vpack.c.b16 %v3249, %v3248
    %v3255 = vsel %vm132, %v3233, 0
    %v3258 = vsel %vm132, %v3234, 0
    %v3261 = vsel %vm132, %v3235, 0
    %v3264 = vsel %vm132, %v3236, 0
    %3266 = vmatpush.bf16.msra.mxu0 0
    %3267 = vmatpush.bf16.msra.mxu0 0
    %3268 = vmatpush.bf16.msra.mxu0 0
    %3269 = vmatpush.bf16.msra.mxu0 0
    %3270 = vmatpush.bf16.msra.mxu0 0
    %3271 = vmatpush.bf16.msra.mxu0 0
    %3272 = vmatpush.bf16.msra.mxu0 %v3251
    %3273 = vmatpush.bf16.msra.mxu0 %v3250
    %3274 = vmatmul.bf16.gmra.mxu0 %v3255
    %v3275 = vpop.f32.mrf.mxu0
    %v3276 = vadd.f32 0.0, %v3275
    %v3277 = vpop.f32.mrf.mxu0
    %v3278 = vadd.f32 0.0, %v3277
    %3279 = vmatmul.bf16.gmra.mxu0 %v3258
    %v3280 = vpop.f32.mrf.mxu0
    %v3281 = vadd.f32 0.0, %v3280
    %v3282 = vpop.f32.mrf.mxu0
    %v3283 = vadd.f32 0.0, %v3282
    %3284 = vmatmul.bf16.gmra.mxu0 %v3261
    %v3285 = vpop.f32.mrf.mxu0
    %v3286 = vadd.f32 0.0, %v3285
    %v3287 = vpop.f32.mrf.mxu0
    %v3288 = vadd.f32 0.0, %v3287
    %3289 = vmatmul.bf16.gmra.mxu0 %v3264
    %v3290 = vpop.f32.mrf.mxu0
    %v3291 = vadd.f32 0.0, %v3290
    %v3292 = vpop.f32.mrf.mxu0
    %v3293 = vadd.f32 0.0, %v3292
    %3294 = vdwg.mxu0
    %v3295 = vadd.f32 %v3225, %v3276
    %v3296 = vadd.f32 %v3226, %v3278
    %v3297 = vadd.f32 %v3227, %v3281
    %v3298 = vadd.f32 %v3228, %v3283
    %v3299 = vadd.f32 %v3229, %v3286
    %v3300 = vadd.f32 %v3230, %v3288
    %v3301 = vadd.f32 %v3231, %v3291
    %v3302 = vadd.f32 %v3232, %v3293
    %v3303 = vpack.c.bf16 %v2843, %v2841
    %v3304 = vpack.c.bf16 %v2848, %v2846
    %v3305 = vpack.c.bf16 %v2853, %v2851
    %v3306 = vpack.c.bf16 %v2858, %v2856
    %s3307 = scalar_lea.vmem %s43, 96
    %v3308 = vld [vmem:[%s3307] sm:$0xf]
    %v3309 = vld [vmem:[%s3307 + $0x4] sm:$0xf]
    %v3310 = vld [vmem:[%s3307 + $0x8] sm:$0xf]
    %v3311 = vld [vmem:[%s3307 + $0xc] sm:$0xf]
    %v3316 = vunpack.c.l.b16 %v3308
    %v3317 = vunpack.c.l.b16 %v3309
    %v3318 = vunpack.c.l.b16 %v3310
    %v3319 = vunpack.c.l.b16 %v3311
    %v3320 = vpack.c.b16 %v3317, %v3316
    %v3321 = vpack.c.b16 %v3319, %v3318
    %v3325 = vsel %vm132, %v3303, 0
    %v3328 = vsel %vm132, %v3304, 0
    %v3331 = vsel %vm132, %v3305, 0
    %v3334 = vsel %vm132, %v3306, 0
    %3336 = vmatpush.bf16.msra.mxu0 0
    %3337 = vmatpush.bf16.msra.mxu0 0
    %3338 = vmatpush.bf16.msra.mxu0 0
    %3339 = vmatpush.bf16.msra.mxu0 0
    %3340 = vmatpush.bf16.msra.mxu0 0
    %3341 = vmatpush.bf16.msra.mxu0 0
    %3342 = vmatpush.bf16.msra.mxu0 %v3321
    %3343 = vmatpush.bf16.msra.mxu0 %v3320
    %3344 = vmatmul.bf16.gmra.mxu0 %v3325
    %v3345 = vpop.f32.mrf.mxu0
    %v3346 = vadd.f32 0.0, %v3345
    %v3347 = vpop.f32.mrf.mxu0
    %v3348 = vadd.f32 0.0, %v3347
    %3349 = vmatmul.bf16.gmra.mxu0 %v3328
    %v3350 = vpop.f32.mrf.mxu0
    %v3351 = vadd.f32 0.0, %v3350
    %v3352 = vpop.f32.mrf.mxu0
    %v3353 = vadd.f32 0.0, %v3352
    %3354 = vmatmul.bf16.gmra.mxu0 %v3331
    %v3355 = vpop.f32.mrf.mxu0
    %v3356 = vadd.f32 0.0, %v3355
    %v3357 = vpop.f32.mrf.mxu0
    %v3358 = vadd.f32 0.0, %v3357
    %3359 = vmatmul.bf16.gmra.mxu0 %v3334
    %v3360 = vpop.f32.mrf.mxu0
    %v3361 = vadd.f32 0.0, %v3360
    %v3362 = vpop.f32.mrf.mxu0
    %v3363 = vadd.f32 0.0, %v3362
    %3364 = vdwg.mxu0
    %v3365 = vadd.f32 %v3295, %v3346
    %v3366 = vadd.f32 %v3296, %v3348
    %v3367 = vadd.f32 %v3297, %v3351
    %v3368 = vadd.f32 %v3298, %v3353
    %v3369 = vadd.f32 %v3299, %v3356
    %v3370 = vadd.f32 %v3300, %v3358
    %v3371 = vadd.f32 %v3301, %v3361
    %v3372 = vadd.f32 %v3302, %v3363
    %v3373 = vpack.c.bf16 %v2863, %v2861
    %v3374 = vpack.c.bf16 %v2868, %v2866
    %v3375 = vpack.c.bf16 %v2873, %v2871
    %v3376 = vpack.c.bf16 %v2878, %v2876
    %s3377 = scalar_lea.vmem %s43, 112
    %v3378 = vld [vmem:[%s3377] sm:$0xf]
    %v3379 = vld [vmem:[%s3377 + $0x4] sm:$0xf]
    %v3380 = vld [vmem:[%s3377 + $0x8] sm:$0xf]
    %v3381 = vld [vmem:[%s3377 + $0xc] sm:$0xf]
    %v3386 = vunpack.c.l.b16 %v3378
    %v3387 = vunpack.c.l.b16 %v3379
    %v3388 = vunpack.c.l.b16 %v3380
    %v3389 = vunpack.c.l.b16 %v3381
    %v3390 = vpack.c.b16 %v3387, %v3386
    %v3391 = vpack.c.b16 %v3389, %v3388
    %v3395 = vsel %vm132, %v3373, 0
    %v3398 = vsel %vm132, %v3374, 0
    %v3401 = vsel %vm132, %v3375, 0
    %v3404 = vsel %vm132, %v3376, 0
    %3406 = vmatpush.bf16.msra.mxu0 0
    %3407 = vmatpush.bf16.msra.mxu0 0
    %3408 = vmatpush.bf16.msra.mxu0 0
    %3409 = vmatpush.bf16.msra.mxu0 0
    %3410 = vmatpush.bf16.msra.mxu0 0
    %3411 = vmatpush.bf16.msra.mxu0 0
    %3412 = vmatpush.bf16.msra.mxu0 %v3391
    %3413 = vmatpush.bf16.msra.mxu0 %v3390
    %3414 = vmatmul.bf16.gmra.mxu0 %v3395
    %v3415 = vpop.f32.mrf.mxu0
    %v3416 = vadd.f32 0.0, %v3415
    %v3417 = vpop.f32.mrf.mxu0
    %v3418 = vadd.f32 0.0, %v3417
    %3419 = vmatmul.bf16.gmra.mxu0 %v3398
    %v3420 = vpop.f32.mrf.mxu0
    %v3421 = vadd.f32 0.0, %v3420
    %v3422 = vpop.f32.mrf.mxu0
    %v3423 = vadd.f32 0.0, %v3422
    %3424 = vmatmul.bf16.gmra.mxu0 %v3401
    %v3425 = vpop.f32.mrf.mxu0
    %v3426 = vadd.f32 0.0, %v3425
    %v3427 = vpop.f32.mrf.mxu0
    %v3428 = vadd.f32 0.0, %v3427
    %3429 = vmatmul.bf16.gmra.mxu0 %v3404
    %v3430 = vpop.f32.mrf.mxu0
    %v3431 = vadd.f32 0.0, %v3430
    %v3432 = vpop.f32.mrf.mxu0
    %v3433 = vadd.f32 0.0, %v3432
    %3434 = vdwg.mxu0
    %v3435 = vadd.f32 %v3365, %v3416
    %v3436 = vadd.f32 %v3366, %v3418
    %v3437 = vadd.f32 %v3367, %v3421
    %v3438 = vadd.f32 %v3368, %v3423
    %v3439 = vadd.f32 %v3369, %v3426
    %v3440 = vadd.f32 %v3370, %v3428
    %v3441 = vadd.f32 %v3371, %v3431
    %v3442 = vadd.f32 %v3372, %v3433
    %v3443 = vpack.c.bf16 %v2883, %v2881
    %v3444 = vpack.c.bf16 %v2888, %v2886
    %v3445 = vpack.c.bf16 %v2893, %v2891
    %v3446 = vpack.c.bf16 %v2898, %v2896
    %s3447 = scalar_lea.vmem %s43, 128
    %v3448 = vld [vmem:[%s3447] sm:$0xf]
    %v3449 = vld [vmem:[%s3447 + $0x4] sm:$0xf]
    %v3450 = vld [vmem:[%s3447 + $0x8] sm:$0xf]
    %v3451 = vld [vmem:[%s3447 + $0xc] sm:$0xf]
    %v3456 = vunpack.c.l.b16 %v3448
    %v3457 = vunpack.c.l.b16 %v3449
    %v3458 = vunpack.c.l.b16 %v3450
    %v3459 = vunpack.c.l.b16 %v3451
    %v3460 = vpack.c.b16 %v3457, %v3456
    %v3461 = vpack.c.b16 %v3459, %v3458
    %v3465 = vsel %vm132, %v3443, 0
    %v3468 = vsel %vm132, %v3444, 0
    %v3471 = vsel %vm132, %v3445, 0
    %v3474 = vsel %vm132, %v3446, 0
    %3476 = vmatpush.bf16.msra.mxu0 0
    %3477 = vmatpush.bf16.msra.mxu0 0
    %3478 = vmatpush.bf16.msra.mxu0 0
    %3479 = vmatpush.bf16.msra.mxu0 0
    %3480 = vmatpush.bf16.msra.mxu0 0
    %3481 = vmatpush.bf16.msra.mxu0 0
    %3482 = vmatpush.bf16.msra.mxu0 %v3461
    %3483 = vmatpush.bf16.msra.mxu0 %v3460
    %3484 = vmatmul.bf16.gmra.mxu0 %v3465
    %v3485 = vpop.f32.mrf.mxu0
    %v3486 = vadd.f32 0.0, %v3485
    %v3487 = vpop.f32.mrf.mxu0
    %v3488 = vadd.f32 0.0, %v3487
    %3489 = vmatmul.bf16.gmra.mxu0 %v3468
    %v3490 = vpop.f32.mrf.mxu0
    %v3491 = vadd.f32 0.0, %v3490
    %v3492 = vpop.f32.mrf.mxu0
    %v3493 = vadd.f32 0.0, %v3492
    %3494 = vmatmul.bf16.gmra.mxu0 %v3471
    %v3495 = vpop.f32.mrf.mxu0
    %v3496 = vadd.f32 0.0, %v3495
    %v3497 = vpop.f32.mrf.mxu0
    %v3498 = vadd.f32 0.0, %v3497
    %3499 = vmatmul.bf16.gmra.mxu0 %v3474
    %v3500 = vpop.f32.mrf.mxu0
    %v3501 = vadd.f32 0.0, %v3500
    %v3502 = vpop.f32.mrf.mxu0
    %v3503 = vadd.f32 0.0, %v3502
    %3504 = vdwg.mxu0
    %v3505 = vadd.f32 %v3435, %v3486
    %v3506 = vadd.f32 %v3436, %v3488
    %v3507 = vadd.f32 %v3437, %v3491
    %v3508 = vadd.f32 %v3438, %v3493
    %v3509 = vadd.f32 %v3439, %v3496
    %v3510 = vadd.f32 %v3440, %v3498
    %v3511 = vadd.f32 %v3441, %v3501
    %v3512 = vadd.f32 %v3442, %v3503
    %v3513 = vld [vmem:[%s45] sm:$0x1]
    %v3515 = vperm.slane %v3513, 0
    %v3517 = vadd.f32 %v3505, %v3515
    %v3518 = vadd.f32 %v3506, %v3515
    %v3519 = vadd.f32 %v3507, %v3515
    %v3520 = vadd.f32 %v3508, %v3515
    %v3521 = vadd.f32 %v3509, %v3515
    %v3522 = vadd.f32 %v3510, %v3515
    %v3523 = vadd.f32 %v3511, %v3515
    %v3524 = vadd.f32 %v3512, %v3515
    %v3525 = vmax.f32 %v3517, 0.0
    %v3526 = vmax.f32 %v3518, 0.0
    %v3527 = vmax.f32 %v3519, 0.0
    %v3528 = vmax.f32 %v3520, 0.0
    %v3529 = vmax.f32 %v3521, 0.0
    %v3530 = vmax.f32 %v3522, 0.0
    %v3531 = vmax.f32 %v3523, 0.0
    %v3532 = vmax.f32 %v3524, 0.0
    %v3533 = vpack.c.bf16 %v3526, %v3525
    %v3534 = vpack.c.bf16 %v3528, %v3527
    %v3535 = vpack.c.bf16 %v3530, %v3529
    %v3536 = vpack.c.bf16 %v3532, %v3531
    %3537 = vmatpush.bf16.msra.mxu0 0
    %3538 = vmatpush.bf16.msra.mxu0 0
    %3539 = vmatpush.bf16.msra.mxu0 0
    %3540 = vmatpush.bf16.msra.mxu0 0
    %3541 = vmatpush.bf16.msra.mxu0 %v3536
    %3542 = vmatpush.bf16.msra.mxu0 %v3535
    %3543 = vmatpush.bf16.msra.mxu0 %v3534
    %3544 = vmatpush.bf16.msra.mxu0 %v3533
    %3545 = vmatmul.bf16.gmra.mxu0 %v2604
    %v3546 = vpop.f32.mrf.mxu0
    %v3547 = vadd.f32 0.0, %v3546
    %v3548 = vpop.f32.mrf.mxu0
    %v3549 = vadd.f32 0.0, %v3548
    %3550 = vmatmul.bf16.gmra.mxu0 %v2607
    %v3551 = vpop.f32.mrf.mxu0
    %v3552 = vadd.f32 0.0, %v3551
    %v3553 = vpop.f32.mrf.mxu0
    %v3554 = vadd.f32 0.0, %v3553
    %3555 = vmatmul.bf16.gmra.mxu0 %v2610
    %v3556 = vpop.f32.mrf.mxu0
    %v3557 = vadd.f32 0.0, %v3556
    %v3558 = vpop.f32.mrf.mxu0
    %v3559 = vadd.f32 0.0, %v3558
    %3560 = vmatmul.bf16.gmra.mxu0 %v2613
    %v3561 = vpop.f32.mrf.mxu0
    %v3562 = vadd.f32 0.0, %v3561
    %v3563 = vpop.f32.mrf.mxu0
    %v3564 = vadd.f32 0.0, %v3563
    %3565 = vmatmul.bf16.gmra.mxu0 %v2616
    %v3566 = vpop.f32.mrf.mxu0
    %v3567 = vadd.f32 0.0, %v3566
    %v3568 = vpop.f32.mrf.mxu0
    %v3569 = vadd.f32 0.0, %v3568
    %3570 = vmatmul.bf16.gmra.mxu0 %v2619
    %v3571 = vpop.f32.mrf.mxu0
    %v3572 = vadd.f32 0.0, %v3571
    %v3573 = vpop.f32.mrf.mxu0
    %v3574 = vadd.f32 0.0, %v3573
    %3575 = vmatmul.bf16.gmra.mxu0 %v2622
    %v3576 = vpop.f32.mrf.mxu0
    %v3577 = vadd.f32 0.0, %v3576
    %v3578 = vpop.f32.mrf.mxu0
    %v3579 = vadd.f32 0.0, %v3578
    %3580 = vmatmul.bf16.gmra.mxu0 %v2625
    %v3581 = vpop.f32.mrf.mxu0
    %v3582 = vadd.f32 0.0, %v3581
    %v3583 = vpop.f32.mrf.mxu0
    %v3584 = vadd.f32 0.0, %v3583
    %3585 = vmatmul.bf16.gmra.mxu0 %v2628
    %v3586 = vpop.f32.mrf.mxu0
    %v3587 = vadd.f32 0.0, %v3586
    %v3588 = vpop.f32.mrf.mxu0
    %v3589 = vadd.f32 0.0, %v3588
    %3590 = vmatmul.bf16.gmra.mxu0 %v2631
    %v3591 = vpop.f32.mrf.mxu0
    %v3592 = vadd.f32 0.0, %v3591
    %v3593 = vpop.f32.mrf.mxu0
    %v3594 = vadd.f32 0.0, %v3593
    %3595 = vmatmul.bf16.gmra.mxu0 %v2634
    %v3596 = vpop.f32.mrf.mxu0
    %v3597 = vadd.f32 0.0, %v3596
    %v3598 = vpop.f32.mrf.mxu0
    %v3599 = vadd.f32 0.0, %v3598
    %3600 = vmatmul.bf16.gmra.mxu0 %v2637
    %v3601 = vpop.f32.mrf.mxu0
    %v3602 = vadd.f32 0.0, %v3601
    %v3603 = vpop.f32.mrf.mxu0
    %v3604 = vadd.f32 0.0, %v3603
    %3605 = vmatmul.bf16.gmra.mxu0 %v2640
    %v3606 = vpop.f32.mrf.mxu0
    %v3607 = vadd.f32 0.0, %v3606
    %v3608 = vpop.f32.mrf.mxu0
    %v3609 = vadd.f32 0.0, %v3608
    %3610 = vmatmul.bf16.gmra.mxu0 %v2643
    %v3611 = vpop.f32.mrf.mxu0
    %v3612 = vadd.f32 0.0, %v3611
    %v3613 = vpop.f32.mrf.mxu0
    %v3614 = vadd.f32 0.0, %v3613
    %3615 = vmatmul.bf16.gmra.mxu0 %v2646
    %v3616 = vpop.f32.mrf.mxu0
    %v3617 = vadd.f32 0.0, %v3616
    %v3618 = vpop.f32.mrf.mxu0
    %v3619 = vadd.f32 0.0, %v3618
    %3620 = vmatmul.bf16.gmra.mxu0 %v2649
    %v3621 = vpop.f32.mrf.mxu0
    %v3622 = vadd.f32 0.0, %v3621
    %v3623 = vpop.f32.mrf.mxu0
    %v3624 = vadd.f32 0.0, %v3623
    %3625 = vmatmul.bf16.gmra.mxu0 %v2652
    %v3626 = vpop.f32.mrf.mxu0
    %v3627 = vadd.f32 0.0, %v3626
    %v3628 = vpop.f32.mrf.mxu0
    %v3629 = vadd.f32 0.0, %v3628
    %3630 = vmatmul.bf16.gmra.mxu0 %v2655
    %v3631 = vpop.f32.mrf.mxu0
    %v3632 = vadd.f32 0.0, %v3631
    %v3633 = vpop.f32.mrf.mxu0
    %v3634 = vadd.f32 0.0, %v3633
    %3635 = vmatmul.bf16.gmra.mxu0 %v2658
    %v3636 = vpop.f32.mrf.mxu0
    %v3637 = vadd.f32 0.0, %v3636
    %v3638 = vpop.f32.mrf.mxu0
    %v3639 = vadd.f32 0.0, %v3638
    %3640 = vmatmul.bf16.gmra.mxu0 %v2661
    %v3641 = vpop.f32.mrf.mxu0
    %v3642 = vadd.f32 0.0, %v3641
    %v3643 = vpop.f32.mrf.mxu0
    %v3644 = vadd.f32 0.0, %v3643
    %3645 = vmatmul.bf16.gmra.mxu0 %v2664
    %v3646 = vpop.f32.mrf.mxu0
    %v3647 = vadd.f32 0.0, %v3646
    %v3648 = vpop.f32.mrf.mxu0
    %v3649 = vadd.f32 0.0, %v3648
    %3650 = vmatmul.bf16.gmra.mxu0 %v2667
    %v3651 = vpop.f32.mrf.mxu0
    %v3652 = vadd.f32 0.0, %v3651
    %v3653 = vpop.f32.mrf.mxu0
    %v3654 = vadd.f32 0.0, %v3653
    %3655 = vmatmul.bf16.gmra.mxu0 %v2670
    %v3656 = vpop.f32.mrf.mxu0
    %v3657 = vadd.f32 0.0, %v3656
    %v3658 = vpop.f32.mrf.mxu0
    %v3659 = vadd.f32 0.0, %v3658
    %3660 = vmatmul.bf16.gmra.mxu0 %v2673
    %v3661 = vpop.f32.mrf.mxu0
    %v3662 = vadd.f32 0.0, %v3661
    %v3663 = vpop.f32.mrf.mxu0
    %v3664 = vadd.f32 0.0, %v3663
    %3665 = vmatmul.bf16.gmra.mxu0 %v2676
    %v3666 = vpop.f32.mrf.mxu0
    %v3667 = vadd.f32 0.0, %v3666
    %v3668 = vpop.f32.mrf.mxu0
    %v3669 = vadd.f32 0.0, %v3668
    %3670 = vmatmul.bf16.gmra.mxu0 %v2679
    %v3671 = vpop.f32.mrf.mxu0
    %v3672 = vadd.f32 0.0, %v3671
    %v3673 = vpop.f32.mrf.mxu0
    %v3674 = vadd.f32 0.0, %v3673
    %3675 = vmatmul.bf16.gmra.mxu0 %v2682
    %v3676 = vpop.f32.mrf.mxu0
    %v3677 = vadd.f32 0.0, %v3676
    %v3678 = vpop.f32.mrf.mxu0
    %v3679 = vadd.f32 0.0, %v3678
    %3680 = vmatmul.bf16.gmra.mxu0 %v2685
    %v3681 = vpop.f32.mrf.mxu0
    %v3682 = vadd.f32 0.0, %v3681
    %v3683 = vpop.f32.mrf.mxu0
    %v3684 = vadd.f32 0.0, %v3683
    %3685 = vmatmul.bf16.gmra.mxu0 %v2688
    %v3686 = vpop.f32.mrf.mxu0
    %v3687 = vadd.f32 0.0, %v3686
    %v3688 = vpop.f32.mrf.mxu0
    %v3689 = vadd.f32 0.0, %v3688
    %3690 = vmatmul.bf16.gmra.mxu0 %v2691
    %v3691 = vpop.f32.mrf.mxu0
    %v3692 = vadd.f32 0.0, %v3691
    %v3693 = vpop.f32.mrf.mxu0
    %v3694 = vadd.f32 0.0, %v3693
    %3695 = vmatmul.bf16.gmra.mxu0 %v2694
    %v3696 = vpop.f32.mrf.mxu0
    %v3697 = vadd.f32 0.0, %v3696
    %v3698 = vpop.f32.mrf.mxu0
    %v3699 = vadd.f32 0.0, %v3698
    %3700 = vmatmul.bf16.gmra.mxu0 %v2697
    %v3701 = vpop.f32.mrf.mxu0
    %v3702 = vadd.f32 0.0, %v3701
    %v3703 = vpop.f32.mrf.mxu0
    %v3704 = vadd.f32 0.0, %v3703
    %3705 = vmatmul.bf16.gmra.mxu0 %v2700
    %v3706 = vpop.f32.mrf.mxu0
    %v3707 = vadd.f32 0.0, %v3706
    %v3708 = vpop.f32.mrf.mxu0
    %v3709 = vadd.f32 0.0, %v3708
    %3710 = vmatmul.bf16.gmra.mxu0 %v2703
    %v3711 = vpop.f32.mrf.mxu0
    %v3712 = vadd.f32 0.0, %v3711
    %v3713 = vpop.f32.mrf.mxu0
    %v3714 = vadd.f32 0.0, %v3713
    %3715 = vmatmul.bf16.gmra.mxu0 %v2706
    %v3716 = vpop.f32.mrf.mxu0
    %v3717 = vadd.f32 0.0, %v3716
    %v3718 = vpop.f32.mrf.mxu0
    %v3719 = vadd.f32 0.0, %v3718
    %3720 = vmatmul.bf16.gmra.mxu0 %v2709
    %v3721 = vpop.f32.mrf.mxu0
    %v3722 = vadd.f32 0.0, %v3721
    %v3723 = vpop.f32.mrf.mxu0
    %v3724 = vadd.f32 0.0, %v3723
    %3725 = vdwg.mxu0
    %v3726 = vpack.c.bf16 %v3549, %v3547
    %v3727 = vpack.c.bf16 %v3554, %v3552
    %v3728 = vpack.c.bf16 %v3559, %v3557
    %v3729 = vpack.c.bf16 %v3564, %v3562
    %v3730 = vld [vmem:[%s47] sm:$0xf]
    %v3731 = vld [vmem:[%s47 + $0x4] sm:$0xf]
    %v3732 = vld [vmem:[%s47 + $0x8] sm:$0xf]
    %v3733 = vld [vmem:[%s47 + $0xc] sm:$0xf]
    %v3734 = vpack.c.bf16 %v3569, %v3567
    %v3735 = vpack.c.bf16 %v3574, %v3572
    %v3736 = vpack.c.bf16 %v3579, %v3577
    %v3737 = vpack.c.bf16 %v3584, %v3582
    %s3738 = scalar_lea.vmem %s47, 16
    %v3739 = vld [vmem:[%s3738] sm:$0xf]
    %v3740 = vld [vmem:[%s3738 + $0x4] sm:$0xf]
    %v3741 = vld [vmem:[%s3738 + $0x8] sm:$0xf]
    %v3742 = vld [vmem:[%s3738 + $0xc] sm:$0xf]
    %v3747 = vunpack.c.l.b16 %v3739
    %v3748 = vunpack.c.l.b16 %v3740
    %v3749 = vunpack.c.l.b16 %v3741
    %v3750 = vunpack.c.l.b16 %v3742
    %v3751 = vpack.c.b16 %v3748, %v3747
    %v3752 = vpack.c.b16 %v3750, %v3749
    %v3756 = vsel %vm132, %v3734, 0
    %v3759 = vsel %vm132, %v3735, 0
    %v3762 = vsel %vm132, %v3736, 0
    %v3765 = vsel %vm132, %v3737, 0
    %3767 = vmatpush.bf16.msra.mxu0 0
    %3768 = vmatpush.bf16.msra.mxu0 0
    %3769 = vmatpush.bf16.msra.mxu0 0
    %3770 = vmatpush.bf16.msra.mxu0 0
    %3771 = vmatpush.bf16.msra.mxu0 0
    %3772 = vmatpush.bf16.msra.mxu0 0
    %3773 = vmatpush.bf16.msra.mxu0 %v3752
    %3774 = vmatpush.bf16.msra.mxu0 %v3751
    %3775 = vmatmul.bf16.gmra.mxu0 %v3756
    %v3776 = vpop.f32.mrf.mxu0
    %v3777 = vadd.f32 0.0, %v3776
    %v3778 = vpop.f32.mrf.mxu0
    %v3779 = vadd.f32 0.0, %v3778
    %3780 = vmatmul.bf16.gmra.mxu0 %v3759
    %v3781 = vpop.f32.mrf.mxu0
    %v3782 = vadd.f32 0.0, %v3781
    %v3783 = vpop.f32.mrf.mxu0
    %v3784 = vadd.f32 0.0, %v3783
    %3785 = vmatmul.bf16.gmra.mxu0 %v3762
    %v3786 = vpop.f32.mrf.mxu0
    %v3787 = vadd.f32 0.0, %v3786
    %v3788 = vpop.f32.mrf.mxu0
    %v3789 = vadd.f32 0.0, %v3788
    %3790 = vmatmul.bf16.gmra.mxu0 %v3765
    %v3791 = vpop.f32.mrf.mxu0
    %v3792 = vadd.f32 0.0, %v3791
    %v3793 = vpop.f32.mrf.mxu0
    %v3794 = vadd.f32 0.0, %v3793
    %3795 = vdwg.mxu0
    %v3800 = vunpack.c.l.b16 %v3730
    %v3801 = vunpack.c.l.b16 %v3731
    %v3802 = vunpack.c.l.b16 %v3732
    %v3803 = vunpack.c.l.b16 %v3733
    %v3804 = vpack.c.b16 %v3801, %v3800
    %v3805 = vpack.c.b16 %v3803, %v3802
    %v3809 = vsel %vm132, %v3726, 0
    %v3812 = vsel %vm132, %v3727, 0
    %v3815 = vsel %vm132, %v3728, 0
    %v3818 = vsel %vm132, %v3729, 0
    %3820 = vmatpush.bf16.msra.mxu0 0
    %3821 = vmatpush.bf16.msra.mxu0 0
    %3822 = vmatpush.bf16.msra.mxu0 0
    %3823 = vmatpush.bf16.msra.mxu0 0
    %3824 = vmatpush.bf16.msra.mxu0 0
    %3825 = vmatpush.bf16.msra.mxu0 0
    %3826 = vmatpush.bf16.msra.mxu0 %v3805
    %3827 = vmatpush.bf16.msra.mxu0 %v3804
    %3828 = vmatmul.bf16.gmra.mxu0 %v3809
    %v3829 = vpop.f32.mrf.mxu0
    %v3830 = vadd.f32 %v3777, %v3829
    %v3831 = vpop.f32.mrf.mxu0
    %v3832 = vadd.f32 %v3779, %v3831
    %3833 = vmatmul.bf16.gmra.mxu0 %v3812
    %v3834 = vpop.f32.mrf.mxu0
    %v3835 = vadd.f32 %v3782, %v3834
    %v3836 = vpop.f32.mrf.mxu0
    %v3837 = vadd.f32 %v3784, %v3836
    %3838 = vmatmul.bf16.gmra.mxu0 %v3815
    %v3839 = vpop.f32.mrf.mxu0
    %v3840 = vadd.f32 %v3787, %v3839
    %v3841 = vpop.f32.mrf.mxu0
    %v3842 = vadd.f32 %v3789, %v3841
    %3843 = vmatmul.bf16.gmra.mxu0 %v3818
    %v3844 = vpop.f32.mrf.mxu0
    %v3845 = vadd.f32 %v3792, %v3844
    %v3846 = vpop.f32.mrf.mxu0
    %v3847 = vadd.f32 %v3794, %v3846
    %3848 = vdwg.mxu0
    %v3849 = vpack.c.bf16 %v3589, %v3587
    %v3850 = vpack.c.bf16 %v3594, %v3592
    %v3851 = vpack.c.bf16 %v3599, %v3597
    %v3852 = vpack.c.bf16 %v3604, %v3602
    %s3853 = scalar_lea.vmem %s47, 32
    %v3854 = vld [vmem:[%s3853] sm:$0xf]
    %v3855 = vld [vmem:[%s3853 + $0x4] sm:$0xf]
    %v3856 = vld [vmem:[%s3853 + $0x8] sm:$0xf]
    %v3857 = vld [vmem:[%s3853 + $0xc] sm:$0xf]
    %v3862 = vunpack.c.l.b16 %v3854
    %v3863 = vunpack.c.l.b16 %v3855
    %v3864 = vunpack.c.l.b16 %v3856
    %v3865 = vunpack.c.l.b16 %v3857
    %v3866 = vpack.c.b16 %v3863, %v3862
    %v3867 = vpack.c.b16 %v3865, %v3864
    %v3871 = vsel %vm132, %v3849, 0
    %v3874 = vsel %vm132, %v3850, 0
    %v3877 = vsel %vm132, %v3851, 0
    %v3880 = vsel %vm132, %v3852, 0
    %3882 = vmatpush.bf16.msra.mxu0 0
    %3883 = vmatpush.bf16.msra.mxu0 0
    %3884 = vmatpush.bf16.msra.mxu0 0
    %3885 = vmatpush.bf16.msra.mxu0 0
    %3886 = vmatpush.bf16.msra.mxu0 0
    %3887 = vmatpush.bf16.msra.mxu0 0
    %3888 = vmatpush.bf16.msra.mxu0 %v3867
    %3889 = vmatpush.bf16.msra.mxu0 %v3866
    %3890 = vmatmul.bf16.gmra.mxu0 %v3871
    %v3891 = vpop.f32.mrf.mxu0
    %v3892 = vadd.f32 0.0, %v3891
    %v3893 = vpop.f32.mrf.mxu0
    %v3894 = vadd.f32 0.0, %v3893
    %3895 = vmatmul.bf16.gmra.mxu0 %v3874
    %v3896 = vpop.f32.mrf.mxu0
    %v3897 = vadd.f32 0.0, %v3896
    %v3898 = vpop.f32.mrf.mxu0
    %v3899 = vadd.f32 0.0, %v3898
    %3900 = vmatmul.bf16.gmra.mxu0 %v3877
    %v3901 = vpop.f32.mrf.mxu0
    %v3902 = vadd.f32 0.0, %v3901
    %v3903 = vpop.f32.mrf.mxu0
    %v3904 = vadd.f32 0.0, %v3903
    %3905 = vmatmul.bf16.gmra.mxu0 %v3880
    %v3906 = vpop.f32.mrf.mxu0
    %v3907 = vadd.f32 0.0, %v3906
    %v3908 = vpop.f32.mrf.mxu0
    %v3909 = vadd.f32 0.0, %v3908
    %3910 = vdwg.mxu0
    %v3911 = vadd.f32 %v3830, %v3892
    %v3912 = vadd.f32 %v3832, %v3894
    %v3913 = vadd.f32 %v3835, %v3897
    %v3914 = vadd.f32 %v3837, %v3899
    %v3915 = vadd.f32 %v3840, %v3902
    %v3916 = vadd.f32 %v3842, %v3904
    %v3917 = vadd.f32 %v3845, %v3907
    %v3918 = vadd.f32 %v3847, %v3909
    %v3919 = vpack.c.bf16 %v3609, %v3607
    %v3920 = vpack.c.bf16 %v3614, %v3612
    %v3921 = vpack.c.bf16 %v3619, %v3617
    %v3922 = vpack.c.bf16 %v3624, %v3622
    %s3923 = scalar_lea.vmem %s47, 48
    %v3924 = vld [vmem:[%s3923] sm:$0xf]
    %v3925 = vld [vmem:[%s3923 + $0x4] sm:$0xf]
    %v3926 = vld [vmem:[%s3923 + $0x8] sm:$0xf]
    %v3927 = vld [vmem:[%s3923 + $0xc] sm:$0xf]
    %v3932 = vunpack.c.l.b16 %v3924
    %v3933 = vunpack.c.l.b16 %v3925
    %v3934 = vunpack.c.l.b16 %v3926
    %v3935 = vunpack.c.l.b16 %v3927
    %v3936 = vpack.c.b16 %v3933, %v3932
    %v3937 = vpack.c.b16 %v3935, %v3934
    %v3941 = vsel %vm132, %v3919, 0
    %v3944 = vsel %vm132, %v3920, 0
    %v3947 = vsel %vm132, %v3921, 0
    %v3950 = vsel %vm132, %v3922, 0
    %3952 = vmatpush.bf16.msra.mxu0 0
    %3953 = vmatpush.bf16.msra.mxu0 0
    %3954 = vmatpush.bf16.msra.mxu0 0
    %3955 = vmatpush.bf16.msra.mxu0 0
    %3956 = vmatpush.bf16.msra.mxu0 0
    %3957 = vmatpush.bf16.msra.mxu0 0
    %3958 = vmatpush.bf16.msra.mxu0 %v3937
    %3959 = vmatpush.bf16.msra.mxu0 %v3936
    %3960 = vmatmul.bf16.gmra.mxu0 %v3941
    %v3961 = vpop.f32.mrf.mxu0
    %v3962 = vadd.f32 0.0, %v3961
    %v3963 = vpop.f32.mrf.mxu0
    %v3964 = vadd.f32 0.0, %v3963
    %3965 = vmatmul.bf16.gmra.mxu0 %v3944
    %v3966 = vpop.f32.mrf.mxu0
    %v3967 = vadd.f32 0.0, %v3966
    %v3968 = vpop.f32.mrf.mxu0
    %v3969 = vadd.f32 0.0, %v3968
    %3970 = vmatmul.bf16.gmra.mxu0 %v3947
    %v3971 = vpop.f32.mrf.mxu0
    %v3972 = vadd.f32 0.0, %v3971
    %v3973 = vpop.f32.mrf.mxu0
    %v3974 = vadd.f32 0.0, %v3973
    %3975 = vmatmul.bf16.gmra.mxu0 %v3950
    %v3976 = vpop.f32.mrf.mxu0
    %v3977 = vadd.f32 0.0, %v3976
    %v3978 = vpop.f32.mrf.mxu0
    %v3979 = vadd.f32 0.0, %v3978
    %3980 = vdwg.mxu0
    %v3981 = vadd.f32 %v3911, %v3962
    %v3982 = vadd.f32 %v3912, %v3964
    %v3983 = vadd.f32 %v3913, %v3967
    %v3984 = vadd.f32 %v3914, %v3969
    %v3985 = vadd.f32 %v3915, %v3972
    %v3986 = vadd.f32 %v3916, %v3974
    %v3987 = vadd.f32 %v3917, %v3977
    %v3988 = vadd.f32 %v3918, %v3979
    %v3989 = vpack.c.bf16 %v3629, %v3627
    %v3990 = vpack.c.bf16 %v3634, %v3632
    %v3991 = vpack.c.bf16 %v3639, %v3637
    %v3992 = vpack.c.bf16 %v3644, %v3642
    %s3993 = scalar_lea.vmem %s47, 64
    %v3994 = vld [vmem:[%s3993] sm:$0xf]
    %v3995 = vld [vmem:[%s3993 + $0x4] sm:$0xf]
    %v3996 = vld [vmem:[%s3993 + $0x8] sm:$0xf]
    %v3997 = vld [vmem:[%s3993 + $0xc] sm:$0xf]
    %v4002 = vunpack.c.l.b16 %v3994
    %v4003 = vunpack.c.l.b16 %v3995
    %v4004 = vunpack.c.l.b16 %v3996
    %v4005 = vunpack.c.l.b16 %v3997
    %v4006 = vpack.c.b16 %v4003, %v4002
    %v4007 = vpack.c.b16 %v4005, %v4004
    %v4011 = vsel %vm132, %v3989, 0
    %v4014 = vsel %vm132, %v3990, 0
    %v4017 = vsel %vm132, %v3991, 0
    %v4020 = vsel %vm132, %v3992, 0
    %4022 = vmatpush.bf16.msra.mxu0 0
    %4023 = vmatpush.bf16.msra.mxu0 0
    %4024 = vmatpush.bf16.msra.mxu0 0
    %4025 = vmatpush.bf16.msra.mxu0 0
    %4026 = vmatpush.bf16.msra.mxu0 0
    %4027 = vmatpush.bf16.msra.mxu0 0
    %4028 = vmatpush.bf16.msra.mxu0 %v4007
    %4029 = vmatpush.bf16.msra.mxu0 %v4006
    %4030 = vmatmul.bf16.gmra.mxu0 %v4011
    %v4031 = vpop.f32.mrf.mxu0
    %v4032 = vadd.f32 0.0, %v4031
    %v4033 = vpop.f32.mrf.mxu0
    %v4034 = vadd.f32 0.0, %v4033
    %4035 = vmatmul.bf16.gmra.mxu0 %v4014
    %v4036 = vpop.f32.mrf.mxu0
    %v4037 = vadd.f32 0.0, %v4036
    %v4038 = vpop.f32.mrf.mxu0
    %v4039 = vadd.f32 0.0, %v4038
    %4040 = vmatmul.bf16.gmra.mxu0 %v4017
    %v4041 = vpop.f32.mrf.mxu0
    %v4042 = vadd.f32 0.0, %v4041
    %v4043 = vpop.f32.mrf.mxu0
    %v4044 = vadd.f32 0.0, %v4043
    %4045 = vmatmul.bf16.gmra.mxu0 %v4020
    %v4046 = vpop.f32.mrf.mxu0
    %v4047 = vadd.f32 0.0, %v4046
    %v4048 = vpop.f32.mrf.mxu0
    %v4049 = vadd.f32 0.0, %v4048
    %4050 = vdwg.mxu0
    %v4051 = vadd.f32 %v3981, %v4032
    %v4052 = vadd.f32 %v3982, %v4034
    %v4053 = vadd.f32 %v3983, %v4037
    %v4054 = vadd.f32 %v3984, %v4039
    %v4055 = vadd.f32 %v3985, %v4042
    %v4056 = vadd.f32 %v3986, %v4044
    %v4057 = vadd.f32 %v3987, %v4047
    %v4058 = vadd.f32 %v3988, %v4049
    %v4059 = vpack.c.bf16 %v3649, %v3647
    %v4060 = vpack.c.bf16 %v3654, %v3652
    %v4061 = vpack.c.bf16 %v3659, %v3657
    %v4062 = vpack.c.bf16 %v3664, %v3662
    %s4063 = scalar_lea.vmem %s47, 80
    %v4064 = vld [vmem:[%s4063] sm:$0xf]
    %v4065 = vld [vmem:[%s4063 + $0x4] sm:$0xf]
    %v4066 = vld [vmem:[%s4063 + $0x8] sm:$0xf]
    %v4067 = vld [vmem:[%s4063 + $0xc] sm:$0xf]
    %v4072 = vunpack.c.l.b16 %v4064
    %v4073 = vunpack.c.l.b16 %v4065
    %v4074 = vunpack.c.l.b16 %v4066
    %v4075 = vunpack.c.l.b16 %v4067
    %v4076 = vpack.c.b16 %v4073, %v4072
    %v4077 = vpack.c.b16 %v4075, %v4074
    %v4081 = vsel %vm132, %v4059, 0
    %v4084 = vsel %vm132, %v4060, 0
    %v4087 = vsel %vm132, %v4061, 0
    %v4090 = vsel %vm132, %v4062, 0
    %4092 = vmatpush.bf16.msra.mxu0 0
    %4093 = vmatpush.bf16.msra.mxu0 0
    %4094 = vmatpush.bf16.msra.mxu0 0
    %4095 = vmatpush.bf16.msra.mxu0 0
    %4096 = vmatpush.bf16.msra.mxu0 0
    %4097 = vmatpush.bf16.msra.mxu0 0
    %4098 = vmatpush.bf16.msra.mxu0 %v4077
    %4099 = vmatpush.bf16.msra.mxu0 %v4076
    %4100 = vmatmul.bf16.gmra.mxu0 %v4081
    %v4101 = vpop.f32.mrf.mxu0
    %v4102 = vadd.f32 0.0, %v4101
    %v4103 = vpop.f32.mrf.mxu0
    %v4104 = vadd.f32 0.0, %v4103
    %4105 = vmatmul.bf16.gmra.mxu0 %v4084
    %v4106 = vpop.f32.mrf.mxu0
    %v4107 = vadd.f32 0.0, %v4106
    %v4108 = vpop.f32.mrf.mxu0
    %v4109 = vadd.f32 0.0, %v4108
    %4110 = vmatmul.bf16.gmra.mxu0 %v4087
    %v4111 = vpop.f32.mrf.mxu0
    %v4112 = vadd.f32 0.0, %v4111
    %v4113 = vpop.f32.mrf.mxu0
    %v4114 = vadd.f32 0.0, %v4113
    %4115 = vmatmul.bf16.gmra.mxu0 %v4090
    %v4116 = vpop.f32.mrf.mxu0
    %v4117 = vadd.f32 0.0, %v4116
    %v4118 = vpop.f32.mrf.mxu0
    %v4119 = vadd.f32 0.0, %v4118
    %4120 = vdwg.mxu0
    %v4121 = vadd.f32 %v4051, %v4102
    %v4122 = vadd.f32 %v4052, %v4104
    %v4123 = vadd.f32 %v4053, %v4107
    %v4124 = vadd.f32 %v4054, %v4109
    %v4125 = vadd.f32 %v4055, %v4112
    %v4126 = vadd.f32 %v4056, %v4114
    %v4127 = vadd.f32 %v4057, %v4117
    %v4128 = vadd.f32 %v4058, %v4119
    %v4129 = vpack.c.bf16 %v3669, %v3667
    %v4130 = vpack.c.bf16 %v3674, %v3672
    %v4131 = vpack.c.bf16 %v3679, %v3677
    %v4132 = vpack.c.bf16 %v3684, %v3682
    %s4133 = scalar_lea.vmem %s47, 96
    %v4134 = vld [vmem:[%s4133] sm:$0xf]
    %v4135 = vld [vmem:[%s4133 + $0x4] sm:$0xf]
    %v4136 = vld [vmem:[%s4133 + $0x8] sm:$0xf]
    %v4137 = vld [vmem:[%s4133 + $0xc] sm:$0xf]
    %v4142 = vunpack.c.l.b16 %v4134
    %v4143 = vunpack.c.l.b16 %v4135
    %v4144 = vunpack.c.l.b16 %v4136
    %v4145 = vunpack.c.l.b16 %v4137
    %v4146 = vpack.c.b16 %v4143, %v4142
    %v4147 = vpack.c.b16 %v4145, %v4144
    %v4151 = vsel %vm132, %v4129, 0
    %v4154 = vsel %vm132, %v4130, 0
    %v4157 = vsel %vm132, %v4131, 0
    %v4160 = vsel %vm132, %v4132, 0
    %4162 = vmatpush.bf16.msra.mxu0 0
    %4163 = vmatpush.bf16.msra.mxu0 0
    %4164 = vmatpush.bf16.msra.mxu0 0
    %4165 = vmatpush.bf16.msra.mxu0 0
    %4166 = vmatpush.bf16.msra.mxu0 0
    %4167 = vmatpush.bf16.msra.mxu0 0
    %4168 = vmatpush.bf16.msra.mxu0 %v4147
    %4169 = vmatpush.bf16.msra.mxu0 %v4146
    %4170 = vmatmul.bf16.gmra.mxu0 %v4151
    %v4171 = vpop.f32.mrf.mxu0
    %v4172 = vadd.f32 0.0, %v4171
    %v4173 = vpop.f32.mrf.mxu0
    %v4174 = vadd.f32 0.0, %v4173
    %4175 = vmatmul.bf16.gmra.mxu0 %v4154
    %v4176 = vpop.f32.mrf.mxu0
    %v4177 = vadd.f32 0.0, %v4176
    %v4178 = vpop.f32.mrf.mxu0
    %v4179 = vadd.f32 0.0, %v4178
    %4180 = vmatmul.bf16.gmra.mxu0 %v4157
    %v4181 = vpop.f32.mrf.mxu0
    %v4182 = vadd.f32 0.0, %v4181
    %v4183 = vpop.f32.mrf.mxu0
    %v4184 = vadd.f32 0.0, %v4183
    %4185 = vmatmul.bf16.gmra.mxu0 %v4160
    %v4186 = vpop.f32.mrf.mxu0
    %v4187 = vadd.f32 0.0, %v4186
    %v4188 = vpop.f32.mrf.mxu0
    %v4189 = vadd.f32 0.0, %v4188
    %4190 = vdwg.mxu0
    %v4191 = vadd.f32 %v4121, %v4172
    %v4192 = vadd.f32 %v4122, %v4174
    %v4193 = vadd.f32 %v4123, %v4177
    %v4194 = vadd.f32 %v4124, %v4179
    %v4195 = vadd.f32 %v4125, %v4182
    %v4196 = vadd.f32 %v4126, %v4184
    %v4197 = vadd.f32 %v4127, %v4187
    %v4198 = vadd.f32 %v4128, %v4189
    %v4199 = vpack.c.bf16 %v3689, %v3687
    %v4200 = vpack.c.bf16 %v3694, %v3692
    %v4201 = vpack.c.bf16 %v3699, %v3697
    %v4202 = vpack.c.bf16 %v3704, %v3702
    %s4203 = scalar_lea.vmem %s47, 112
    %v4204 = vld [vmem:[%s4203] sm:$0xf]
    %v4205 = vld [vmem:[%s4203 + $0x4] sm:$0xf]
    %v4206 = vld [vmem:[%s4203 + $0x8] sm:$0xf]
    %v4207 = vld [vmem:[%s4203 + $0xc] sm:$0xf]
    %v4212 = vunpack.c.l.b16 %v4204
    %v4213 = vunpack.c.l.b16 %v4205
    %v4214 = vunpack.c.l.b16 %v4206
    %v4215 = vunpack.c.l.b16 %v4207
    %v4216 = vpack.c.b16 %v4213, %v4212
    %v4217 = vpack.c.b16 %v4215, %v4214
    %v4221 = vsel %vm132, %v4199, 0
    %v4224 = vsel %vm132, %v4200, 0
    %v4227 = vsel %vm132, %v4201, 0
    %v4230 = vsel %vm132, %v4202, 0
    %4232 = vmatpush.bf16.msra.mxu0 0
    %4233 = vmatpush.bf16.msra.mxu0 0
    %4234 = vmatpush.bf16.msra.mxu0 0
    %4235 = vmatpush.bf16.msra.mxu0 0
    %4236 = vmatpush.bf16.msra.mxu0 0
    %4237 = vmatpush.bf16.msra.mxu0 0
    %4238 = vmatpush.bf16.msra.mxu0 %v4217
    %4239 = vmatpush.bf16.msra.mxu0 %v4216
    %4240 = vmatmul.bf16.gmra.mxu0 %v4221
    %v4241 = vpop.f32.mrf.mxu0
    %v4242 = vadd.f32 0.0, %v4241
    %v4243 = vpop.f32.mrf.mxu0
    %v4244 = vadd.f32 0.0, %v4243
    %4245 = vmatmul.bf16.gmra.mxu0 %v4224
    %v4246 = vpop.f32.mrf.mxu0
    %v4247 = vadd.f32 0.0, %v4246
    %v4248 = vpop.f32.mrf.mxu0
    %v4249 = vadd.f32 0.0, %v4248
    %4250 = vmatmul.bf16.gmra.mxu0 %v4227
    %v4251 = vpop.f32.mrf.mxu0
    %v4252 = vadd.f32 0.0, %v4251
    %v4253 = vpop.f32.mrf.mxu0
    %v4254 = vadd.f32 0.0, %v4253
    %4255 = vmatmul.bf16.gmra.mxu0 %v4230
    %v4256 = vpop.f32.mrf.mxu0
    %v4257 = vadd.f32 0.0, %v4256
    %v4258 = vpop.f32.mrf.mxu0
    %v4259 = vadd.f32 0.0, %v4258
    %4260 = vdwg.mxu0
    %v4261 = vadd.f32 %v4191, %v4242
    %v4262 = vadd.f32 %v4192, %v4244
    %v4263 = vadd.f32 %v4193, %v4247
    %v4264 = vadd.f32 %v4194, %v4249
    %v4265 = vadd.f32 %v4195, %v4252
    %v4266 = vadd.f32 %v4196, %v4254
    %v4267 = vadd.f32 %v4197, %v4257
    %v4268 = vadd.f32 %v4198, %v4259
    %v4269 = vpack.c.bf16 %v3709, %v3707
    %v4270 = vpack.c.bf16 %v3714, %v3712
    %v4271 = vpack.c.bf16 %v3719, %v3717
    %v4272 = vpack.c.bf16 %v3724, %v3722
    %s4273 = scalar_lea.vmem %s47, 128
    %v4274 = vld [vmem:[%s4273] sm:$0xf]
    %v4275 = vld [vmem:[%s4273 + $0x4] sm:$0xf]
    %v4276 = vld [vmem:[%s4273 + $0x8] sm:$0xf]
    %v4277 = vld [vmem:[%s4273 + $0xc] sm:$0xf]
    %v4282 = vunpack.c.l.b16 %v4274
    %v4283 = vunpack.c.l.b16 %v4275
    %v4284 = vunpack.c.l.b16 %v4276
    %v4285 = vunpack.c.l.b16 %v4277
    %v4286 = vpack.c.b16 %v4283, %v4282
    %v4287 = vpack.c.b16 %v4285, %v4284
    %v4291 = vsel %vm132, %v4269, 0
    %v4294 = vsel %vm132, %v4270, 0
    %v4297 = vsel %vm132, %v4271, 0
    %v4300 = vsel %vm132, %v4272, 0
    %4302 = vmatpush.bf16.msra.mxu0 0
    %4303 = vmatpush.bf16.msra.mxu0 0
    %4304 = vmatpush.bf16.msra.mxu0 0
    %4305 = vmatpush.bf16.msra.mxu0 0
    %4306 = vmatpush.bf16.msra.mxu0 0
    %4307 = vmatpush.bf16.msra.mxu0 0
    %4308 = vmatpush.bf16.msra.mxu0 %v4287
    %4309 = vmatpush.bf16.msra.mxu0 %v4286
    %4310 = vmatmul.bf16.gmra.mxu0 %v4291
    %v4311 = vpop.f32.mrf.mxu0
    %v4312 = vadd.f32 0.0, %v4311
    %v4313 = vpop.f32.mrf.mxu0
    %v4314 = vadd.f32 0.0, %v4313
    %4315 = vmatmul.bf16.gmra.mxu0 %v4294
    %v4316 = vpop.f32.mrf.mxu0
    %v4317 = vadd.f32 0.0, %v4316
    %v4318 = vpop.f32.mrf.mxu0
    %v4319 = vadd.f32 0.0, %v4318
    %4320 = vmatmul.bf16.gmra.mxu0 %v4297
    %v4321 = vpop.f32.mrf.mxu0
    %v4322 = vadd.f32 0.0, %v4321
    %v4323 = vpop.f32.mrf.mxu0
    %v4324 = vadd.f32 0.0, %v4323
    %4325 = vmatmul.bf16.gmra.mxu0 %v4300
    %v4326 = vpop.f32.mrf.mxu0
    %v4327 = vadd.f32 0.0, %v4326
    %v4328 = vpop.f32.mrf.mxu0
    %v4329 = vadd.f32 0.0, %v4328
    %4330 = vdwg.mxu0
    %v4331 = vadd.f32 %v4261, %v4312
    %v4332 = vadd.f32 %v4262, %v4314
    %v4333 = vadd.f32 %v4263, %v4317
    %v4334 = vadd.f32 %v4264, %v4319
    %v4335 = vadd.f32 %v4265, %v4322
    %v4336 = vadd.f32 %v4266, %v4324
    %v4337 = vadd.f32 %v4267, %v4327
    %v4338 = vadd.f32 %v4268, %v4329
    %v4339 = vld [vmem:[%s49] sm:$0x1]
    %v4341 = vperm.slane %v4339, 0
    %v4343 = vadd.f32 %v4331, %v4341
    %v4344 = vadd.f32 %v4332, %v4341
    %v4345 = vadd.f32 %v4333, %v4341
    %v4346 = vadd.f32 %v4334, %v4341
    %v4347 = vadd.f32 %v4335, %v4341
    %v4348 = vadd.f32 %v4336, %v4341
    %v4349 = vadd.f32 %v4337, %v4341
    %v4350 = vadd.f32 %v4338, %v4341
    %v4351 = vadd.f32 %v2339, %v4343
    %v4352 = vadd.f32 %v2340, %v4344
    %v4353 = vadd.f32 %v2341, %v4345
    %v4354 = vadd.f32 %v2342, %v4346
    %v4355 = vadd.f32 %v2343, %v4347
    %v4356 = vadd.f32 %v2344, %v4348
    %v4357 = vadd.f32 %v2345, %v4349
    %v4358 = vadd.f32 %v2346, %v4350
    %v4359 = vmax.f32 %v4351, 0.0
    %v4360 = vmax.f32 %v4352, 0.0
    %v4361 = vmax.f32 %v4353, 0.0
    %v4362 = vmax.f32 %v4354, 0.0
    %v4363 = vmax.f32 %v4355, 0.0
    %v4364 = vmax.f32 %v4356, 0.0
    %v4365 = vmax.f32 %v4357, 0.0
    %v4366 = vmax.f32 %v4358, 0.0
    %v4367 = vld [vmem:[%s51] sm:$0xf]
    %v4368 = vld [vmem:[%s51 + $0x4] sm:$0xf]
    %v4369 = vld [vmem:[%s51 + $0x8] sm:$0xf]
    %v4370 = vld [vmem:[%s51 + $0xc] sm:$0xf]
    %v4371 = vld [vmem:[%s51 + $0x10] sm:$0xf]
    %v4372 = vld [vmem:[%s51 + $0x14] sm:$0xf]
    %v4373 = vld [vmem:[%s51 + $0x18] sm:$0xf]
    %v4374 = vld [vmem:[%s51 + $0x1c] sm:$0xf]
    %v4375 = vld [vmem:[%s51 + $0x20] sm:$0xf]
    %v4376 = vld [vmem:[%s51 + $0x24] sm:$0xf]
    %v4377 = vld [vmem:[%s51 + $0x28] sm:$0xf]
    %v4378 = vld [vmem:[%s51 + $0x2c] sm:$0xf]
    %v4379 = vld [vmem:[%s51 + $0x30] sm:$0xf]
    %v4380 = vld [vmem:[%s51 + $0x34] sm:$0xf]
    %v4381 = vld [vmem:[%s51 + $0x38] sm:$0xf]
    %v4382 = vld [vmem:[%s51 + $0x3c] sm:$0xf]
    %v4383 = vld [vmem:[%s51 + $0x40] sm:$0xf]
    %v4384 = vld [vmem:[%s51 + $0x44] sm:$0xf]
    %v4385 = vpack.c.bf16 %v4360, %v4359
    %v4386 = vpack.c.bf16 %v4362, %v4361
    %v4387 = vpack.c.bf16 %v4364, %v4363
    %v4388 = vpack.c.bf16 %v4366, %v4365
    %v4407 = vunpack.c.l.b16 %v4367
    %v4408 = vunpack.c.l.b16 %v4368
    %v4409 = vunpack.c.l.b16 %v4369
    %v4410 = vunpack.c.l.b16 %v4370
    %v4411 = vunpack.c.l.b16 %v4371
    %v4412 = vunpack.c.l.b16 %v4372
    %v4413 = vunpack.c.l.b16 %v4373
    %v4414 = vunpack.c.l.b16 %v4374
    %v4415 = vunpack.c.l.b16 %v4375
    %v4416 = vunpack.c.l.b16 %v4376
    %v4417 = vunpack.c.l.b16 %v4377
    %v4418 = vunpack.c.l.b16 %v4378
    %v4419 = vunpack.c.l.b16 %v4379
    %v4420 = vunpack.c.l.b16 %v4380
    %v4421 = vunpack.c.l.b16 %v4381
    %v4422 = vunpack.c.l.b16 %v4382
    %v4423 = vunpack.c.l.b16 %v4383
    %v4424 = vunpack.c.l.b16 %v4384
    %v4425 = vpack.c.b16 %v4408, %v4407
    %v4426 = vpack.c.b16 %v4410, %v4409
    %v4427 = vpack.c.b16 %v4412, %v4411
    %v4428 = vpack.c.b16 %v4414, %v4413
    %v4429 = vpack.c.b16 %v4416, %v4415
    %v4430 = vpack.c.b16 %v4418, %v4417
    %v4431 = vpack.c.b16 %v4420, %v4419
    %v4432 = vpack.c.b16 %v4422, %v4421
    %v4433 = vpack.c.b16 %v4424, %v4423
    %v4435 = vsel %vm604, %v4425, 0
    %v4438 = vsel %vm604, %v4426, 0
    %v4441 = vsel %vm604, %v4427, 0
    %v4444 = vsel %vm604, %v4428, 0
    %v4447 = vsel %vm604, %v4429, 0
    %v4450 = vsel %vm604, %v4430, 0
    %v4453 = vsel %vm604, %v4431, 0
    %v4456 = vsel %vm604, %v4432, 0
    %v4459 = vsel %vm604, %v4433, 0
    %4461 = vmatpush.bf16.msra.mxu0 0
    %4462 = vmatpush.bf16.msra.mxu0 0
    %4463 = vmatpush.bf16.msra.mxu0 0
    %4464 = vmatpush.bf16.msra.mxu0 0
    %4465 = vmatpush.bf16.msra.mxu0 %v4388
    %4466 = vmatpush.bf16.msra.mxu0 %v4387
    %4467 = vmatpush.bf16.msra.mxu0 %v4386
    %4468 = vmatpush.bf16.msra.mxu0 %v4385
    %4469 = vmatmul.bf16.gmra.mxu0 %v4435
    %v4470 = vpop.f32.mrf.mxu0
    %v4471 = vadd.f32 0.0, %v4470
    %v4472 = vpop.f32.mrf.mxu0
    %v4473 = vadd.f32 0.0, %v4472
    %4474 = vmatmul.bf16.gmra.mxu0 %v4438
    %v4475 = vpop.f32.mrf.mxu0
    %v4476 = vadd.f32 0.0, %v4475
    %v4477 = vpop.f32.mrf.mxu0
    %v4478 = vadd.f32 0.0, %v4477
    %4479 = vmatmul.bf16.gmra.mxu0 %v4441
    %v4480 = vpop.f32.mrf.mxu0
    %v4481 = vadd.f32 0.0, %v4480
    %v4482 = vpop.f32.mrf.mxu0
    %v4483 = vadd.f32 0.0, %v4482
    %4484 = vmatmul.bf16.gmra.mxu0 %v4444
    %v4485 = vpop.f32.mrf.mxu0
    %v4486 = vadd.f32 0.0, %v4485
    %v4487 = vpop.f32.mrf.mxu0
    %v4488 = vadd.f32 0.0, %v4487
    %4489 = vmatmul.bf16.gmra.mxu0 %v4447
    %v4490 = vpop.f32.mrf.mxu0
    %v4491 = vadd.f32 0.0, %v4490
    %v4492 = vpop.f32.mrf.mxu0
    %v4493 = vadd.f32 0.0, %v4492
    %4494 = vmatmul.bf16.gmra.mxu0 %v4450
    %v4495 = vpop.f32.mrf.mxu0
    %v4496 = vadd.f32 0.0, %v4495
    %v4497 = vpop.f32.mrf.mxu0
    %v4498 = vadd.f32 0.0, %v4497
    %4499 = vmatmul.bf16.gmra.mxu0 %v4453
    %v4500 = vpop.f32.mrf.mxu0
    %v4501 = vadd.f32 0.0, %v4500
    %v4502 = vpop.f32.mrf.mxu0
    %v4503 = vadd.f32 0.0, %v4502
    %4504 = vmatmul.bf16.gmra.mxu0 %v4456
    %v4505 = vpop.f32.mrf.mxu0
    %v4506 = vadd.f32 0.0, %v4505
    %v4507 = vpop.f32.mrf.mxu0
    %v4508 = vadd.f32 0.0, %v4507
    %4509 = vmatmul.bf16.gmra.mxu0 %v4459
    %v4510 = vpop.f32.mrf.mxu0
    %v4511 = vadd.f32 0.0, %v4510
    %v4512 = vpop.f32.mrf.mxu0
    %v4513 = vadd.f32 0.0, %v4512
    %4514 = vdwg.mxu0
    %v4515 = vpack.c.bf16 %v4473, %v4471
    %v4516 = vld [vmem:[%s53] sm:$0xf]
    %v4517 = vld [vmem:[%s53 + $0x4] sm:$0xf]
    %v4518 = vld [vmem:[%s53 + $0x8] sm:$0xf]
    %v4519 = vld [vmem:[%s53 + $0xc] sm:$0xf]
    %v4520 = vpack.c.bf16 %v4478, %v4476
    %s4521 = scalar_lea.vmem %s53, 16
    %v4522 = vld [vmem:[%s4521] sm:$0xf]
    %v4523 = vld [vmem:[%s4521 + $0x4] sm:$0xf]
    %v4524 = vld [vmem:[%s4521 + $0x8] sm:$0xf]
    %v4525 = vld [vmem:[%s4521 + $0xc] sm:$0xf]
    %v4530 = vunpack.c.l.b16 %v4522
    %v4531 = vunpack.c.l.b16 %v4523
    %v4532 = vunpack.c.l.b16 %v4524
    %v4533 = vunpack.c.l.b16 %v4525
    %v4534 = vpack.c.b16 %v4531, %v4530
    %v4535 = vpack.c.b16 %v4533, %v4532
    %v4539 = vsel %vm132, %v4520, 0
    %4541 = vmatpush.bf16.msra.mxu0 0
    %4542 = vmatpush.bf16.msra.mxu0 0
    %4543 = vmatpush.bf16.msra.mxu0 0
    %4544 = vmatpush.bf16.msra.mxu0 0
    %4545 = vmatpush.bf16.msra.mxu0 0
    %4546 = vmatpush.bf16.msra.mxu0 0
    %4547 = vmatpush.bf16.msra.mxu0 %v4535
    %4548 = vmatpush.bf16.msra.mxu0 %v4534
    %4549 = vmatmul.bf16.gmra.mxu0 %v4539
    %v4550 = vpop.f32.mrf.mxu0
    %v4551 = vadd.f32 0.0, %v4550
    %v4552 = vpop.f32.mrf.mxu0
    %v4553 = vadd.f32 0.0, %v4552
    %4554 = vdwg.mxu0
    %v4559 = vunpack.c.l.b16 %v4516
    %v4560 = vunpack.c.l.b16 %v4517
    %v4561 = vunpack.c.l.b16 %v4518
    %v4562 = vunpack.c.l.b16 %v4519
    %v4563 = vpack.c.b16 %v4560, %v4559
    %v4564 = vpack.c.b16 %v4562, %v4561
    %v4568 = vsel %vm132, %v4515, 0
    %4570 = vmatpush.bf16.msra.mxu0 0
    %4571 = vmatpush.bf16.msra.mxu0 0
    %4572 = vmatpush.bf16.msra.mxu0 0
    %4573 = vmatpush.bf16.msra.mxu0 0
    %4574 = vmatpush.bf16.msra.mxu0 0
    %4575 = vmatpush.bf16.msra.mxu0 0
    %4576 = vmatpush.bf16.msra.mxu0 %v4564
    %4577 = vmatpush.bf16.msra.mxu0 %v4563
    %4578 = vmatmul.bf16.gmra.mxu0 %v4568
    %v4579 = vpop.f32.mrf.mxu0
    %v4580 = vadd.f32 %v4551, %v4579
    %v4581 = vpop.f32.mrf.mxu0
    %v4582 = vadd.f32 %v4553, %v4581
    %4583 = vdwg.mxu0
    %v4584 = vpack.c.bf16 %v4483, %v4481
    %s4585 = scalar_lea.vmem %s53, 32
    %v4586 = vld [vmem:[%s4585] sm:$0xf]
    %v4587 = vld [vmem:[%s4585 + $0x4] sm:$0xf]
    %v4588 = vld [vmem:[%s4585 + $0x8] sm:$0xf]
    %v4589 = vld [vmem:[%s4585 + $0xc] sm:$0xf]
    %v4594 = vunpack.c.l.b16 %v4586
    %v4595 = vunpack.c.l.b16 %v4587
    %v4596 = vunpack.c.l.b16 %v4588
    %v4597 = vunpack.c.l.b16 %v4589
    %v4598 = vpack.c.b16 %v4595, %v4594
    %v4599 = vpack.c.b16 %v4597, %v4596
    %v4603 = vsel %vm132, %v4584, 0
    %4605 = vmatpush.bf16.msra.mxu0 0
    %4606 = vmatpush.bf16.msra.mxu0 0
    %4607 = vmatpush.bf16.msra.mxu0 0
    %4608 = vmatpush.bf16.msra.mxu0 0
    %4609 = vmatpush.bf16.msra.mxu0 0
    %4610 = vmatpush.bf16.msra.mxu0 0
    %4611 = vmatpush.bf16.msra.mxu0 %v4599
    %4612 = vmatpush.bf16.msra.mxu0 %v4598
    %4613 = vmatmul.bf16.gmra.mxu0 %v4603
    %v4614 = vpop.f32.mrf.mxu0
    %v4615 = vadd.f32 0.0, %v4614
    %v4616 = vpop.f32.mrf.mxu0
    %v4617 = vadd.f32 0.0, %v4616
    %4618 = vdwg.mxu0
    %v4619 = vadd.f32 %v4580, %v4615
    %v4620 = vadd.f32 %v4582, %v4617
    %v4621 = vpack.c.bf16 %v4488, %v4486
    %s4622 = scalar_lea.vmem %s53, 48
    %v4623 = vld [vmem:[%s4622] sm:$0xf]
    %v4624 = vld [vmem:[%s4622 + $0x4] sm:$0xf]
    %v4625 = vld [vmem:[%s4622 + $0x8] sm:$0xf]
    %v4626 = vld [vmem:[%s4622 + $0xc] sm:$0xf]
    %v4631 = vunpack.c.l.b16 %v4623
    %v4632 = vunpack.c.l.b16 %v4624
    %v4633 = vunpack.c.l.b16 %v4625
    %v4634 = vunpack.c.l.b16 %v4626
    %v4635 = vpack.c.b16 %v4632, %v4631
    %v4636 = vpack.c.b16 %v4634, %v4633
    %v4640 = vsel %vm132, %v4621, 0
    %4642 = vmatpush.bf16.msra.mxu0 0
    %4643 = vmatpush.bf16.msra.mxu0 0
    %4644 = vmatpush.bf16.msra.mxu0 0
    %4645 = vmatpush.bf16.msra.mxu0 0
    %4646 = vmatpush.bf16.msra.mxu0 0
    %4647 = vmatpush.bf16.msra.mxu0 0
    %4648 = vmatpush.bf16.msra.mxu0 %v4636
    %4649 = vmatpush.bf16.msra.mxu0 %v4635
    %4650 = vmatmul.bf16.gmra.mxu0 %v4640
    %v4651 = vpop.f32.mrf.mxu0
    %v4652 = vadd.f32 0.0, %v4651
    %v4653 = vpop.f32.mrf.mxu0
    %v4654 = vadd.f32 0.0, %v4653
    %4655 = vdwg.mxu0
    %v4656 = vadd.f32 %v4619, %v4652
    %v4657 = vadd.f32 %v4620, %v4654
    %v4658 = vpack.c.bf16 %v4493, %v4491
    %s4659 = scalar_lea.vmem %s53, 64
    %v4660 = vld [vmem:[%s4659] sm:$0xf]
    %v4661 = vld [vmem:[%s4659 + $0x4] sm:$0xf]
    %v4662 = vld [vmem:[%s4659 + $0x8] sm:$0xf]
    %v4663 = vld [vmem:[%s4659 + $0xc] sm:$0xf]
    %v4668 = vunpack.c.l.b16 %v4660
    %v4669 = vunpack.c.l.b16 %v4661
    %v4670 = vunpack.c.l.b16 %v4662
    %v4671 = vunpack.c.l.b16 %v4663
    %v4672 = vpack.c.b16 %v4669, %v4668
    %v4673 = vpack.c.b16 %v4671, %v4670
    %v4677 = vsel %vm132, %v4658, 0
    %4679 = vmatpush.bf16.msra.mxu0 0
    %4680 = vmatpush.bf16.msra.mxu0 0
    %4681 = vmatpush.bf16.msra.mxu0 0
    %4682 = vmatpush.bf16.msra.mxu0 0
    %4683 = vmatpush.bf16.msra.mxu0 0
    %4684 = vmatpush.bf16.msra.mxu0 0
    %4685 = vmatpush.bf16.msra.mxu0 %v4673
    %4686 = vmatpush.bf16.msra.mxu0 %v4672
    %4687 = vmatmul.bf16.gmra.mxu0 %v4677
    %v4688 = vpop.f32.mrf.mxu0
    %v4689 = vadd.f32 0.0, %v4688
    %v4690 = vpop.f32.mrf.mxu0
    %v4691 = vadd.f32 0.0, %v4690
    %4692 = vdwg.mxu0
    %v4693 = vadd.f32 %v4656, %v4689
    %v4694 = vadd.f32 %v4657, %v4691
    %v4695 = vpack.c.bf16 %v4498, %v4496
    %s4696 = scalar_lea.vmem %s53, 80
    %v4697 = vld [vmem:[%s4696] sm:$0xf]
    %v4698 = vld [vmem:[%s4696 + $0x4] sm:$0xf]
    %v4699 = vld [vmem:[%s4696 + $0x8] sm:$0xf]
    %v4700 = vld [vmem:[%s4696 + $0xc] sm:$0xf]
    %v4705 = vunpack.c.l.b16 %v4697
    %v4706 = vunpack.c.l.b16 %v4698
    %v4707 = vunpack.c.l.b16 %v4699
    %v4708 = vunpack.c.l.b16 %v4700
    %v4709 = vpack.c.b16 %v4706, %v4705
    %v4710 = vpack.c.b16 %v4708, %v4707
    %v4714 = vsel %vm132, %v4695, 0
    %4716 = vmatpush.bf16.msra.mxu0 0
    %4717 = vmatpush.bf16.msra.mxu0 0
    %4718 = vmatpush.bf16.msra.mxu0 0
    %4719 = vmatpush.bf16.msra.mxu0 0
    %4720 = vmatpush.bf16.msra.mxu0 0
    %4721 = vmatpush.bf16.msra.mxu0 0
    %4722 = vmatpush.bf16.msra.mxu0 %v4710
    %4723 = vmatpush.bf16.msra.mxu0 %v4709
    %4724 = vmatmul.bf16.gmra.mxu0 %v4714
    %v4725 = vpop.f32.mrf.mxu0
    %v4726 = vadd.f32 0.0, %v4725
    %v4727 = vpop.f32.mrf.mxu0
    %v4728 = vadd.f32 0.0, %v4727
    %4729 = vdwg.mxu0
    %v4730 = vadd.f32 %v4693, %v4726
    %v4731 = vadd.f32 %v4694, %v4728
    %v4732 = vpack.c.bf16 %v4503, %v4501
    %s4733 = scalar_lea.vmem %s53, 96
    %v4734 = vld [vmem:[%s4733] sm:$0xf]
    %v4735 = vld [vmem:[%s4733 + $0x4] sm:$0xf]
    %v4736 = vld [vmem:[%s4733 + $0x8] sm:$0xf]
    %v4737 = vld [vmem:[%s4733 + $0xc] sm:$0xf]
    %v4742 = vunpack.c.l.b16 %v4734
    %v4743 = vunpack.c.l.b16 %v4735
    %v4744 = vunpack.c.l.b16 %v4736
    %v4745 = vunpack.c.l.b16 %v4737
    %v4746 = vpack.c.b16 %v4743, %v4742
    %v4747 = vpack.c.b16 %v4745, %v4744
    %v4751 = vsel %vm132, %v4732, 0
    %4753 = vmatpush.bf16.msra.mxu0 0
    %4754 = vmatpush.bf16.msra.mxu0 0
    %4755 = vmatpush.bf16.msra.mxu0 0
    %4756 = vmatpush.bf16.msra.mxu0 0
    %4757 = vmatpush.bf16.msra.mxu0 0
    %4758 = vmatpush.bf16.msra.mxu0 0
    %4759 = vmatpush.bf16.msra.mxu0 %v4747
    %4760 = vmatpush.bf16.msra.mxu0 %v4746
    %4761 = vmatmul.bf16.gmra.mxu0 %v4751
    %v4762 = vpop.f32.mrf.mxu0
    %v4763 = vadd.f32 0.0, %v4762
    %v4764 = vpop.f32.mrf.mxu0
    %v4765 = vadd.f32 0.0, %v4764
    %4766 = vdwg.mxu0
    %v4767 = vadd.f32 %v4730, %v4763
    %v4768 = vadd.f32 %v4731, %v4765
    %v4769 = vpack.c.bf16 %v4508, %v4506
    %s4770 = scalar_lea.vmem %s53, 112
    %v4771 = vld [vmem:[%s4770] sm:$0xf]
    %v4772 = vld [vmem:[%s4770 + $0x4] sm:$0xf]
    %v4773 = vld [vmem:[%s4770 + $0x8] sm:$0xf]
    %v4774 = vld [vmem:[%s4770 + $0xc] sm:$0xf]
    %v4779 = vunpack.c.l.b16 %v4771
    %v4780 = vunpack.c.l.b16 %v4772
    %v4781 = vunpack.c.l.b16 %v4773
    %v4782 = vunpack.c.l.b16 %v4774
    %v4783 = vpack.c.b16 %v4780, %v4779
    %v4784 = vpack.c.b16 %v4782, %v4781
    %v4788 = vsel %vm132, %v4769, 0
    %4790 = vmatpush.bf16.msra.mxu0 0
    %4791 = vmatpush.bf16.msra.mxu0 0
    %4792 = vmatpush.bf16.msra.mxu0 0
    %4793 = vmatpush.bf16.msra.mxu0 0
    %4794 = vmatpush.bf16.msra.mxu0 0
    %4795 = vmatpush.bf16.msra.mxu0 0
    %4796 = vmatpush.bf16.msra.mxu0 %v4784
    %4797 = vmatpush.bf16.msra.mxu0 %v4783
    %4798 = vmatmul.bf16.gmra.mxu0 %v4788
    %v4799 = vpop.f32.mrf.mxu0
    %v4800 = vadd.f32 0.0, %v4799
    %v4801 = vpop.f32.mrf.mxu0
    %v4802 = vadd.f32 0.0, %v4801
    %4803 = vdwg.mxu0
    %v4804 = vadd.f32 %v4767, %v4800
    %v4805 = vadd.f32 %v4768, %v4802
    %v4806 = vpack.c.bf16 %v4513, %v4511
    %s4807 = scalar_lea.vmem %s53, 128
    %v4808 = vld [vmem:[%s4807] sm:$0xf]
    %v4809 = vld [vmem:[%s4807 + $0x4] sm:$0xf]
    %v4810 = vld [vmem:[%s4807 + $0x8] sm:$0xf]
    %v4811 = vld [vmem:[%s4807 + $0xc] sm:$0xf]
    %v4816 = vunpack.c.l.b16 %v4808
    %v4817 = vunpack.c.l.b16 %v4809
    %v4818 = vunpack.c.l.b16 %v4810
    %v4819 = vunpack.c.l.b16 %v4811
    %v4820 = vpack.c.b16 %v4817, %v4816
    %v4821 = vpack.c.b16 %v4819, %v4818
    %v4825 = vsel %vm132, %v4806, 0
    %4827 = vmatpush.bf16.msra.mxu0 0
    %4828 = vmatpush.bf16.msra.mxu0 0
    %4829 = vmatpush.bf16.msra.mxu0 0
    %4830 = vmatpush.bf16.msra.mxu0 0
    %4831 = vmatpush.bf16.msra.mxu0 0
    %4832 = vmatpush.bf16.msra.mxu0 0
    %4833 = vmatpush.bf16.msra.mxu0 %v4821
    %4834 = vmatpush.bf16.msra.mxu0 %v4820
    %4835 = vmatmul.bf16.gmra.mxu0 %v4825
    %v4836 = vpop.f32.mrf.mxu0
    %v4837 = vadd.f32 0.0, %v4836
    %v4838 = vpop.f32.mrf.mxu0
    %v4839 = vadd.f32 0.0, %v4838
    %4840 = vdwg.mxu0
    %v4841 = vadd.f32 %v4804, %v4837
    %v4842 = vadd.f32 %v4805, %v4839
    %v4843 = vld [vmem:[%s55] sm:$0x1]
    %v4845 = vperm.slane %v4843, 0
    %v4847 = vadd.f32 %v4841, %v4845
    %v4848 = vadd.f32 %v4842, %v4845
    %v4849 = vmax.f32 %v4847, 0.0
    %v4850 = vmax.f32 %v4848, 0.0
    %v4851 = vadd.f32 %v4849, %v4850
    %v4852 = vrot.slane %v4851, 4
    %v4853 = vadd.f32 %v4851, %v4852
    %v4854 = vrot.slane %v4853, 2
    %v4855 = vadd.f32 %v4853, %v4854
    %v4856 = vrot.slane %v4855, 1
    %v4857 = vadd.f32 %v4855, %v4856
    %v4858 = vrcp.pop 16.0
    %v4859 = vmul.f32 16.0, %v4858
    %v4860 = vsub.f32 1.0, %v4859
    %v4861 = vmul.f32 %v4858, %v4860
    %v4862 = vadd.f32 %v4858, %v4861
    %vm4863 = vweird.f32 %v4858
    %v4864 = vsel %vm4863, %v4858, %v4862
    %v4865 = vmul.f32 %v4857, %v4864
    %4867 = vrot.lane.b32.xlu0 %v4865, 64
    %v4868 = vpop.permute.xlu0 %4867
    %v4870 = vsel %vm683, %v4865, %v4868
    %v4871 = vpack.c.bf16 %v4870, %v4870
    %v4872 = vld [vmem:[%s57] sm:$0xf]
    %v4873 = vld [vmem:[%s57 + $0x4] sm:$0xf]
    %v4874 = vld [vmem:[%s57 + $0x8] sm:$0xf]
    %v4875 = vld [vmem:[%s57 + $0xc] sm:$0xf]
    %v4876 = vld [vmem:[%s57 + $0x10] sm:$0xf]
    %v4877 = vld [vmem:[%s57 + $0x14] sm:$0xf]
    %v4878 = vld [vmem:[%s57 + $0x18] sm:$0xf]
    %v4879 = vld [vmem:[%s57 + $0x1c] sm:$0xf]
    %v4888 = vunpack.c.l.b16 %v4872
    %v4889 = vunpack.c.l.b16 %v4873
    %v4890 = vunpack.c.l.b16 %v4874
    %v4891 = vunpack.c.l.b16 %v4875
    %v4892 = vunpack.c.l.b16 %v4876
    %v4893 = vunpack.c.l.b16 %v4877
    %v4894 = vunpack.c.l.b16 %v4878
    %v4895 = vunpack.c.l.b16 %v4879
    %v4896 = vpack.c.b16 %v4889, %v4888
    %v4897 = vpack.c.b16 %v4891, %v4890
    %v4898 = vpack.c.b16 %v4893, %v4892
    %v4899 = vpack.c.b16 %v4895, %v4894
    %v4905 = vsel %vm604, %v4871, 0
    %4907 = vmatpush.bf16.msra.mxu0 0
    %4908 = vmatpush.bf16.msra.mxu0 0
    %4909 = vmatpush.bf16.msra.mxu0 0
    %4910 = vmatpush.bf16.msra.mxu0 0
    %4911 = vmatpush.bf16.msra.mxu0 %v4899
    %4912 = vmatpush.bf16.msra.mxu0 %v4898
    %4913 = vmatpush.bf16.msra.mxu0 %v4897
    %4914 = vmatpush.bf16.msra.mxu0 %v4896
    %4915 = vmatmul.bf16.gmra.mxu0 %v4905
    %v4916 = vpop.f32.mrf.mxu0
    %v4917 = vadd.f32 0.0, %v4916
    %v4918 = vpop.f32.mrf.mxu0
    %4919 = vdwg.mxu0
    %v4920 = vadd.f32 %v2248, %v4917
    %v4921 = vld [vmem:[%s59] sm:$0x1]
    %v4923 = vperm.slane %v4921, 0
    %v4925 = vadd.f32 %v4920, %v4923
    %vm4926 = vcmask 9216
    %4927 = vst.msk [vmem:[#allocation2] sm:$0x3] %vm4926, %v4925
    // Predicated region
    $region122: #{model_forward.1} parent=1 // pred_check
      _
    $region123: #{model_forward.1} parent=1 // pred_check_branch
      %4929 = sbr.rel (0) target = $region125
    $region124: #{model_forward.1} parent=1 // pred_region
      %4931 = vsyncadd [#allocation3], 0
      %s4933 = sshll.u32 [#allocation2], 4
      %s4934 = int_to_ptr.vmem [resolvable:$true] %s4933
      %s4935 = sshll.u32 %s61, 4
      %s4936 = int_to_ptr.hbm [resolvable:$true] %s4935
      %4938 = dma.vmem_to_hbm [thread:$0]  %s4934, 32, %s4936, [#allocation3]
    $region125: #{model_forward.1} parent=1 // pred_fallthru
      _
    // Predicated region
    $region126: #{model_forward.1} parent=1 // pred_check
      _
    $region127: #{model_forward.1} parent=1 // pred_check_branch
      %4940 = sbr.rel (0) target = $region129
    $region128: #{model_forward.1} parent=1 // pred_region
      %4942 = dma.done [#allocation3], 32
    $region129: #{model_forward.1} parent=1 // pred_fallthru
      _
    %4943 = vsyncpa [#allocation3], 1

</llo_original>
